<compile_context>
chip_gen: v6e
topology: v6e:2x2x1
jax: 0.10.0
libtpu: 0.0.40
codegen_flags: <defaults>
</compile_context>

<pallas_src>
import functools
import math

import jax
import jax.numpy as jnp
from jax import lax
from jax.experimental import pallas as pl
from jax.experimental.pallas import tpu as pltpu


# ----------------------------- small helpers ------------------------------

def _sigmoid(x):
    # divide goes to the EUP slot (idle during the gating math)
    return pl.reciprocal(1.0 + jnp.exp(-x), approx=True)


def _silu(x):
    return x * _sigmoid(x)


def _softplus(x):
    # numerically stable softplus using only exp/log/abs/max
    return jnp.maximum(x, 0.0) + jnp.log(1.0 + jnp.exp(-jnp.abs(x)))


def _full_spec(a):
    # whole-array block, same block for every grid step (Pallas skips re-DMA)
    return pl.BlockSpec(a.shape, lambda b, n=a.ndim: (0,) * n)


# --------------------------- fused VKFF kernel ------------------------------

def _vkff_kernel(x_ref, kf_ref,
                 wqkv_ref, bqkv_ref, wo_ref, bo_ref,
                 win_ref, convw_ref, convb_ref,
                 wdbc_ref, wdt_ref, bdt_ref,
                 alog_ref, dpar_ref, wout_ref,
                 o_ref, y_scr, *, num_heads):
    f32, bf16 = jnp.float32, jnp.bfloat16
    BB, S, D = x_ref.shape
    H = num_heads
    DK = D // H
    E = wout_ref.shape[0]        # d_inner
    N = alog_ref.shape[0]        # d_state
    R = wdt_ref.shape[0]         # dt_rank
    K = convw_ref.shape[0]       # d_conv
    M = BB * S
    scale = 1.0 / math.sqrt(DK)

    x3 = x_ref[...]                                                      # (BB,S,D) f32
    x2 = x3.reshape(M, D).astype(bf16)                                   # MHA LHS
    # Fused additive `kf` conditioning for the Mamba branch (saves an HBM round-trip).
    xm2 = (x3 + kf_ref[...]).reshape(M, D).astype(bf16)                  # Mamba LHS

    # ------------------- MultiHeadedAttention (h heads) -------------------
    # One wide (M,D)x(D,3D) bf16 matmul for Q|K|V (f32 accumulate).
    qkv = jnp.dot(x2, wqkv_ref[...], preferred_element_type=f32) + bqkv_ref[...]
    q3 = qkv[:, 0 * D:1 * D].reshape(BB, S, D).astype(bf16)
    k3 = qkv[:, 1 * D:2 * D].reshape(BB, S, D).astype(bf16)
    v3 = qkv[:, 2 * D:3 * D].reshape(BB, S, D).astype(bf16)

    heads = []
    for h in range(H):               # static unroll; only tiny (S,S) work per head
        lo = h * DK
        qh = q3[:, :, lo:lo + DK]
        kh = k3[:, :, lo:lo + DK]
        vh = v3[:, :, lo:lo + DK]
        s = jnp.einsum('bqd,bkd->bqk', qh, kh,
                       preferred_element_type=f32) * scale               # (BB,S,S)
        m = jnp.max(s, axis=-1, keepdims=True)
        e = jnp.exp(s - m)
        inv = pl.reciprocal(jnp.sum(e, axis=-1, keepdims=True), approx=True)
        p = (e * inv).astype(bf16)
        heads.append(jnp.einsum('bqk,bkd->bqd', p, vh,
                                preferred_element_type=f32))             # (BB,S,DK)
    o_cat = jnp.concatenate(heads, axis=-1).reshape(M, D).astype(bf16)
    att = jnp.dot(o_cat, wo_ref[...], preferred_element_type=f32) + bo_ref[...]   # (M,D)

    # ----------------------------- Mamba (S6) -----------------------------
    # One wide (M,D)x(D,2E) bf16 matmul for x|z.
    xz = jnp.dot(xm2, win_ref[...], preferred_element_type=f32)          # (M,2E)
    x_in = xz[:, :E]
    z = xz[:, E:]

    # Causal depthwise conv1d: shifts via XLU roll + per-batch causal mask
    # (no unaligned sublane slices; cross-batch wrap lands only in masked rows).
    tpos = lax.broadcasted_iota(jnp.int32, (BB, S, E), 1).reshape(M, E)  # hoisted
    acc = jnp.zeros((M, E), f32) + convb_ref[...]
    for k in range(K):
        sh = K - 1 - k
        if sh == 0:
            tap = x_in
        else:
            tap = jnp.where(tpos >= sh, pltpu.roll(x_in, shift=sh, axis=0), 0.0)
        acc = acc + tap * convw_ref[k:k + 1, :]
    x_conv = _silu(acc)                                                  # (M,E)

    # Input-dependent SSM params: fused (M,E)x(E,R+2N) bf16 matmul.
    xc16 = x_conv.astype(bf16)
    dbc = jnp.dot(xc16, wdbc_ref[...], preferred_element_type=f32)       # (M,R+2N)
    dtr = dbc[:, :R]
    Bm3 = dbc[:, R:R + N].reshape(BB, S, N)
    Cm3 = dbc[:, R + N:R + 2 * N].reshape(BB, S, N)
    # dt chain kept in f32 (tiny R-contraction matmul; feeds exp() in the recurrence).
    dt = _softplus(jnp.dot(dtr, wdt_ref[...], preferred_element_type=f32)
                   + bdt_ref[...])                                       # (M,E)

    dt3 = dt.reshape(BB, S, E)
    xc3 = x_conv.reshape(BB, S, E)
    A_neg = -jnp.exp(alog_ref[...])                                      # (N,E)
    dA = jnp.exp(dt3[:, :, None, :] * A_neg[None, None, :, :])           # (BB,S,N,E)
    dBx = Bm3[:, :, :, None] * (dt3 * xc3)[:, :, None, :]                # (BB,S,N,E)

    # Sequential selective scan (static unroll over the short sequence).
    # No MXU on the critical path: C contraction = VPU multiply + sublane reduce.
    h_state = jnp.zeros((BB, N, E), f32)
    for t in range(S):
        h_state = dA[:, t] * h_state + dBx[:, t]                         # (BB,N,E)
        y_scr[:, t, :] = jnp.sum(Cm3[:, t, :, None] * h_state, axis=1)   # (BB,E)

    y = y_scr[...] + dpar_ref[...] * xc3                                 # (BB,S,E)
    y = y * _silu(z.reshape(BB, S, E))                                   # gate
    src = jnp.dot(y.reshape(M, E).astype(bf16), wout_ref[...],
                  preferred_element_type=f32)                            # (M,D)

    # Lane-dense store: att|src packed on the lane axis -> 2*D-wide rows.
    o_ref[...] = jnp.concatenate([att, src], axis=1).reshape(BB, S, 2 * D)


# ------------------------------- wrapper ------------------------------------

def vkff_forward(imageFeature, kf, params, *, num_heads, block_b=2):
    B, S, D = imageFeature.shape
    assert B % block_b == 0, "batch must be divisible by block_b"
    mha, mam = params["mha"], params["mamba"]
    E = mam["w_in_x"].shape[1]
    bf16 = jnp.bfloat16

    # Pre-concatenated shared-LHS weight slabs (one wide MXU pass each).
    wqkv = jnp.concatenate([mha["wq"], mha["wk"], mha["wv"]], axis=1).astype(bf16)  # (D,3D)
    bqkv = jnp.concatenate([mha["bq"], mha["bk"], mha["bv"]]).reshape(1, 3 * D)
    wo = mha["wo"].astype(bf16)
    bo = mha["bo"].reshape(1, D)
    w_in = jnp.concatenate([mam["w_in_x"], mam["w_in_z"]], axis=1).astype(bf16)     # (D,2E)
    w_dbc = jnp.concatenate([mam["w_dtr"], mam["w_B"], mam["w_C"]],
                            axis=1).astype(bf16)                                    # (E,R+2N)
    w_dt = mam["w_dt"]            # f32 (dt chain stays f32)
    b_dt = mam["b_dt"]
    conv_w = mam["conv_w"]
    conv_b = mam["conv_b"]
    a_log = mam["A_log"]
    d_par = mam["D"]
    w_out = mam["w_out"].astype(bf16)

    weights = (wqkv, bqkv, wo, bo, w_in, conv_w, conv_b,
               w_dbc, w_dt, b_dt, a_log, d_par, w_out)

    kernel = functools.partial(_vkff_kernel, num_heads=num_heads)
    out = pl.pallas_call(
        kernel,
        out_shape=jax.ShapeDtypeStruct((B, S, 2 * D), jnp.float32),
        grid_spec=pltpu.PrefetchScalarGridSpec(
            num_scalar_prefetch=0,
            grid=(B // block_b,),
            in_specs=[pl.BlockSpec((block_b, S, D), lambda b: (b, 0, 0)),
                      pl.BlockSpec((block_b, S, D), lambda b: (b, 0, 0))]
                     + [_full_spec(w) for w in weights],
            out_specs=pl.BlockSpec((block_b, S, 2 * D), lambda b: (b, 0, 0)),
            scratch_shapes=[pltpu.VMEM((block_b, S, E), jnp.float32)],
        ),
        compiler_params=pltpu.CompilerParams(
            dimension_semantics=("parallel",),
            vmem_limit_bytes=64 * 1024 * 1024),
    )(imageFeature, kf, *weights)

    att_feats = out[..., :D]
    src = out[..., D:]
    # NOTE: the reference forward ends with `pass` (returns None); we return both tensors.
    return att_feats, src


# ------------------------------- params -------------------------------------

def init_vkff_params(key, D, H, expand, N, K):
    E = expand * D
    R = max(1, -(-D // 16))                 # dt_rank = ceil(d_model / 16)  ("auto")
    ks = jax.random.split(key, 12)
    g = lambda k, shape, scale: jax.random.normal(k, shape, jnp.float32) * scale
    mha = {
        "wq": g(ks[0], (D, D), D ** -0.5), "bq": jnp.zeros((D,), jnp.float32),
        "wk": g(ks[1], (D, D), D ** -0.5), "bk": jnp.zeros((D,), jnp.float32),
        "wv": g(ks[2], (D, D), D ** -0.5), "bv": jnp.zeros((D,), jnp.float32),
        "wo": g(ks[3], (D, D), D ** -0.5), "bo": jnp.zeros((D,), jnp.float32),
    }
    mamba = {
        "w_in_x": g(ks[4], (D, E), D ** -0.5),
        "w_in_z": g(ks[5], (D, E), D ** -0.5),
        # PyTorch depthwise Conv1d weight is (E, 1, K); stored here transposed as (K, E).
        "conv_w": g(ks[6], (K, E), K ** -0.5),
        "conv_b": jnp.zeros((1, E), jnp.float32),
        "w_dtr": g(ks[7], (E, R), E ** -0.5),
        "w_B":   g(ks[8], (E, N), E ** -0.5),
        "w_C":   g(ks[9], (E, N), E ** -0.5),
        "w_dt":  g(ks[10], (R, E), R ** -0.5),
        "b_dt":  jnp.full((1, E), 0.1, jnp.float32),
        # S4D-real init A = -exp(A_log); stored transposed (N, E) (state on sublanes).
        "A_log": jnp.log(jnp.broadcast_to(
            jnp.arange(1, N + 1, dtype=jnp.float32)[:, None], (N, E))),
        "D":     jnp.ones((1, E), jnp.float32),
        "w_out": g(ks[11], (E, D), E ** -0.5),
    }
    return {"mha": mha, "mamba": mamba}


if __name__ == "__main__":
    # Small shapes consistent with the module's forward (d_model shrunk from 2048).
    B, S, D = 8, 8, 64           # batch, sequence, feature (d_m)
    H = 8                        # attention heads (as in the module)
    EXPAND, N_STATE, D_CONV = 2, 16, 4   # Mamba expand / d_state / d_conv (as in the module)
    BLOCK_B = 2                  # batch elements per grid step -> grid=(4,)

    key = jax.random.PRNGKey(0)
    k_img, k_kf, k_par = jax.random.split(key, 3)
    imageFeature = jax.random.normal(k_img, (B, S, D), jnp.float32)
    kf = jax.random.normal(k_kf, (B, S, D), jnp.float32)
    params = init_vkff_params(k_par, D, H, EXPAND, N_STATE, D_CONV)

    fwd = jax.jit(functools.partial(vkff_forward, num_heads=H, block_b=BLOCK_B))
    att_feats, src = fwd(imageFeature, kf, params)
    jax.block_until_ready((att_feats, src))

    assert att_feats.shape == (B, S, D) and att_feats.dtype == jnp.float32
    assert src.shape == (B, S, D) and src.dtype == jnp.float32
    assert bool(jnp.all(jnp.isfinite(att_feats))) and bool(jnp.all(jnp.isfinite(src)))
    print("KERNEL_OK")
</pallas_src>

<mosaic_0001>
module attributes {stable_mosaic.version = 11 : i64} {
  func.func @_vkff_kernel(%arg0: i32, %arg1: memref<2x8x64xf32, #tpu.memory_space<vmem>>, %arg2: memref<2x8x64xf32, #tpu.memory_space<vmem>>, %arg3: memref<64x192xbf16, #tpu.memory_space<vmem>>, %arg4: memref<1x192xf32, #tpu.memory_space<vmem>>, %arg5: memref<64x64xbf16, #tpu.memory_space<vmem>>, %arg6: memref<1x64xf32, #tpu.memory_space<vmem>>, %arg7: memref<64x256xbf16, #tpu.memory_space<vmem>>, %arg8: memref<4x128xf32, #tpu.memory_space<vmem>>, %arg9: memref<1x128xf32, #tpu.memory_space<vmem>>, %arg10: memref<128x36xbf16, #tpu.memory_space<vmem>>, %arg11: memref<4x128xf32, #tpu.memory_space<vmem>>, %arg12: memref<1x128xf32, #tpu.memory_space<vmem>>, %arg13: memref<16x128xf32, #tpu.memory_space<vmem>>, %arg14: memref<1x128xf32, #tpu.memory_space<vmem>>, %arg15: memref<128x64xbf16, #tpu.memory_space<vmem>>, %arg16: memref<2x8x128xf32, #tpu.memory_space<vmem>>, %arg17: memref<2x8x128xf32, #tpu.memory_space<vmem>>) attributes {dimension_semantics = [#tpu.dimension_semantics<parallel>], iteration_bounds = array<i64: 4>, scalar_prefetch = 0 : i64, scratch_operands = 1 : i64, tpu.core_type = #tpu.core_type<tc>, window_params = [{transform_indices = @transform_0, window_bounds = array<i64: 2, 8, 64>}, {transform_indices = @transform_1, window_bounds = array<i64: 2, 8, 64>}, {pipeline_mode = #tpu.pipeline_mode<synchronous>, transform_indices = @transform_2, window_bounds = array<i64: 64, 192>}, {pipeline_mode = #tpu.pipeline_mode<synchronous>, transform_indices = @transform_3, window_bounds = array<i64: 1, 192>}, {pipeline_mode = #tpu.pipeline_mode<synchronous>, transform_indices = @transform_4, window_bounds = array<i64: 64, 64>}, {pipeline_mode = #tpu.pipeline_mode<synchronous>, transform_indices = @transform_5, window_bounds = array<i64: 1, 64>}, {pipeline_mode = #tpu.pipeline_mode<synchronous>, transform_indices = @transform_6, window_bounds = array<i64: 64, 256>}, {pipeline_mode = #tpu.pipeline_mode<synchronous>, transform_indices = @transform_7, window_bounds = array<i64: 4, 128>}, {pipeline_mode = #tpu.pipeline_mode<synchronous>, transform_indices = @transform_8, window_bounds = array<i64: 1, 128>}, {pipeline_mode = #tpu.pipeline_mode<synchronous>, transform_indices = @transform_9, window_bounds = array<i64: 128, 36>}, {pipeline_mode = #tpu.pipeline_mode<synchronous>, transform_indices = @transform_10, window_bounds = array<i64: 4, 128>}, {pipeline_mode = #tpu.pipeline_mode<synchronous>, transform_indices = @transform_11, window_bounds = array<i64: 1, 128>}, {pipeline_mode = #tpu.pipeline_mode<synchronous>, transform_indices = @transform_12, window_bounds = array<i64: 16, 128>}, {pipeline_mode = #tpu.pipeline_mode<synchronous>, transform_indices = @transform_13, window_bounds = array<i64: 1, 128>}, {pipeline_mode = #tpu.pipeline_mode<synchronous>, transform_indices = @transform_14, window_bounds = array<i64: 128, 64>}, {transform_indices = @transform_15, window_bounds = array<i64: 2, 8, 128>}]} {
    %c0 = arith.constant 0 : index
    %c0_0 = arith.constant 0 : index
    %c0_1 = arith.constant 0 : index
    %0 = vector.load %arg1[%c0, %c0_0, %c0_1] : memref<2x8x64xf32, #tpu.memory_space<vmem>>, vector<2x8x64xf32>
    %1 = vector.shape_cast %0 : vector<2x8x64xf32> to vector<16x64xf32>
    %2 = arith.truncf %1 : vector<16x64xf32> to vector<16x64xbf16>
    %c0_2 = arith.constant 0 : index
    %c0_3 = arith.constant 0 : index
    %c0_4 = arith.constant 0 : index
    %3 = vector.load %arg2[%c0_2, %c0_3, %c0_4] : memref<2x8x64xf32, #tpu.memory_space<vmem>>, vector<2x8x64xf32>
    %4 = arith.addf %0, %3 : vector<2x8x64xf32>
    %5 = vector.shape_cast %4 : vector<2x8x64xf32> to vector<16x64xf32>
    %6 = arith.truncf %5 : vector<16x64xf32> to vector<16x64xbf16>
    %c0_5 = arith.constant 0 : index
    %c0_6 = arith.constant 0 : index
    %7 = vector.load %arg3[%c0_5, %c0_6] : memref<64x192xbf16, #tpu.memory_space<vmem>>, vector<64x192xbf16>
    %cst = arith.constant dense<0.000000e+00> : vector<16x192xf32>
    %8 = tpu.matmul %2, %7, %cst {dimension_numbers = #tpu.dot_dimension_numbers<[1], [0], [0], [1], [0, 0, 1, 1], [], []>} : vector<16x64xbf16>, vector<64x192xbf16>, vector<16x192xf32> -> vector<16x192xf32>
    %c0_7 = arith.constant 0 : index
    %c0_8 = arith.constant 0 : index
    %9 = vector.load %arg4[%c0_7, %c0_8] : memref<1x192xf32, #tpu.memory_space<vmem>>, vector<1x192xf32>
    %10 = vector.broadcast %9 : vector<1x192xf32> to vector<16x192xf32>
    %11 = arith.addf %8, %10 : vector<16x192xf32>
    %12 = vector.extract_strided_slice %11 {offsets = [0, 0], sizes = [16, 64], strides = [1, 1]} : vector<16x192xf32> to vector<16x64xf32>
    %13 = vector.shape_cast %12 : vector<16x64xf32> to vector<2x8x64xf32>
    %14 = arith.truncf %13 : vector<2x8x64xf32> to vector<2x8x64xbf16>
    %15 = vector.extract_strided_slice %11 {offsets = [0, 64], sizes = [16, 64], strides = [1, 1]} : vector<16x192xf32> to vector<16x64xf32>
    %16 = vector.shape_cast %15 : vector<16x64xf32> to vector<2x8x64xf32>
    %17 = arith.truncf %16 : vector<2x8x64xf32> to vector<2x8x64xbf16>
    %18 = vector.extract_strided_slice %11 {offsets = [0, 128], sizes = [16, 64], strides = [1, 1]} : vector<16x192xf32> to vector<16x64xf32>
    %19 = vector.shape_cast %18 : vector<16x64xf32> to vector<2x8x64xf32>
    %20 = arith.truncf %19 : vector<2x8x64xf32> to vector<2x8x64xbf16>
    %21 = vector.extract_strided_slice %14 {offsets = [0, 0, 0], sizes = [2, 8, 8], strides = [1, 1, 1]} : vector<2x8x64xbf16> to vector<2x8x8xbf16>
    %22 = vector.extract_strided_slice %17 {offsets = [0, 0, 0], sizes = [2, 8, 8], strides = [1, 1, 1]} : vector<2x8x64xbf16> to vector<2x8x8xbf16>
    %23 = vector.extract_strided_slice %20 {offsets = [0, 0, 0], sizes = [2, 8, 8], strides = [1, 1, 1]} : vector<2x8x64xbf16> to vector<2x8x8xbf16>
    "tpu.trace_start"() <{level = 10 : i32, message = "bqd,bkd->bqk"}> : () -> ()
    %cst_9 = arith.constant dense<0.000000e+00> : vector<2x8x8xf32>
    %24 = tpu.matmul %21, %22, %cst_9 {dimension_numbers = #tpu.dot_dimension_numbers<[2], [2], [1], [1], [0, 0, 0, 1, 1, 1], [0], [0]>} : vector<2x8x8xbf16>, vector<2x8x8xbf16>, vector<2x8x8xf32> -> vector<2x8x8xf32>
    "tpu.trace_stop"() : () -> ()
    %cst_10 = arith.constant 0.353553385 : f32
    %25 = vector.broadcast %cst_10 : f32 to vector<2x8x8xf32>
    %26 = arith.mulf %24, %25 : vector<2x8x8xf32>
    %cst_11 = arith.constant dense<0xFF800000> : vector<2x8xf32>
    %27 = vector.multi_reduction <maximumf>, %26, %cst_11 [2] : vector<2x8x8xf32> to vector<2x8xf32>
    %28 = vector.shape_cast %27 : vector<2x8xf32> to vector<2x8x1xf32>
    %29 = vector.broadcast %28 : vector<2x8x1xf32> to vector<2x8x8xf32>
    %30 = arith.subf %26, %29 : vector<2x8x8xf32>
    %31 = math.exp %30 : vector<2x8x8xf32>
    %cst_12 = arith.constant dense<0.000000e+00> : vector<2x8xf32>
    %32 = vector.multi_reduction <add>, %31, %cst_12 [2] : vector<2x8x8xf32> to vector<2x8xf32>
    %33 = vector.shape_cast %32 : vector<2x8xf32> to vector<2x8x1xf32>
    %34 = tpu.reciprocal %33 {approx = true} : vector<2x8x1xf32> -> vector<2x8x1xf32>
    %35 = vector.broadcast %34 : vector<2x8x1xf32> to vector<2x8x8xf32>
    %36 = arith.mulf %31, %35 : vector<2x8x8xf32>
    %37 = arith.truncf %36 : vector<2x8x8xf32> to vector<2x8x8xbf16>
    "tpu.trace_start"() <{level = 10 : i32, message = "bqk,bkd->bqd"}> : () -> ()
    %cst_13 = arith.constant dense<0.000000e+00> : vector<2x8x8xf32>
    %38 = tpu.matmul %37, %23, %cst_13 {dimension_numbers = #tpu.dot_dimension_numbers<[2], [1], [1], [2], [0, 0, 0, 1, 1, 2], [0], [0]>} : vector<2x8x8xbf16>, vector<2x8x8xbf16>, vector<2x8x8xf32> -> vector<2x8x8xf32>
    "tpu.trace_stop"() : () -> ()
    %39 = vector.extract_strided_slice %14 {offsets = [0, 0, 8], sizes = [2, 8, 8], strides = [1, 1, 1]} : vector<2x8x64xbf16> to vector<2x8x8xbf16>
    %40 = vector.extract_strided_slice %17 {offsets = [0, 0, 8], sizes = [2, 8, 8], strides = [1, 1, 1]} : vector<2x8x64xbf16> to vector<2x8x8xbf16>
    %41 = vector.extract_strided_slice %20 {offsets = [0, 0, 8], sizes = [2, 8, 8], strides = [1, 1, 1]} : vector<2x8x64xbf16> to vector<2x8x8xbf16>
    "tpu.trace_start"() <{level = 10 : i32, message = "bqd,bkd->bqk"}> : () -> ()
    %cst_14 = arith.constant dense<0.000000e+00> : vector<2x8x8xf32>
    %42 = tpu.matmul %39, %40, %cst_14 {dimension_numbers = #tpu.dot_dimension_numbers<[2], [2], [1], [1], [0, 0, 0, 1, 1, 1], [0], [0]>} : vector<2x8x8xbf16>, vector<2x8x8xbf16>, vector<2x8x8xf32> -> vector<2x8x8xf32>
    "tpu.trace_stop"() : () -> ()
    %cst_15 = arith.constant 0.353553385 : f32
    %43 = vector.broadcast %cst_15 : f32 to vector<2x8x8xf32>
    %44 = arith.mulf %42, %43 : vector<2x8x8xf32>
    %cst_16 = arith.constant dense<0xFF800000> : vector<2x8xf32>
    %45 = vector.multi_reduction <maximumf>, %44, %cst_16 [2] : vector<2x8x8xf32> to vector<2x8xf32>
    %46 = vector.shape_cast %45 : vector<2x8xf32> to vector<2x8x1xf32>
    %47 = vector.broadcast %46 : vector<2x8x1xf32> to vector<2x8x8xf32>
    %48 = arith.subf %44, %47 : vector<2x8x8xf32>
    %49 = math.exp %48 : vector<2x8x8xf32>
    %cst_17 = arith.constant dense<0.000000e+00> : vector<2x8xf32>
    %50 = vector.multi_reduction <add>, %49, %cst_17 [2] : vector<2x8x8xf32> to vector<2x8xf32>
    %51 = vector.shape_cast %50 : vector<2x8xf32> to vector<2x8x1xf32>
    %52 = tpu.reciprocal %51 {approx = true} : vector<2x8x1xf32> -> vector<2x8x1xf32>
    %53 = vector.broadcast %52 : vector<2x8x1xf32> to vector<2x8x8xf32>
    %54 = arith.mulf %49, %53 : vector<2x8x8xf32>
    %55 = arith.truncf %54 : vector<2x8x8xf32> to vector<2x8x8xbf16>
    "tpu.trace_start"() <{level = 10 : i32, message = "bqk,bkd->bqd"}> : () -> ()
    %cst_18 = arith.constant dense<0.000000e+00> : vector<2x8x8xf32>
    %56 = tpu.matmul %55, %41, %cst_18 {dimension_numbers = #tpu.dot_dimension_numbers<[2], [1], [1], [2], [0, 0, 0, 1, 1, 2], [0], [0]>} : vector<2x8x8xbf16>, vector<2x8x8xbf16>, vector<2x8x8xf32> -> vector<2x8x8xf32>
    "tpu.trace_stop"() : () -> ()
    %57 = vector.extract_strided_slice %14 {offsets = [0, 0, 16], sizes = [2, 8, 8], strides = [1, 1, 1]} : vector<2x8x64xbf16> to vector<2x8x8xbf16>
    %58 = vector.extract_strided_slice %17 {offsets = [0, 0, 16], sizes = [2, 8, 8], strides = [1, 1, 1]} : vector<2x8x64xbf16> to vector<2x8x8xbf16>
    %59 = vector.extract_strided_slice %20 {offsets = [0, 0, 16], sizes = [2, 8, 8], strides = [1, 1, 1]} : vector<2x8x64xbf16> to vector<2x8x8xbf16>
    "tpu.trace_start"() <{level = 10 : i32, message = "bqd,bkd->bqk"}> : () -> ()
    %cst_19 = arith.constant dense<0.000000e+00> : vector<2x8x8xf32>
    %60 = tpu.matmul %57, %58, %cst_19 {dimension_numbers = #tpu.dot_dimension_numbers<[2], [2], [1], [1], [0, 0, 0, 1, 1, 1], [0], [0]>} : vector<2x8x8xbf16>, vector<2x8x8xbf16>, vector<2x8x8xf32> -> vector<2x8x8xf32>
    "tpu.trace_stop"() : () -> ()
    %cst_20 = arith.constant 0.353553385 : f32
    %61 = vector.broadcast %cst_20 : f32 to vector<2x8x8xf32>
    %62 = arith.mulf %60, %61 : vector<2x8x8xf32>
    %cst_21 = arith.constant dense<0xFF800000> : vector<2x8xf32>
    %63 = vector.multi_reduction <maximumf>, %62, %cst_21 [2] : vector<2x8x8xf32> to vector<2x8xf32>
    %64 = vector.shape_cast %63 : vector<2x8xf32> to vector<2x8x1xf32>
    %65 = vector.broadcast %64 : vector<2x8x1xf32> to vector<2x8x8xf32>
    %66 = arith.subf %62, %65 : vector<2x8x8xf32>
    %67 = math.exp %66 : vector<2x8x8xf32>
    %cst_22 = arith.constant dense<0.000000e+00> : vector<2x8xf32>
    %68 = vector.multi_reduction <add>, %67, %cst_22 [2] : vector<2x8x8xf32> to vector<2x8xf32>
    %69 = vector.shape_cast %68 : vector<2x8xf32> to vector<2x8x1xf32>
    %70 = tpu.reciprocal %69 {approx = true} : vector<2x8x1xf32> -> vector<2x8x1xf32>
    %71 = vector.broadcast %70 : vector<2x8x1xf32> to vector<2x8x8xf32>
    %72 = arith.mulf %67, %71 : vector<2x8x8xf32>
    %73 = arith.truncf %72 : vector<2x8x8xf32> to vector<2x8x8xbf16>
    "tpu.trace_start"() <{level = 10 : i32, message = "bqk,bkd->bqd"}> : () -> ()
    %cst_23 = arith.constant dense<0.000000e+00> : vector<2x8x8xf32>
    %74 = tpu.matmul %73, %59, %cst_23 {dimension_numbers = #tpu.dot_dimension_numbers<[2], [1], [1], [2], [0, 0, 0, 1, 1, 2], [0], [0]>} : vector<2x8x8xbf16>, vector<2x8x8xbf16>, vector<2x8x8xf32> -> vector<2x8x8xf32>
    "tpu.trace_stop"() : () -> ()
    %75 = vector.extract_strided_slice %14 {offsets = [0, 0, 24], sizes = [2, 8, 8], strides = [1, 1, 1]} : vector<2x8x64xbf16> to vector<2x8x8xbf16>
    %76 = vector.extract_strided_slice %17 {offsets = [0, 0, 24], sizes = [2, 8, 8], strides = [1, 1, 1]} : vector<2x8x64xbf16> to vector<2x8x8xbf16>
    %77 = vector.extract_strided_slice %20 {offsets = [0, 0, 24], sizes = [2, 8, 8], strides = [1, 1, 1]} : vector<2x8x64xbf16> to vector<2x8x8xbf16>
    "tpu.trace_start"() <{level = 10 : i32, message = "bqd,bkd->bqk"}> : () -> ()
    %cst_24 = arith.constant dense<0.000000e+00> : vector<2x8x8xf32>
    %78 = tpu.matmul %75, %76, %cst_24 {dimension_numbers = #tpu.dot_dimension_numbers<[2], [2], [1], [1], [0, 0, 0, 1, 1, 1], [0], [0]>} : vector<2x8x8xbf16>, vector<2x8x8xbf16>, vector<2x8x8xf32> -> vector<2x8x8xf32>
    "tpu.trace_stop"() : () -> ()
    %cst_25 = arith.constant 0.353553385 : f32
    %79 = vector.broadcast %cst_25 : f32 to vector<2x8x8xf32>
    %80 = arith.mulf %78, %79 : vector<2x8x8xf32>
    %cst_26 = arith.constant dense<0xFF800000> : vector<2x8xf32>
    %81 = vector.multi_reduction <maximumf>, %80, %cst_26 [2] : vector<2x8x8xf32> to vector<2x8xf32>
    %82 = vector.shape_cast %81 : vector<2x8xf32> to vector<2x8x1xf32>
    %83 = vector.broadcast %82 : vector<2x8x1xf32> to vector<2x8x8xf32>
    %84 = arith.subf %80, %83 : vector<2x8x8xf32>
    %85 = math.exp %84 : vector<2x8x8xf32>
    %cst_27 = arith.constant dense<0.000000e+00> : vector<2x8xf32>
    %86 = vector.multi_reduction <add>, %85, %cst_27 [2] : vector<2x8x8xf32> to vector<2x8xf32>
    %87 = vector.shape_cast %86 : vector<2x8xf32> to vector<2x8x1xf32>
    %88 = tpu.reciprocal %87 {approx = true} : vector<2x8x1xf32> -> vector<2x8x1xf32>
    %89 = vector.broadcast %88 : vector<2x8x1xf32> to vector<2x8x8xf32>
    %90 = arith.mulf %85, %89 : vector<2x8x8xf32>
    %91 = arith.truncf %90 : vector<2x8x8xf32> to vector<2x8x8xbf16>
    "tpu.trace_start"() <{level = 10 : i32, message = "bqk,bkd->bqd"}> : () -> ()
    %cst_28 = arith.constant dense<0.000000e+00> : vector<2x8x8xf32>
    %92 = tpu.matmul %91, %77, %cst_28 {dimension_numbers = #tpu.dot_dimension_numbers<[2], [1], [1], [2], [0, 0, 0, 1, 1, 2], [0], [0]>} : vector<2x8x8xbf16>, vector<2x8x8xbf16>, vector<2x8x8xf32> -> vector<2x8x8xf32>
    "tpu.trace_stop"() : () -> ()
    %93 = vector.extract_strided_slice %14 {offsets = [0, 0, 32], sizes = [2, 8, 8], strides = [1, 1, 1]} : vector<2x8x64xbf16> to vector<2x8x8xbf16>
    %94 = vector.extract_strided_slice %17 {offsets = [0, 0, 32], sizes = [2, 8, 8], strides = [1, 1, 1]} : vector<2x8x64xbf16> to vector<2x8x8xbf16>
    %95 = vector.extract_strided_slice %20 {offsets = [0, 0, 32], sizes = [2, 8, 8], strides = [1, 1, 1]} : vector<2x8x64xbf16> to vector<2x8x8xbf16>
    "tpu.trace_start"() <{level = 10 : i32, message = "bqd,bkd->bqk"}> : () -> ()
    %cst_29 = arith.constant dense<0.000000e+00> : vector<2x8x8xf32>
    %96 = tpu.matmul %93, %94, %cst_29 {dimension_numbers = #tpu.dot_dimension_numbers<[2], [2], [1], [1], [0, 0, 0, 1, 1, 1], [0], [0]>} : vector<2x8x8xbf16>, vector<2x8x8xbf16>, vector<2x8x8xf32> -> vector<2x8x8xf32>
    "tpu.trace_stop"() : () -> ()
    %cst_30 = arith.constant 0.353553385 : f32
    %97 = vector.broadcast %cst_30 : f32 to vector<2x8x8xf32>
    %98 = arith.mulf %96, %97 : vector<2x8x8xf32>
    %cst_31 = arith.constant dense<0xFF800000> : vector<2x8xf32>
    %99 = vector.multi_reduction <maximumf>, %98, %cst_31 [2] : vector<2x8x8xf32> to vector<2x8xf32>
    %100 = vector.shape_cast %99 : vector<2x8xf32> to vector<2x8x1xf32>
    %101 = vector.broadcast %100 : vector<2x8x1xf32> to vector<2x8x8xf32>
    %102 = arith.subf %98, %101 : vector<2x8x8xf32>
    %103 = math.exp %102 : vector<2x8x8xf32>
    %cst_32 = arith.constant dense<0.000000e+00> : vector<2x8xf32>
    %104 = vector.multi_reduction <add>, %103, %cst_32 [2] : vector<2x8x8xf32> to vector<2x8xf32>
    %105 = vector.shape_cast %104 : vector<2x8xf32> to vector<2x8x1xf32>
    %106 = tpu.reciprocal %105 {approx = true} : vector<2x8x1xf32> -> vector<2x8x1xf32>
    %107 = vector.broadcast %106 : vector<2x8x1xf32> to vector<2x8x8xf32>
    %108 = arith.mulf %103, %107 : vector<2x8x8xf32>
    %109 = arith.truncf %108 : vector<2x8x8xf32> to vector<2x8x8xbf16>
    "tpu.trace_start"() <{level = 10 : i32, message = "bqk,bkd->bqd"}> : () -> ()
    %cst_33 = arith.constant dense<0.000000e+00> : vector<2x8x8xf32>
    %110 = tpu.matmul %109, %95, %cst_33 {dimension_numbers = #tpu.dot_dimension_numbers<[2], [1], [1], [2], [0, 0, 0, 1, 1, 2], [0], [0]>} : vector<2x8x8xbf16>, vector<2x8x8xbf16>, vector<2x8x8xf32> -> vector<2x8x8xf32>
    "tpu.trace_stop"() : () -> ()
    %111 = vector.extract_strided_slice %14 {offsets = [0, 0, 40], sizes = [2, 8, 8], strides = [1, 1, 1]} : vector<2x8x64xbf16> to vector<2x8x8xbf16>
    %112 = vector.extract_strided_slice %17 {offsets = [0, 0, 40], sizes = [2, 8, 8], strides = [1, 1, 1]} : vector<2x8x64xbf16> to vector<2x8x8xbf16>
    %113 = vector.extract_strided_slice %20 {offsets = [0, 0, 40], sizes = [2, 8, 8], strides = [1, 1, 1]} : vector<2x8x64xbf16> to vector<2x8x8xbf16>
    "tpu.trace_start"() <{level = 10 : i32, message = "bqd,bkd->bqk"}> : () -> ()
    %cst_34 = arith.constant dense<0.000000e+00> : vector<2x8x8xf32>
    %114 = tpu.matmul %111, %112, %cst_34 {dimension_numbers = #tpu.dot_dimension_numbers<[2], [2], [1], [1], [0, 0, 0, 1, 1, 1], [0], [0]>} : vector<2x8x8xbf16>, vector<2x8x8xbf16>, vector<2x8x8xf32> -> vector<2x8x8xf32>
    "tpu.trace_stop"() : () -> ()
    %cst_35 = arith.constant 0.353553385 : f32
    %115 = vector.broadcast %cst_35 : f32 to vector<2x8x8xf32>
    %116 = arith.mulf %114, %115 : vector<2x8x8xf32>
    %cst_36 = arith.constant dense<0xFF800000> : vector<2x8xf32>
    %117 = vector.multi_reduction <maximumf>, %116, %cst_36 [2] : vector<2x8x8xf32> to vector<2x8xf32>
    %118 = vector.shape_cast %117 : vector<2x8xf32> to vector<2x8x1xf32>
    %119 = vector.broadcast %118 : vector<2x8x1xf32> to vector<2x8x8xf32>
    %120 = arith.subf %116, %119 : vector<2x8x8xf32>
    %121 = math.exp %120 : vector<2x8x8xf32>
    %cst_37 = arith.constant dense<0.000000e+00> : vector<2x8xf32>
    %122 = vector.multi_reduction <add>, %121, %cst_37 [2] : vector<2x8x8xf32> to vector<2x8xf32>
    %123 = vector.shape_cast %122 : vector<2x8xf32> to vector<2x8x1xf32>
    %124 = tpu.reciprocal %123 {approx = true} : vector<2x8x1xf32> -> vector<2x8x1xf32>
    %125 = vector.broadcast %124 : vector<2x8x1xf32> to vector<2x8x8xf32>
    %126 = arith.mulf %121, %125 : vector<2x8x8xf32>
    %127 = arith.truncf %126 : vector<2x8x8xf32> to vector<2x8x8xbf16>
    "tpu.trace_start"() <{level = 10 : i32, message = "bqk,bkd->bqd"}> : () -> ()
    %cst_38 = arith.constant dense<0.000000e+00> : vector<2x8x8xf32>
    %128 = tpu.matmul %127, %113, %cst_38 {dimension_numbers = #tpu.dot_dimension_numbers<[2], [1], [1], [2], [0, 0, 0, 1, 1, 2], [0], [0]>} : vector<2x8x8xbf16>, vector<2x8x8xbf16>, vector<2x8x8xf32> -> vector<2x8x8xf32>
    "tpu.trace_stop"() : () -> ()
    %129 = vector.extract_strided_slice %14 {offsets = [0, 0, 48], sizes = [2, 8, 8], strides = [1, 1, 1]} : vector<2x8x64xbf16> to vector<2x8x8xbf16>
    %130 = vector.extract_strided_slice %17 {offsets = [0, 0, 48], sizes = [2, 8, 8], strides = [1, 1, 1]} : vector<2x8x64xbf16> to vector<2x8x8xbf16>
    %131 = vector.extract_strided_slice %20 {offsets = [0, 0, 48], sizes = [2, 8, 8], strides = [1, 1, 1]} : vector<2x8x64xbf16> to vector<2x8x8xbf16>
    "tpu.trace_start"() <{level = 10 : i32, message = "bqd,bkd->bqk"}> : () -> ()
    %cst_39 = arith.constant dense<0.000000e+00> : vector<2x8x8xf32>
    %132 = tpu.matmul %129, %130, %cst_39 {dimension_numbers = #tpu.dot_dimension_numbers<[2], [2], [1], [1], [0, 0, 0, 1, 1, 1], [0], [0]>} : vector<2x8x8xbf16>, vector<2x8x8xbf16>, vector<2x8x8xf32> -> vector<2x8x8xf32>
    "tpu.trace_stop"() : () -> ()
    %cst_40 = arith.constant 0.353553385 : f32
    %133 = vector.broadcast %cst_40 : f32 to vector<2x8x8xf32>
    %134 = arith.mulf %132, %133 : vector<2x8x8xf32>
    %cst_41 = arith.constant dense<0xFF800000> : vector<2x8xf32>
    %135 = vector.multi_reduction <maximumf>, %134, %cst_41 [2] : vector<2x8x8xf32> to vector<2x8xf32>
    %136 = vector.shape_cast %135 : vector<2x8xf32> to vector<2x8x1xf32>
    %137 = vector.broadcast %136 : vector<2x8x1xf32> to vector<2x8x8xf32>
    %138 = arith.subf %134, %137 : vector<2x8x8xf32>
    %139 = math.exp %138 : vector<2x8x8xf32>
    %cst_42 = arith.constant dense<0.000000e+00> : vector<2x8xf32>
    %140 = vector.multi_reduction <add>, %139, %cst_42 [2] : vector<2x8x8xf32> to vector<2x8xf32>
    %141 = vector.shape_cast %140 : vector<2x8xf32> to vector<2x8x1xf32>
    %142 = tpu.reciprocal %141 {approx = true} : vector<2x8x1xf32> -> vector<2x8x1xf32>
    %143 = vector.broadcast %142 : vector<2x8x1xf32> to vector<2x8x8xf32>
    %144 = arith.mulf %139, %143 : vector<2x8x8xf32>
    %145 = arith.truncf %144 : vector<2x8x8xf32> to vector<2x8x8xbf16>
    "tpu.trace_start"() <{level = 10 : i32, message = "bqk,bkd->bqd"}> : () -> ()
    %cst_43 = arith.constant dense<0.000000e+00> : vector<2x8x8xf32>
    %146 = tpu.matmul %145, %131, %cst_43 {dimension_numbers = #tpu.dot_dimension_numbers<[2], [1], [1], [2], [0, 0, 0, 1, 1, 2], [0], [0]>} : vector<2x8x8xbf16>, vector<2x8x8xbf16>, vector<2x8x8xf32> -> vector<2x8x8xf32>
    "tpu.trace_stop"() : () -> ()
    %147 = vector.extract_strided_slice %14 {offsets = [0, 0, 56], sizes = [2, 8, 8], strides = [1, 1, 1]} : vector<2x8x64xbf16> to vector<2x8x8xbf16>
    %148 = vector.extract_strided_slice %17 {offsets = [0, 0, 56], sizes = [2, 8, 8], strides = [1, 1, 1]} : vector<2x8x64xbf16> to vector<2x8x8xbf16>
    %149 = vector.extract_strided_slice %20 {offsets = [0, 0, 56], sizes = [2, 8, 8], strides = [1, 1, 1]} : vector<2x8x64xbf16> to vector<2x8x8xbf16>
    "tpu.trace_start"() <{level = 10 : i32, message = "bqd,bkd->bqk"}> : () -> ()
    %cst_44 = arith.constant dense<0.000000e+00> : vector<2x8x8xf32>
    %150 = tpu.matmul %147, %148, %cst_44 {dimension_numbers = #tpu.dot_dimension_numbers<[2], [2], [1], [1], [0, 0, 0, 1, 1, 1], [0], [0]>} : vector<2x8x8xbf16>, vector<2x8x8xbf16>, vector<2x8x8xf32> -> vector<2x8x8xf32>
    "tpu.trace_stop"() : () -> ()
    %cst_45 = arith.constant 0.353553385 : f32
    %151 = vector.broadcast %cst_45 : f32 to vector<2x8x8xf32>
    %152 = arith.mulf %150, %151 : vector<2x8x8xf32>
    %cst_46 = arith.constant dense<0xFF800000> : vector<2x8xf32>
    %153 = vector.multi_reduction <maximumf>, %152, %cst_46 [2] : vector<2x8x8xf32> to vector<2x8xf32>
    %154 = vector.shape_cast %153 : vector<2x8xf32> to vector<2x8x1xf32>
    %155 = vector.broadcast %154 : vector<2x8x1xf32> to vector<2x8x8xf32>
    %156 = arith.subf %152, %155 : vector<2x8x8xf32>
    %157 = math.exp %156 : vector<2x8x8xf32>
    %cst_47 = arith.constant dense<0.000000e+00> : vector<2x8xf32>
    %158 = vector.multi_reduction <add>, %157, %cst_47 [2] : vector<2x8x8xf32> to vector<2x8xf32>
    %159 = vector.shape_cast %158 : vector<2x8xf32> to vector<2x8x1xf32>
    %160 = tpu.reciprocal %159 {approx = true} : vector<2x8x1xf32> -> vector<2x8x1xf32>
    %161 = vector.broadcast %160 : vector<2x8x1xf32> to vector<2x8x8xf32>
    %162 = arith.mulf %157, %161 : vector<2x8x8xf32>
    %163 = arith.truncf %162 : vector<2x8x8xf32> to vector<2x8x8xbf16>
    "tpu.trace_start"() <{level = 10 : i32, message = "bqk,bkd->bqd"}> : () -> ()
    %cst_48 = arith.constant dense<0.000000e+00> : vector<2x8x8xf32>
    %164 = tpu.matmul %163, %149, %cst_48 {dimension_numbers = #tpu.dot_dimension_numbers<[2], [1], [1], [2], [0, 0, 0, 1, 1, 2], [0], [0]>} : vector<2x8x8xbf16>, vector<2x8x8xbf16>, vector<2x8x8xf32> -> vector<2x8x8xf32>
    "tpu.trace_stop"() : () -> ()
    %165 = tpu.concatenate %38, %56, %74, %92, %110, %128, %146, %164 in 2 : vector<2x8x8xf32>, vector<2x8x8xf32>, vector<2x8x8xf32>, vector<2x8x8xf32>, vector<2x8x8xf32>, vector<2x8x8xf32>, vector<2x8x8xf32>, vector<2x8x8xf32> -> vector<2x8x64xf32>
    %166 = vector.shape_cast %165 : vector<2x8x64xf32> to vector<16x64xf32>
    %167 = arith.truncf %166 : vector<16x64xf32> to vector<16x64xbf16>
    %c0_49 = arith.constant 0 : index
    %c0_50 = arith.constant 0 : index
    %168 = vector.load %arg5[%c0_49, %c0_50] : memref<64x64xbf16, #tpu.memory_space<vmem>>, vector<64x64xbf16>
    %cst_51 = arith.constant dense<0.000000e+00> : vector<16x64xf32>
    %169 = tpu.matmul %167, %168, %cst_51 {dimension_numbers = #tpu.dot_dimension_numbers<[1], [0], [0], [1], [0, 0, 1, 1], [], []>} : vector<16x64xbf16>, vector<64x64xbf16>, vector<16x64xf32> -> vector<16x64xf32>
    %c0_52 = arith.constant 0 : index
    %c0_53 = arith.constant 0 : index
    %170 = vector.load %arg6[%c0_52, %c0_53] : memref<1x64xf32, #tpu.memory_space<vmem>>, vector<1x64xf32>
    %171 = vector.broadcast %170 : vector<1x64xf32> to vector<16x64xf32>
    %172 = arith.addf %169, %171 : vector<16x64xf32>
    %c0_54 = arith.constant 0 : index
    %c0_55 = arith.constant 0 : index
    %173 = vector.load %arg7[%c0_54, %c0_55] : memref<64x256xbf16, #tpu.memory_space<vmem>>, vector<64x256xbf16>
    %cst_56 = arith.constant dense<0.000000e+00> : vector<16x256xf32>
    %174 = tpu.matmul %6, %173, %cst_56 {dimension_numbers = #tpu.dot_dimension_numbers<[1], [0], [0], [1], [0, 0, 1, 1], [], []>} : vector<16x64xbf16>, vector<64x256xbf16>, vector<16x256xf32> -> vector<16x256xf32>
    %175 = vector.extract_strided_slice %174 {offsets = [0, 0], sizes = [16, 128], strides = [1, 1]} : vector<16x256xf32> to vector<16x128xf32>
    %176 = vector.extract_strided_slice %174 {offsets = [0, 128], sizes = [16, 128], strides = [1, 1]} : vector<16x256xf32> to vector<16x128xf32>
    %177 = tpu.iota {dimensions = array<i32: 1>} : vector<2x8x128xi32>
    %178 = vector.shape_cast %177 : vector<2x8x128xi32> to vector<16x128xi32>
    %cst_57 = arith.constant 0.000000e+00 : f32
    %179 = vector.broadcast %cst_57 : f32 to vector<16x128xf32>
    %c0_58 = arith.constant 0 : index
    %c0_59 = arith.constant 0 : index
    %180 = vector.load %arg9[%c0_58, %c0_59] : memref<1x128xf32, #tpu.memory_space<vmem>>, vector<1x128xf32>
    %181 = vector.broadcast %180 : vector<1x128xf32> to vector<16x128xf32>
    %182 = arith.addf %179, %181 : vector<16x128xf32>
    %c3_i32 = arith.constant 3 : i32
    %183 = vector.broadcast %c3_i32 : i32 to vector<16x128xi32>
    %184 = arith.cmpi sge, %178, %183 : vector<16x128xi32>
    %c3_i32_60 = arith.constant 3 : i32
    %185 = tpu.dynamic_rotate %175 by %c3_i32_60 dim 0 : vector<16x128xf32>, i32 -> vector<16x128xf32>
    %cst_61 = arith.constant 0.000000e+00 : f32
    %186 = vector.broadcast %cst_61 : f32 to vector<16x128xf32>
    %187 = arith.select %184, %185, %186 : vector<16x128xi1>, vector<16x128xf32>
    %c0_62 = arith.constant 0 : index
    %c0_63 = arith.constant 0 : index
    %188 = vector.load %arg8[%c0_62, %c0_63] : memref<4x128xf32, #tpu.memory_space<vmem>>, vector<1x128xf32>
    %189 = vector.broadcast %188 : vector<1x128xf32> to vector<16x128xf32>
    %190 = arith.mulf %187, %189 : vector<16x128xf32>
    %191 = arith.addf %182, %190 : vector<16x128xf32>
    %c2_i32 = arith.constant 2 : i32
    %192 = vector.broadcast %c2_i32 : i32 to vector<16x128xi32>
    %193 = arith.cmpi sge, %178, %192 : vector<16x128xi32>
    %c2_i32_64 = arith.constant 2 : i32
    %194 = tpu.dynamic_rotate %175 by %c2_i32_64 dim 0 : vector<16x128xf32>, i32 -> vector<16x128xf32>
    %cst_65 = arith.constant 0.000000e+00 : f32
    %195 = vector.broadcast %cst_65 : f32 to vector<16x128xf32>
    %196 = arith.select %193, %194, %195 : vector<16x128xi1>, vector<16x128xf32>
    %c1 = arith.constant 1 : index
    %c0_66 = arith.constant 0 : index
    %197 = vector.load %arg8[%c1, %c0_66] : memref<4x128xf32, #tpu.memory_space<vmem>>, vector<1x128xf32>
    %198 = vector.broadcast %197 : vector<1x128xf32> to vector<16x128xf32>
    %199 = arith.mulf %196, %198 : vector<16x128xf32>
    %200 = arith.addf %191, %199 : vector<16x128xf32>
    %c1_i32 = arith.constant 1 : i32
    %201 = vector.broadcast %c1_i32 : i32 to vector<16x128xi32>
    %202 = arith.cmpi sge, %178, %201 : vector<16x128xi32>
    %c1_i32_67 = arith.constant 1 : i32
    %203 = tpu.dynamic_rotate %175 by %c1_i32_67 dim 0 : vector<16x128xf32>, i32 -> vector<16x128xf32>
    %cst_68 = arith.constant 0.000000e+00 : f32
    %204 = vector.broadcast %cst_68 : f32 to vector<16x128xf32>
    %205 = arith.select %202, %203, %204 : vector<16x128xi1>, vector<16x128xf32>
    %c2 = arith.constant 2 : index
    %c0_69 = arith.constant 0 : index
    %206 = vector.load %arg8[%c2, %c0_69] : memref<4x128xf32, #tpu.memory_space<vmem>>, vector<1x128xf32>
    %207 = vector.broadcast %206 : vector<1x128xf32> to vector<16x128xf32>
    %208 = arith.mulf %205, %207 : vector<16x128xf32>
    %209 = arith.addf %200, %208 : vector<16x128xf32>
    %c3 = arith.constant 3 : index
    %c0_70 = arith.constant 0 : index
    %210 = vector.load %arg8[%c3, %c0_70] : memref<4x128xf32, #tpu.memory_space<vmem>>, vector<1x128xf32>
    %211 = vector.broadcast %210 : vector<1x128xf32> to vector<16x128xf32>
    %212 = arith.mulf %175, %211 : vector<16x128xf32>
    %213 = arith.addf %209, %212 : vector<16x128xf32>
    %cst_71 = arith.constant 0.000000e+00 : f32
    %214 = vector.broadcast %cst_71 : f32 to vector<16x128xf32>
    %215 = arith.subf %214, %213 : vector<16x128xf32>
    %216 = math.exp %215 : vector<16x128xf32>
    %cst_72 = arith.constant 1.000000e+00 : f32
    %217 = vector.broadcast %cst_72 : f32 to vector<16x128xf32>
    %218 = arith.addf %217, %216 : vector<16x128xf32>
    %219 = tpu.reciprocal %218 {approx = true} : vector<16x128xf32> -> vector<16x128xf32>
    %220 = arith.mulf %213, %219 : vector<16x128xf32>
    %221 = arith.truncf %220 : vector<16x128xf32> to vector<16x128xbf16>
    %c0_73 = arith.constant 0 : index
    %c0_74 = arith.constant 0 : index
    %222 = vector.load %arg10[%c0_73, %c0_74] : memref<128x36xbf16, #tpu.memory_space<vmem>>, vector<128x36xbf16>
    %cst_75 = arith.constant dense<0.000000e+00> : vector<16x36xf32>
    %223 = tpu.matmul %221, %222, %cst_75 {dimension_numbers = #tpu.dot_dimension_numbers<[1], [0], [0], [1], [0, 0, 1, 1], [], []>} : vector<16x128xbf16>, vector<128x36xbf16>, vector<16x36xf32> -> vector<16x36xf32>
    %224 = vector.extract_strided_slice %223 {offsets = [0, 0], sizes = [16, 4], strides = [1, 1]} : vector<16x36xf32> to vector<16x4xf32>
    %225 = vector.extract_strided_slice %223 {offsets = [0, 4], sizes = [16, 16], strides = [1, 1]} : vector<16x36xf32> to vector<16x16xf32>
    %226 = vector.shape_cast %225 : vector<16x16xf32> to vector<2x8x16xf32>
    %227 = vector.extract_strided_slice %223 {offsets = [0, 20], sizes = [16, 16], strides = [1, 1]} : vector<16x36xf32> to vector<16x16xf32>
    %228 = vector.shape_cast %227 : vector<16x16xf32> to vector<2x8x16xf32>
    %c0_76 = arith.constant 0 : index
    %c0_77 = arith.constant 0 : index
    %229 = vector.load %arg11[%c0_76, %c0_77] : memref<4x128xf32, #tpu.memory_space<vmem>>, vector<4x128xf32>
    %cst_78 = arith.constant dense<0.000000e+00> : vector<16x128xf32>
    %230 = tpu.matmul %224, %229, %cst_78 {dimension_numbers = #tpu.dot_dimension_numbers<[1], [0], [0], [1], [0, 0, 1, 1], [], []>} : vector<16x4xf32>, vector<4x128xf32>, vector<16x128xf32> -> vector<16x128xf32>
    %c0_79 = arith.constant 0 : index
    %c0_80 = arith.constant 0 : index
    %231 = vector.load %arg12[%c0_79, %c0_80] : memref<1x128xf32, #tpu.memory_space<vmem>>, vector<1x128xf32>
    %232 = vector.broadcast %231 : vector<1x128xf32> to vector<16x128xf32>
    %233 = arith.addf %230, %232 : vector<16x128xf32>
    %cst_81 = arith.constant 0.000000e+00 : f32
    %234 = vector.broadcast %cst_81 : f32 to vector<16x128xf32>
    %235 = arith.maximumf %233, %234 : vector<16x128xf32>
    %236 = math.absf %233 : vector<16x128xf32>
    %cst_82 = arith.constant 0.000000e+00 : f32
    %237 = vector.broadcast %cst_82 : f32 to vector<16x128xf32>
    %238 = arith.subf %237, %236 : vector<16x128xf32>
    %239 = math.exp %238 : vector<16x128xf32>
    %cst_83 = arith.constant 1.000000e+00 : f32
    %240 = vector.broadcast %cst_83 : f32 to vector<16x128xf32>
    %241 = arith.addf %240, %239 : vector<16x128xf32>
    %242 = math.log %241 : vector<16x128xf32>
    %243 = arith.addf %235, %242 : vector<16x128xf32>
    %244 = vector.shape_cast %243 : vector<16x128xf32> to vector<2x8x128xf32>
    %245 = vector.shape_cast %220 : vector<16x128xf32> to vector<2x8x128xf32>
    %c0_84 = arith.constant 0 : index
    %c0_85 = arith.constant 0 : index
    %246 = vector.load %arg13[%c0_84, %c0_85] : memref<16x128xf32, #tpu.memory_space<vmem>>, vector<16x128xf32>
    %247 = math.exp %246 : vector<16x128xf32>
    %cst_86 = arith.constant 0.000000e+00 : f32
    %248 = vector.broadcast %cst_86 : f32 to vector<16x128xf32>
    %249 = arith.subf %248, %247 : vector<16x128xf32>
    %250 = vector.shape_cast %244 : vector<2x8x128xf32> to vector<2x8x1x128xf32>
    %251 = vector.shape_cast %249 : vector<16x128xf32> to vector<1x1x16x128xf32>
    %252 = vector.broadcast %250 : vector<2x8x1x128xf32> to vector<2x8x16x128xf32>
    %253 = vector.broadcast %251 : vector<1x1x16x128xf32> to vector<2x8x16x128xf32>
    %254 = arith.mulf %252, %253 : vector<2x8x16x128xf32>
    %255 = math.exp %254 : vector<2x8x16x128xf32>
    %256 = vector.shape_cast %226 : vector<2x8x16xf32> to vector<2x8x16x1xf32>
    %257 = arith.mulf %244, %245 : vector<2x8x128xf32>
    %258 = vector.shape_cast %257 : vector<2x8x128xf32> to vector<2x8x1x128xf32>
    %259 = vector.broadcast %256 : vector<2x8x16x1xf32> to vector<2x8x16x128xf32>
    %260 = vector.broadcast %258 : vector<2x8x1x128xf32> to vector<2x8x16x128xf32>
    %261 = arith.mulf %259, %260 : vector<2x8x16x128xf32>
    %cst_87 = arith.constant 0.000000e+00 : f32
    %262 = vector.broadcast %cst_87 : f32 to vector<2x16x128xf32>
    %263 = vector.extract_strided_slice %255 {offsets = [0, 0, 0, 0], sizes = [2, 1, 16, 128], strides = [1, 1, 1, 1]} : vector<2x8x16x128xf32> to vector<2x1x16x128xf32>
    %264 = vector.shape_cast %263 : vector<2x1x16x128xf32> to vector<2x16x128xf32>
    %265 = arith.mulf %264, %262 : vector<2x16x128xf32>
    %266 = vector.extract_strided_slice %261 {offsets = [0, 0, 0, 0], sizes = [2, 1, 16, 128], strides = [1, 1, 1, 1]} : vector<2x8x16x128xf32> to vector<2x1x16x128xf32>
    %267 = vector.shape_cast %266 : vector<2x1x16x128xf32> to vector<2x16x128xf32>
    %268 = arith.addf %265, %267 : vector<2x16x128xf32>
    %269 = vector.extract_strided_slice %228 {offsets = [0, 0, 0], sizes = [2, 1, 16], strides = [1, 1, 1]} : vector<2x8x16xf32> to vector<2x1x16xf32>
    %270 = vector.shape_cast %269 : vector<2x1x16xf32> to vector<2x16xf32>
    %271 = vector.shape_cast %270 : vector<2x16xf32> to vector<2x16x1xf32>
    %272 = vector.broadcast %271 : vector<2x16x1xf32> to vector<2x16x128xf32>
    %273 = arith.mulf %272, %268 : vector<2x16x128xf32>
    %cst_88 = arith.constant dense<0.000000e+00> : vector<2x128xf32>
    %274 = vector.multi_reduction <add>, %273, %cst_88 [1] : vector<2x16x128xf32> to vector<2x128xf32>
    %c0_89 = arith.constant 0 : index
    %c0_90 = arith.constant 0 : index
    %c0_91 = arith.constant 0 : index
    %275 = vector.load %arg17[%c0_89, %c0_90, %c0_91] : memref<2x8x128xf32, #tpu.memory_space<vmem>>, vector<2x1x128xf32>
    %276 = vector.shape_cast %275 : vector<2x1x128xf32> to vector<2x128xf32>
    %277 = vector.shape_cast %274 : vector<2x128xf32> to vector<2x1x128xf32>
    tpu.vector_store %arg17[%c0_89, %c0_90, %c0_91], %277 {strides = array<i32>} : memref<2x8x128xf32, #tpu.memory_space<vmem>>, vector<2x1x128xf32>,
    %278 = vector.extract_strided_slice %255 {offsets = [0, 1, 0, 0], sizes = [2, 1, 16, 128], strides = [1, 1, 1, 1]} : vector<2x8x16x128xf32> to vector<2x1x16x128xf32>
    %279 = vector.shape_cast %278 : vector<2x1x16x128xf32> to vector<2x16x128xf32>
    %280 = arith.mulf %279, %268 : vector<2x16x128xf32>
    %281 = vector.extract_strided_slice %261 {offsets = [0, 1, 0, 0], sizes = [2, 1, 16, 128], strides = [1, 1, 1, 1]} : vector<2x8x16x128xf32> to vector<2x1x16x128xf32>
    %282 = vector.shape_cast %281 : vector<2x1x16x128xf32> to vector<2x16x128xf32>
    %283 = arith.addf %280, %282 : vector<2x16x128xf32>
    %284 = vector.extract_strided_slice %228 {offsets = [0, 1, 0], sizes = [2, 1, 16], strides = [1, 1, 1]} : vector<2x8x16xf32> to vector<2x1x16xf32>
    %285 = vector.shape_cast %284 : vector<2x1x16xf32> to vector<2x16xf32>
    %286 = vector.shape_cast %285 : vector<2x16xf32> to vector<2x16x1xf32>
    %287 = vector.broadcast %286 : vector<2x16x1xf32> to vector<2x16x128xf32>
    %288 = arith.mulf %287, %283 : vector<2x16x128xf32>
    %cst_92 = arith.constant dense<0.000000e+00> : vector<2x128xf32>
    %289 = vector.multi_reduction <add>, %288, %cst_92 [1] : vector<2x16x128xf32> to vector<2x128xf32>
    %c0_93 = arith.constant 0 : index
    %c1_94 = arith.constant 1 : index
    %c0_95 = arith.constant 0 : index
    %290 = vector.load %arg17[%c0_93, %c1_94, %c0_95] : memref<2x8x128xf32, #tpu.memory_space<vmem>>, vector<2x1x128xf32>
    %291 = vector.shape_cast %290 : vector<2x1x128xf32> to vector<2x128xf32>
    %292 = vector.shape_cast %289 : vector<2x128xf32> to vector<2x1x128xf32>
    tpu.vector_store %arg17[%c0_93, %c1_94, %c0_95], %292 {strides = array<i32>} : memref<2x8x128xf32, #tpu.memory_space<vmem>>, vector<2x1x128xf32>,
    %293 = vector.extract_strided_slice %255 {offsets = [0, 2, 0, 0], sizes = [2, 1, 16, 128], strides = [1, 1, 1, 1]} : vector<2x8x16x128xf32> to vector<2x1x16x128xf32>
    %294 = vector.shape_cast %293 : vector<2x1x16x128xf32> to vector<2x16x128xf32>
    %295 = arith.mulf %294, %283 : vector<2x16x128xf32>
    %296 = vector.extract_strided_slice %261 {offsets = [0, 2, 0, 0], sizes = [2, 1, 16, 128], strides = [1, 1, 1, 1]} : vector<2x8x16x128xf32> to vector<2x1x16x128xf32>
    %297 = vector.shape_cast %296 : vector<2x1x16x128xf32> to vector<2x16x128xf32>
    %298 = arith.addf %295, %297 : vector<2x16x128xf32>
    %299 = vector.extract_strided_slice %228 {offsets = [0, 2, 0], sizes = [2, 1, 16], strides = [1, 1, 1]} : vector<2x8x16xf32> to vector<2x1x16xf32>
    %300 = vector.shape_cast %299 : vector<2x1x16xf32> to vector<2x16xf32>
    %301 = vector.shape_cast %300 : vector<2x16xf32> to vector<2x16x1xf32>
    %302 = vector.broadcast %301 : vector<2x16x1xf32> to vector<2x16x128xf32>
    %303 = arith.mulf %302, %298 : vector<2x16x128xf32>
    %cst_96 = arith.constant dense<0.000000e+00> : vector<2x128xf32>
    %304 = vector.multi_reduction <add>, %303, %cst_96 [1] : vector<2x16x128xf32> to vector<2x128xf32>
    %c0_97 = arith.constant 0 : index
    %c2_98 = arith.constant 2 : index
    %c0_99 = arith.constant 0 : index
    %305 = vector.load %arg17[%c0_97, %c2_98, %c0_99] : memref<2x8x128xf32, #tpu.memory_space<vmem>>, vector<2x1x128xf32>
    %306 = vector.shape_cast %305 : vector<2x1x128xf32> to vector<2x128xf32>
    %307 = vector.shape_cast %304 : vector<2x128xf32> to vector<2x1x128xf32>
    tpu.vector_store %arg17[%c0_97, %c2_98, %c0_99], %307 {strides = array<i32>} : memref<2x8x128xf32, #tpu.memory_space<vmem>>, vector<2x1x128xf32>,
    %308 = vector.extract_strided_slice %255 {offsets = [0, 3, 0, 0], sizes = [2, 1, 16, 128], strides = [1, 1, 1, 1]} : vector<2x8x16x128xf32> to vector<2x1x16x128xf32>
    %309 = vector.shape_cast %308 : vector<2x1x16x128xf32> to vector<2x16x128xf32>
    %310 = arith.mulf %309, %298 : vector<2x16x128xf32>
    %311 = vector.extract_strided_slice %261 {offsets = [0, 3, 0, 0], sizes = [2, 1, 16, 128], strides = [1, 1, 1, 1]} : vector<2x8x16x128xf32> to vector<2x1x16x128xf32>
    %312 = vector.shape_cast %311 : vector<2x1x16x128xf32> to vector<2x16x128xf32>
    %313 = arith.addf %310, %312 : vector<2x16x128xf32>
    %314 = vector.extract_strided_slice %228 {offsets = [0, 3, 0], sizes = [2, 1, 16], strides = [1, 1, 1]} : vector<2x8x16xf32> to vector<2x1x16xf32>
    %315 = vector.shape_cast %314 : vector<2x1x16xf32> to vector<2x16xf32>
    %316 = vector.shape_cast %315 : vector<2x16xf32> to vector<2x16x1xf32>
    %317 = vector.broadcast %316 : vector<2x16x1xf32> to vector<2x16x128xf32>
    %318 = arith.mulf %317, %313 : vector<2x16x128xf32>
    %cst_100 = arith.constant dense<0.000000e+00> : vector<2x128xf32>
    %319 = vector.multi_reduction <add>, %318, %cst_100 [1] : vector<2x16x128xf32> to vector<2x128xf32>
    %c0_101 = arith.constant 0 : index
    %c3_102 = arith.constant 3 : index
    %c0_103 = arith.constant 0 : index
    %320 = vector.load %arg17[%c0_101, %c3_102, %c0_103] : memref<2x8x128xf32, #tpu.memory_space<vmem>>, vector<2x1x128xf32>
    %321 = vector.shape_cast %320 : vector<2x1x128xf32> to vector<2x128xf32>
    %322 = vector.shape_cast %319 : vector<2x128xf32> to vector<2x1x128xf32>
    tpu.vector_store %arg17[%c0_101, %c3_102, %c0_103], %322 {strides = array<i32>} : memref<2x8x128xf32, #tpu.memory_space<vmem>>, vector<2x1x128xf32>,
    %323 = vector.extract_strided_slice %255 {offsets = [0, 4, 0, 0], sizes = [2, 1, 16, 128], strides = [1, 1, 1, 1]} : vector<2x8x16x128xf32> to vector<2x1x16x128xf32>
    %324 = vector.shape_cast %323 : vector<2x1x16x128xf32> to vector<2x16x128xf32>
    %325 = arith.mulf %324, %313 : vector<2x16x128xf32>
    %326 = vector.extract_strided_slice %261 {offsets = [0, 4, 0, 0], sizes = [2, 1, 16, 128], strides = [1, 1, 1, 1]} : vector<2x8x16x128xf32> to vector<2x1x16x128xf32>
    %327 = vector.shape_cast %326 : vector<2x1x16x128xf32> to vector<2x16x128xf32>
    %328 = arith.addf %325, %327 : vector<2x16x128xf32>
    %329 = vector.extract_strided_slice %228 {offsets = [0, 4, 0], sizes = [2, 1, 16], strides = [1, 1, 1]} : vector<2x8x16xf32> to vector<2x1x16xf32>
    %330 = vector.shape_cast %329 : vector<2x1x16xf32> to vector<2x16xf32>
    %331 = vector.shape_cast %330 : vector<2x16xf32> to vector<2x16x1xf32>
    %332 = vector.broadcast %331 : vector<2x16x1xf32> to vector<2x16x128xf32>
    %333 = arith.mulf %332, %328 : vector<2x16x128xf32>
    %cst_104 = arith.constant dense<0.000000e+00> : vector<2x128xf32>
    %334 = vector.multi_reduction <add>, %333, %cst_104 [1] : vector<2x16x128xf32> to vector<2x128xf32>
    %c0_105 = arith.constant 0 : index
    %c4 = arith.constant 4 : index
    %c0_106 = arith.constant 0 : index
    %335 = vector.load %arg17[%c0_105, %c4, %c0_106] : memref<2x8x128xf32, #tpu.memory_space<vmem>>, vector<2x1x128xf32>
    %336 = vector.shape_cast %335 : vector<2x1x128xf32> to vector<2x128xf32>
    %337 = vector.shape_cast %334 : vector<2x128xf32> to vector<2x1x128xf32>
    tpu.vector_store %arg17[%c0_105, %c4, %c0_106], %337 {strides = array<i32>} : memref<2x8x128xf32, #tpu.memory_space<vmem>>, vector<2x1x128xf32>,
    %338 = vector.extract_strided_slice %255 {offsets = [0, 5, 0, 0], sizes = [2, 1, 16, 128], strides = [1, 1, 1, 1]} : vector<2x8x16x128xf32> to vector<2x1x16x128xf32>
    %339 = vector.shape_cast %338 : vector<2x1x16x128xf32> to vector<2x16x128xf32>
    %340 = arith.mulf %339, %328 : vector<2x16x128xf32>
    %341 = vector.extract_strided_slice %261 {offsets = [0, 5, 0, 0], sizes = [2, 1, 16, 128], strides = [1, 1, 1, 1]} : vector<2x8x16x128xf32> to vector<2x1x16x128xf32>
    %342 = vector.shape_cast %341 : vector<2x1x16x128xf32> to vector<2x16x128xf32>
    %343 = arith.addf %340, %342 : vector<2x16x128xf32>
    %344 = vector.extract_strided_slice %228 {offsets = [0, 5, 0], sizes = [2, 1, 16], strides = [1, 1, 1]} : vector<2x8x16xf32> to vector<2x1x16xf32>
    %345 = vector.shape_cast %344 : vector<2x1x16xf32> to vector<2x16xf32>
    %346 = vector.shape_cast %345 : vector<2x16xf32> to vector<2x16x1xf32>
    %347 = vector.broadcast %346 : vector<2x16x1xf32> to vector<2x16x128xf32>
    %348 = arith.mulf %347, %343 : vector<2x16x128xf32>
    %cst_107 = arith.constant dense<0.000000e+00> : vector<2x128xf32>
    %349 = vector.multi_reduction <add>, %348, %cst_107 [1] : vector<2x16x128xf32> to vector<2x128xf32>
    %c0_108 = arith.constant 0 : index
    %c5 = arith.constant 5 : index
    %c0_109 = arith.constant 0 : index
    %350 = vector.load %arg17[%c0_108, %c5, %c0_109] : memref<2x8x128xf32, #tpu.memory_space<vmem>>, vector<2x1x128xf32>
    %351 = vector.shape_cast %350 : vector<2x1x128xf32> to vector<2x128xf32>
    %352 = vector.shape_cast %349 : vector<2x128xf32> to vector<2x1x128xf32>
    tpu.vector_store %arg17[%c0_108, %c5, %c0_109], %352 {strides = array<i32>} : memref<2x8x128xf32, #tpu.memory_space<vmem>>, vector<2x1x128xf32>,
    %353 = vector.extract_strided_slice %255 {offsets = [0, 6, 0, 0], sizes = [2, 1, 16, 128], strides = [1, 1, 1, 1]} : vector<2x8x16x128xf32> to vector<2x1x16x128xf32>
    %354 = vector.shape_cast %353 : vector<2x1x16x128xf32> to vector<2x16x128xf32>
    %355 = arith.mulf %354, %343 : vector<2x16x128xf32>
    %356 = vector.extract_strided_slice %261 {offsets = [0, 6, 0, 0], sizes = [2, 1, 16, 128], strides = [1, 1, 1, 1]} : vector<2x8x16x128xf32> to vector<2x1x16x128xf32>
    %357 = vector.shape_cast %356 : vector<2x1x16x128xf32> to vector<2x16x128xf32>
    %358 = arith.addf %355, %357 : vector<2x16x128xf32>
    %359 = vector.extract_strided_slice %228 {offsets = [0, 6, 0], sizes = [2, 1, 16], strides = [1, 1, 1]} : vector<2x8x16xf32> to vector<2x1x16xf32>
    %360 = vector.shape_cast %359 : vector<2x1x16xf32> to vector<2x16xf32>
    %361 = vector.shape_cast %360 : vector<2x16xf32> to vector<2x16x1xf32>
    %362 = vector.broadcast %361 : vector<2x16x1xf32> to vector<2x16x128xf32>
    %363 = arith.mulf %362, %358 : vector<2x16x128xf32>
    %cst_110 = arith.constant dense<0.000000e+00> : vector<2x128xf32>
    %364 = vector.multi_reduction <add>, %363, %cst_110 [1] : vector<2x16x128xf32> to vector<2x128xf32>
    %c0_111 = arith.constant 0 : index
    %c6 = arith.constant 6 : index
    %c0_112 = arith.constant 0 : index
    %365 = vector.load %arg17[%c0_111, %c6, %c0_112] : memref<2x8x128xf32, #tpu.memory_space<vmem>>, vector<2x1x128xf32>
    %366 = vector.shape_cast %365 : vector<2x1x128xf32> to vector<2x128xf32>
    %367 = vector.shape_cast %364 : vector<2x128xf32> to vector<2x1x128xf32>
    tpu.vector_store %arg17[%c0_111, %c6, %c0_112], %367 {strides = array<i32>} : memref<2x8x128xf32, #tpu.memory_space<vmem>>, vector<2x1x128xf32>,
    %368 = vector.extract_strided_slice %255 {offsets = [0, 7, 0, 0], sizes = [2, 1, 16, 128], strides = [1, 1, 1, 1]} : vector<2x8x16x128xf32> to vector<2x1x16x128xf32>
    %369 = vector.shape_cast %368 : vector<2x1x16x128xf32> to vector<2x16x128xf32>
    %370 = arith.mulf %369, %358 : vector<2x16x128xf32>
    %371 = vector.extract_strided_slice %261 {offsets = [0, 7, 0, 0], sizes = [2, 1, 16, 128], strides = [1, 1, 1, 1]} : vector<2x8x16x128xf32> to vector<2x1x16x128xf32>
    %372 = vector.shape_cast %371 : vector<2x1x16x128xf32> to vector<2x16x128xf32>
    %373 = arith.addf %370, %372 : vector<2x16x128xf32>
    %374 = vector.extract_strided_slice %228 {offsets = [0, 7, 0], sizes = [2, 1, 16], strides = [1, 1, 1]} : vector<2x8x16xf32> to vector<2x1x16xf32>
    %375 = vector.shape_cast %374 : vector<2x1x16xf32> to vector<2x16xf32>
    %376 = vector.shape_cast %375 : vector<2x16xf32> to vector<2x16x1xf32>
    %377 = vector.broadcast %376 : vector<2x16x1xf32> to vector<2x16x128xf32>
    %378 = arith.mulf %377, %373 : vector<2x16x128xf32>
    %cst_113 = arith.constant dense<0.000000e+00> : vector<2x128xf32>
    %379 = vector.multi_reduction <add>, %378, %cst_113 [1] : vector<2x16x128xf32> to vector<2x128xf32>
    %c0_114 = arith.constant 0 : index
    %c7 = arith.constant 7 : index
    %c0_115 = arith.constant 0 : index
    %380 = vector.load %arg17[%c0_114, %c7, %c0_115] : memref<2x8x128xf32, #tpu.memory_space<vmem>>, vector<2x1x128xf32>
    %381 = vector.shape_cast %380 : vector<2x1x128xf32> to vector<2x128xf32>
    %382 = vector.shape_cast %379 : vector<2x128xf32> to vector<2x1x128xf32>
    tpu.vector_store %arg17[%c0_114, %c7, %c0_115], %382 {strides = array<i32>} : memref<2x8x128xf32, #tpu.memory_space<vmem>>, vector<2x1x128xf32>,
    %c0_116 = arith.constant 0 : index
    %c0_117 = arith.constant 0 : index
    %c0_118 = arith.constant 0 : index
    %383 = vector.load %arg17[%c0_116, %c0_117, %c0_118] : memref<2x8x128xf32, #tpu.memory_space<vmem>>, vector<2x8x128xf32>
    %c0_119 = arith.constant 0 : index
    %c0_120 = arith.constant 0 : index
    %384 = vector.load %arg14[%c0_119, %c0_120] : memref<1x128xf32, #tpu.memory_space<vmem>>, vector<1x128xf32>
    %385 = vector.shape_cast %384 : vector<1x128xf32> to vector<1x1x128xf32>
    %386 = vector.broadcast %385 : vector<1x1x128xf32> to vector<2x8x128xf32>
    %387 = arith.mulf %386, %245 : vector<2x8x128xf32>
    %388 = arith.addf %383, %387 : vector<2x8x128xf32>
    %389 = vector.shape_cast %176 : vector<16x128xf32> to vector<2x8x128xf32>
    %cst_121 = arith.constant 0.000000e+00 : f32
    %390 = vector.broadcast %cst_121 : f32 to vector<2x8x128xf32>
    %391 = arith.subf %390, %389 : vector<2x8x128xf32>
    %392 = math.exp %391 : vector<2x8x128xf32>
    %cst_122 = arith.constant 1.000000e+00 : f32
    %393 = vector.broadcast %cst_122 : f32 to vector<2x8x128xf32>
    %394 = arith.addf %393, %392 : vector<2x8x128xf32>
    %395 = tpu.reciprocal %394 {approx = true} : vector<2x8x128xf32> -> vector<2x8x128xf32>
    %396 = arith.mulf %389, %395 : vector<2x8x128xf32>
    %397 = arith.mulf %388, %396 : vector<2x8x128xf32>
    %398 = vector.shape_cast %397 : vector<2x8x128xf32> to vector<16x128xf32>
    %399 = arith.truncf %398 : vector<16x128xf32> to vector<16x128xbf16>
    %c0_123 = arith.constant 0 : index
    %c0_124 = arith.constant 0 : index
    %400 = vector.load %arg15[%c0_123, %c0_124] : memref<128x64xbf16, #tpu.memory_space<vmem>>, vector<128x64xbf16>
    %cst_125 = arith.constant dense<0.000000e+00> : vector<16x64xf32>
    %401 = tpu.matmul %399, %400, %cst_125 {dimension_numbers = #tpu.dot_dimension_numbers<[1], [0], [0], [1], [0, 0, 1, 1], [], []>} : vector<16x128xbf16>, vector<128x64xbf16>, vector<16x64xf32> -> vector<16x64xf32>
    %402 = tpu.concatenate %172, %401 in 1 : vector<16x64xf32>, vector<16x64xf32> -> vector<16x128xf32>
    %403 = vector.shape_cast %402 : vector<16x128xf32> to vector<2x8x128xf32>
    %c0_126 = arith.constant 0 : index
    %c0_127 = arith.constant 0 : index
    %c0_128 = arith.constant 0 : index
    %404 = vector.load %arg16[%c0_126, %c0_127, %c0_128] : memref<2x8x128xf32, #tpu.memory_space<vmem>>, vector<2x8x128xf32>
    tpu.vector_store %arg16[%c0_126, %c0_127, %c0_128], %403 {strides = array<i32>} : memref<2x8x128xf32, #tpu.memory_space<vmem>>, vector<2x8x128xf32>,
    return
  }
  func.func @transform_0(%arg0: i32) -> (i32, i32, i32) {
    %c0_i32 = arith.constant 0 : i32
    %c0_i32_0 = arith.constant 0 : i32
    %c0_i32_1 = arith.constant 0 : i32
    return %arg0, %c0_i32, %c0_i32_0 : i32, i32, i32
  }
  func.func @transform_1(%arg0: i32) -> (i32, i32, i32) {
    %c0_i32 = arith.constant 0 : i32
    %c0_i32_0 = arith.constant 0 : i32
    %c0_i32_1 = arith.constant 0 : i32
    return %arg0, %c0_i32, %c0_i32_0 : i32, i32, i32
  }
  func.func @transform_2(%arg0: i32) -> (i32, i32) {
    %c0_i32 = arith.constant 0 : i32
    %c0_i32_0 = arith.constant 0 : i32
    %c0_i32_1 = arith.constant 0 : i32
    return %c0_i32, %c0_i32_0 : i32, i32
  }
  func.func @transform_3(%arg0: i32) -> (i32, i32) {
    %c0_i32 = arith.constant 0 : i32
    %c0_i32_0 = arith.constant 0 : i32
    %c0_i32_1 = arith.constant 0 : i32
    return %c0_i32, %c0_i32_0 : i32, i32
  }
  func.func @transform_4(%arg0: i32) -> (i32, i32) {
    %c0_i32 = arith.constant 0 : i32
    %c0_i32_0 = arith.constant 0 : i32
    %c0_i32_1 = arith.constant 0 : i32
    return %c0_i32, %c0_i32_0 : i32, i32
  }
  func.func @transform_5(%arg0: i32) -> (i32, i32) {
    %c0_i32 = arith.constant 0 : i32
    %c0_i32_0 = arith.constant 0 : i32
    %c0_i32_1 = arith.constant 0 : i32
    return %c0_i32, %c0_i32_0 : i32, i32
  }
  func.func @transform_6(%arg0: i32) -> (i32, i32) {
    %c0_i32 = arith.constant 0 : i32
    %c0_i32_0 = arith.constant 0 : i32
    %c0_i32_1 = arith.constant 0 : i32
    return %c0_i32, %c0_i32_0 : i32, i32
  }
  func.func @transform_7(%arg0: i32) -> (i32, i32) {
    %c0_i32 = arith.constant 0 : i32
    %c0_i32_0 = arith.constant 0 : i32
    %c0_i32_1 = arith.constant 0 : i32
    return %c0_i32, %c0_i32_0 : i32, i32
  }
  func.func @transform_8(%arg0: i32) -> (i32, i32) {
    %c0_i32 = arith.constant 0 : i32
    %c0_i32_0 = arith.constant 0 : i32
    %c0_i32_1 = arith.constant 0 : i32
    return %c0_i32, %c0_i32_0 : i32, i32
  }
  func.func @transform_9(%arg0: i32) -> (i32, i32) {
    %c0_i32 = arith.constant 0 : i32
    %c0_i32_0 = arith.constant 0 : i32
    %c0_i32_1 = arith.constant 0 : i32
    return %c0_i32, %c0_i32_0 : i32, i32
  }
  func.func @transform_10(%arg0: i32) -> (i32, i32) {
    %c0_i32 = arith.constant 0 : i32
    %c0_i32_0 = arith.constant 0 : i32
    %c0_i32_1 = arith.constant 0 : i32
    return %c0_i32, %c0_i32_0 : i32, i32
  }
  func.func @transform_11(%arg0: i32) -> (i32, i32) {
    %c0_i32 = arith.constant 0 : i32
    %c0_i32_0 = arith.constant 0 : i32
    %c0_i32_1 = arith.constant 0 : i32
    return %c0_i32, %c0_i32_0 : i32, i32
  }
  func.func @transform_12(%arg0: i32) -> (i32, i32) {
    %c0_i32 = arith.constant 0 : i32
    %c0_i32_0 = arith.constant 0 : i32
    %c0_i32_1 = arith.constant 0 : i32
    return %c0_i32, %c0_i32_0 : i32, i32
  }
  func.func @transform_13(%arg0: i32) -> (i32, i32) {
    %c0_i32 = arith.constant 0 : i32
    %c0_i32_0 = arith.constant 0 : i32
    %c0_i32_1 = arith.constant 0 : i32
    return %c0_i32, %c0_i32_0 : i32, i32
  }
  func.func @transform_14(%arg0: i32) -> (i32, i32) {
    %c0_i32 = arith.constant 0 : i32
    %c0_i32_0 = arith.constant 0 : i32
    %c0_i32_1 = arith.constant 0 : i32
    return %c0_i32, %c0_i32_0 : i32, i32
  }
  func.func @transform_15(%arg0: i32) -> (i32, i32, i32) {
    %c0_i32 = arith.constant 0 : i32
    %c0_i32_0 = arith.constant 0 : i32
    %c0_i32_1 = arith.constant 0 : i32
    return %arg0, %c0_i32, %c0_i32_0 : i32, i32, i32
  }
}

</mosaic_0001>

<llo_original>
// kernel: vkff_forward.1
$region0: #{vkff_forward.1}
  #allocation0 [shape = 'u32[]', space=smem, size = 0x4, offset = 0x4, fixed_abs, tag = 'smem constant byte address 0x4 - core index']
  #allocation1 [shape = 'u32[144,128]{1,0:T(1,128)}', space=vmem, size = 0x12000, scoped, tag = 'internal scratch']
  #allocation2 [shape = 'f32[2,8,128]{2,1,0:T(8,128)}', space=vmem, size = 0x2000, scoped, tag = 'scratch operand']
  %s0 = inlined_call_operand.vmem [shape: f32[8,8,64], index: 0, kind: input, shape index: {}]
  %s1 = inlined_call_operand.vmem [shape: f32[8,8,64], index: 1, kind: input, shape index: {}]
  %s2 = inlined_call_operand.vmem [shape: bf16[64,192], index: 2, kind: input, shape index: {}]
  %s3 = inlined_call_operand.vmem [shape: f32[1,192], index: 3, kind: input, shape index: {}]
  %s4 = inlined_call_operand.vmem [shape: bf16[64,64], index: 4, kind: input, shape index: {}]
  %s5 = inlined_call_operand.vmem [shape: f32[1,64], index: 5, kind: input, shape index: {}]
  %s6 = inlined_call_operand.vmem [shape: bf16[64,256], index: 6, kind: input, shape index: {}]
  %s7 = inlined_call_operand.vmem [shape: f32[4,128], index: 7, kind: input, shape index: {}]
  %s8 = inlined_call_operand.vmem [shape: f32[1,128], index: 8, kind: input, shape index: {}]
  %s9 = inlined_call_operand.vmem [shape: bf16[128,36], index: 9, kind: input, shape index: {}]
  %s10 = inlined_call_operand.vmem [shape: f32[4,128], index: 10, kind: input, shape index: {}]
  %s11 = inlined_call_operand.vmem [shape: f32[1,128], index: 11, kind: input, shape index: {}]
  %s12 = inlined_call_operand.vmem [shape: f32[16,128], index: 12, kind: input, shape index: {}]
  %s13 = inlined_call_operand.vmem [shape: f32[1,128], index: 13, kind: input, shape index: {}]
  %s14 = inlined_call_operand.vmem [shape: bf16[128,64], index: 14, kind: input, shape index: {}]
  %s15 = inlined_call_operand.vmem [shape: f32[8,8,128], index: 15, kind: output, shape index: {}]
  %s16 = sld [smem:[#allocation0]]
  $region93: #{vkff_forward.1} parent=0
    _
  %s18 = ssub.s32 1, %s16
  %s19 = scalar_select 0, %s18, %s16
  loop: start=0, step=1, limit=6
  $region2: #{vkff_forward.1} parent=0 // loop_pre_header
    _
  $region3: #{vkff_forward.1} parent=0 // loop_header
    %s21 = sphi 0, %s25
    %p22 = scmp.ge.s32.totalorder %s21, 6
    %s31 = sphi 0, %s33
    %s34 = sphi 0, %s31
    %s35 = sphi 0, %s34
    %s51 = sphi 0, %s35
    %s57 = sphi 0, %s59
    %s60 = sphi 0, %s57
    %s61 = sphi 0, %s60
    %s77 = sphi 0, %s61
    %s81 = sphi 0, %s81
    %s83 = sphi 0, %s81
    %s84 = sphi 0, %s83
    %s98 = sphi 0, %s84
    %s102 = sphi 0, %s102
    %s104 = sphi 0, %s102
    %s105 = sphi 0, %s104
    %s119 = sphi 0, %s105
    %s123 = sphi 0, %s123
    %s125 = sphi 0, %s123
    %s126 = sphi 0, %s125
    %s140 = sphi 0, %s126
    %s144 = sphi 0, %s144
    %s146 = sphi 0, %s144
    %s147 = sphi 0, %s146
    %s161 = sphi 0, %s147
    %s165 = sphi 0, %s165
    %s167 = sphi 0, %s165
    %s168 = sphi 0, %s167
    %s182 = sphi 0, %s168
    %s186 = sphi 0, %s186
    %s188 = sphi 0, %s186
    %s189 = sphi 0, %s188
    %s203 = sphi 0, %s189
    %s207 = sphi 0, %s207
    %s209 = sphi 0, %s207
    %s210 = sphi 0, %s209
    %s224 = sphi 0, %s210
    %s228 = sphi 0, %s228
    %s230 = sphi 0, %s228
    %s231 = sphi 0, %s230
    %s245 = sphi 0, %s231
    %s249 = sphi 0, %s249
    %s251 = sphi 0, %s249
    %s252 = sphi 0, %s251
    %s266 = sphi 0, %s252
    %s270 = sphi 0, %s270
    %s272 = sphi 0, %s270
    %s273 = sphi 0, %s272
    %s287 = sphi 0, %s273
    %s291 = sphi 0, %s291
    %s293 = sphi 0, %s291
    %s294 = sphi 0, %s293
    %s308 = sphi 0, %s294
    %s312 = sphi 0, %s312
    %s314 = sphi 0, %s312
    %s315 = sphi 0, %s314
    %s329 = sphi 0, %s315
    %s333 = sphi 0, %s333
    %s335 = sphi 0, %s333
    %s336 = sphi 0, %s335
    %s350 = sphi 0, %s336
    %s356 = sphi 0, %s358
    %s359 = sphi 0, %s356
    %s360 = sphi 0, %s359
    %s376 = sphi 0, %s360
  $region4: #{vkff_forward.1} parent=0 // loop_header_branch
    %24 = sbr.rel (%p22) target = $region8
  $region5: #{vkff_forward.1} parent=0 // loop_body
    %s26 = ssub.s32 %s21, 1
    %s27 = ssub.s32 %s21, 2
    %s28 = sadd.s32 %s21, 1
    %s29 = ssub.s32 %s21, %s28
    %p30 = scmp.eq.s32.totalorder %s29, 0
    %s32 = sadd.s32 %s31, 1
    %s33 = scalar_select %p30, %s31, %s32
    %p36 = pneg %p30
    %p37 = scmp.eq.s32.totalorder %s21, 3
    %p38 = por %p36, %p37
    %p39 = scmp.ne.s32.totalorder %s31, %s34
    %p40 = scmp.eq.s32.totalorder %s21, 0
    %p41 = por %p39, %p40
    %p42 = scmp.ne.s32.totalorder %s31, %s34
    %p43 = scmp.eq.s32.totalorder %s26, 3
    %p44 = por %p42, %p43
    %p45 = scmp.ne.s32.totalorder %s34, %s35
    %p46 = scmp.eq.s32.totalorder %s26, 0
    %p47 = por %p45, %p46
    %p48 = scmp.ne.s32.totalorder %s34, %s35
    %p49 = scmp.eq.s32.totalorder %s27, 3
    %p50 = por %p48, %p49
    %p52 = scmp.ne.s32.totalorder %s35, %s51
    %p53 = scmp.eq.s32.totalorder %s27, 0
    %p54 = por %p52, %p53
    %s55 = ssub.s32 %s21, %s28
    %p56 = scmp.eq.s32.totalorder %s55, 0
    %s58 = sadd.s32 %s57, 1
    %s59 = scalar_select %p56, %s57, %s58
    %p62 = pneg %p56
    %p63 = scmp.eq.s32.totalorder %s21, 3
    %p64 = por %p62, %p63
    %p65 = scmp.ne.s32.totalorder %s57, %s60
    %p66 = scmp.eq.s32.totalorder %s21, 0
    %p67 = por %p65, %p66
    %p68 = scmp.ne.s32.totalorder %s57, %s60
    %p69 = scmp.eq.s32.totalorder %s26, 3
    %p70 = por %p68, %p69
    %p71 = scmp.ne.s32.totalorder %s60, %s61
    %p72 = scmp.eq.s32.totalorder %s26, 0
    %p73 = por %p71, %p72
    %p74 = scmp.ne.s32.totalorder %s60, %s61
    %p75 = scmp.eq.s32.totalorder %s27, 3
    %p76 = por %p74, %p75
    %p78 = scmp.ne.s32.totalorder %s61, %s77
    %p79 = scmp.eq.s32.totalorder %s27, 0
    %p80 = por %p78, %p79
    %s82 = sadd.s32 %s81, 1
    %p85 = scmp.eq.s32.totalorder %s21, 3
    %p86 = scmp.ne.s32.totalorder %s81, %s83
    %p87 = scmp.eq.s32.totalorder %s21, 0
    %p88 = por %p86, %p87
    %p89 = scmp.ne.s32.totalorder %s81, %s83
    %p90 = scmp.eq.s32.totalorder %s26, 3
    %p91 = por %p89, %p90
    %p92 = scmp.ne.s32.totalorder %s83, %s84
    %p93 = scmp.eq.s32.totalorder %s26, 0
    %p94 = por %p92, %p93
    %p95 = scmp.ne.s32.totalorder %s83, %s84
    %p96 = scmp.eq.s32.totalorder %s27, 3
    %p97 = por %p95, %p96
    %p99 = scmp.ne.s32.totalorder %s84, %s98
    %p100 = scmp.eq.s32.totalorder %s27, 0
    %p101 = por %p99, %p100
    %s103 = sadd.s32 %s102, 1
    %p106 = scmp.eq.s32.totalorder %s21, 3
    %p107 = scmp.ne.s32.totalorder %s102, %s104
    %p108 = scmp.eq.s32.totalorder %s21, 0
    %p109 = por %p107, %p108
    %p110 = scmp.ne.s32.totalorder %s102, %s104
    %p111 = scmp.eq.s32.totalorder %s26, 3
    %p112 = por %p110, %p111
    %p113 = scmp.ne.s32.totalorder %s104, %s105
    %p114 = scmp.eq.s32.totalorder %s26, 0
    %p115 = por %p113, %p114
    %p116 = scmp.ne.s32.totalorder %s104, %s105
    %p117 = scmp.eq.s32.totalorder %s27, 3
    %p118 = por %p116, %p117
    %p120 = scmp.ne.s32.totalorder %s105, %s119
    %p121 = scmp.eq.s32.totalorder %s27, 0
    %p122 = por %p120, %p121
    %s124 = sadd.s32 %s123, 1
    %p127 = scmp.eq.s32.totalorder %s21, 3
    %p128 = scmp.ne.s32.totalorder %s123, %s125
    %p129 = scmp.eq.s32.totalorder %s21, 0
    %p130 = por %p128, %p129
    %p131 = scmp.ne.s32.totalorder %s123, %s125
    %p132 = scmp.eq.s32.totalorder %s26, 3
    %p133 = por %p131, %p132
    %p134 = scmp.ne.s32.totalorder %s125, %s126
    %p135 = scmp.eq.s32.totalorder %s26, 0
    %p136 = por %p134, %p135
    %p137 = scmp.ne.s32.totalorder %s125, %s126
    %p138 = scmp.eq.s32.totalorder %s27, 3
    %p139 = por %p137, %p138
    %p141 = scmp.ne.s32.totalorder %s126, %s140
    %p142 = scmp.eq.s32.totalorder %s27, 0
    %p143 = por %p141, %p142
    %s145 = sadd.s32 %s144, 1
    %p148 = scmp.eq.s32.totalorder %s21, 3
    %p149 = scmp.ne.s32.totalorder %s144, %s146
    %p150 = scmp.eq.s32.totalorder %s21, 0
    %p151 = por %p149, %p150
    %p152 = scmp.ne.s32.totalorder %s144, %s146
    %p153 = scmp.eq.s32.totalorder %s26, 3
    %p154 = por %p152, %p153
    %p155 = scmp.ne.s32.totalorder %s146, %s147
    %p156 = scmp.eq.s32.totalorder %s26, 0
    %p157 = por %p155, %p156
    %p158 = scmp.ne.s32.totalorder %s146, %s147
    %p159 = scmp.eq.s32.totalorder %s27, 3
    %p160 = por %p158, %p159
    %p162 = scmp.ne.s32.totalorder %s147, %s161
    %p163 = scmp.eq.s32.totalorder %s27, 0
    %p164 = por %p162, %p163
    %s166 = sadd.s32 %s165, 1
    %p169 = scmp.eq.s32.totalorder %s21, 3
    %p170 = scmp.ne.s32.totalorder %s165, %s167
    %p171 = scmp.eq.s32.totalorder %s21, 0
    %p172 = por %p170, %p171
    %p173 = scmp.ne.s32.totalorder %s165, %s167
    %p174 = scmp.eq.s32.totalorder %s26, 3
    %p175 = por %p173, %p174
    %p176 = scmp.ne.s32.totalorder %s167, %s168
    %p177 = scmp.eq.s32.totalorder %s26, 0
    %p178 = por %p176, %p177
    %p179 = scmp.ne.s32.totalorder %s167, %s168
    %p180 = scmp.eq.s32.totalorder %s27, 3
    %p181 = por %p179, %p180
    %p183 = scmp.ne.s32.totalorder %s168, %s182
    %p184 = scmp.eq.s32.totalorder %s27, 0
    %p185 = por %p183, %p184
    %s187 = sadd.s32 %s186, 1
    %p190 = scmp.eq.s32.totalorder %s21, 3
    %p191 = scmp.ne.s32.totalorder %s186, %s188
    %p192 = scmp.eq.s32.totalorder %s21, 0
    %p193 = por %p191, %p192
    %p194 = scmp.ne.s32.totalorder %s186, %s188
    %p195 = scmp.eq.s32.totalorder %s26, 3
    %p196 = por %p194, %p195
    %p197 = scmp.ne.s32.totalorder %s188, %s189
    %p198 = scmp.eq.s32.totalorder %s26, 0
    %p199 = por %p197, %p198
    %p200 = scmp.ne.s32.totalorder %s188, %s189
    %p201 = scmp.eq.s32.totalorder %s27, 3
    %p202 = por %p200, %p201
    %p204 = scmp.ne.s32.totalorder %s189, %s203
    %p205 = scmp.eq.s32.totalorder %s27, 0
    %p206 = por %p204, %p205
    %s208 = sadd.s32 %s207, 1
    %p211 = scmp.eq.s32.totalorder %s21, 3
    %p212 = scmp.ne.s32.totalorder %s207, %s209
    %p213 = scmp.eq.s32.totalorder %s21, 0
    %p214 = por %p212, %p213
    %p215 = scmp.ne.s32.totalorder %s207, %s209
    %p216 = scmp.eq.s32.totalorder %s26, 3
    %p217 = por %p215, %p216
    %p218 = scmp.ne.s32.totalorder %s209, %s210
    %p219 = scmp.eq.s32.totalorder %s26, 0
    %p220 = por %p218, %p219
    %p221 = scmp.ne.s32.totalorder %s209, %s210
    %p222 = scmp.eq.s32.totalorder %s27, 3
    %p223 = por %p221, %p222
    %p225 = scmp.ne.s32.totalorder %s210, %s224
    %p226 = scmp.eq.s32.totalorder %s27, 0
    %p227 = por %p225, %p226
    %s229 = sadd.s32 %s228, 1
    %p232 = scmp.eq.s32.totalorder %s21, 3
    %p233 = scmp.ne.s32.totalorder %s228, %s230
    %p234 = scmp.eq.s32.totalorder %s21, 0
    %p235 = por %p233, %p234
    %p236 = scmp.ne.s32.totalorder %s228, %s230
    %p237 = scmp.eq.s32.totalorder %s26, 3
    %p238 = por %p236, %p237
    %p239 = scmp.ne.s32.totalorder %s230, %s231
    %p240 = scmp.eq.s32.totalorder %s26, 0
    %p241 = por %p239, %p240
    %p242 = scmp.ne.s32.totalorder %s230, %s231
    %p243 = scmp.eq.s32.totalorder %s27, 3
    %p244 = por %p242, %p243
    %p246 = scmp.ne.s32.totalorder %s231, %s245
    %p247 = scmp.eq.s32.totalorder %s27, 0
    %p248 = por %p246, %p247
    %s250 = sadd.s32 %s249, 1
    %p253 = scmp.eq.s32.totalorder %s21, 3
    %p254 = scmp.ne.s32.totalorder %s249, %s251
    %p255 = scmp.eq.s32.totalorder %s21, 0
    %p256 = por %p254, %p255
    %p257 = scmp.ne.s32.totalorder %s249, %s251
    %p258 = scmp.eq.s32.totalorder %s26, 3
    %p259 = por %p257, %p258
    %p260 = scmp.ne.s32.totalorder %s251, %s252
    %p261 = scmp.eq.s32.totalorder %s26, 0
    %p262 = por %p260, %p261
    %p263 = scmp.ne.s32.totalorder %s251, %s252
    %p264 = scmp.eq.s32.totalorder %s27, 3
    %p265 = por %p263, %p264
    %p267 = scmp.ne.s32.totalorder %s252, %s266
    %p268 = scmp.eq.s32.totalorder %s27, 0
    %p269 = por %p267, %p268
    %s271 = sadd.s32 %s270, 1
    %p274 = scmp.eq.s32.totalorder %s21, 3
    %p275 = scmp.ne.s32.totalorder %s270, %s272
    %p276 = scmp.eq.s32.totalorder %s21, 0
    %p277 = por %p275, %p276
    %p278 = scmp.ne.s32.totalorder %s270, %s272
    %p279 = scmp.eq.s32.totalorder %s26, 3
    %p280 = por %p278, %p279
    %p281 = scmp.ne.s32.totalorder %s272, %s273
    %p282 = scmp.eq.s32.totalorder %s26, 0
    %p283 = por %p281, %p282
    %p284 = scmp.ne.s32.totalorder %s272, %s273
    %p285 = scmp.eq.s32.totalorder %s27, 3
    %p286 = por %p284, %p285
    %p288 = scmp.ne.s32.totalorder %s273, %s287
    %p289 = scmp.eq.s32.totalorder %s27, 0
    %p290 = por %p288, %p289
    %s292 = sadd.s32 %s291, 1
    %p295 = scmp.eq.s32.totalorder %s21, 3
    %p296 = scmp.ne.s32.totalorder %s291, %s293
    %p297 = scmp.eq.s32.totalorder %s21, 0
    %p298 = por %p296, %p297
    %p299 = scmp.ne.s32.totalorder %s291, %s293
    %p300 = scmp.eq.s32.totalorder %s26, 3
    %p301 = por %p299, %p300
    %p302 = scmp.ne.s32.totalorder %s293, %s294
    %p303 = scmp.eq.s32.totalorder %s26, 0
    %p304 = por %p302, %p303
    %p305 = scmp.ne.s32.totalorder %s293, %s294
    %p306 = scmp.eq.s32.totalorder %s27, 3
    %p307 = por %p305, %p306
    %p309 = scmp.ne.s32.totalorder %s294, %s308
    %p310 = scmp.eq.s32.totalorder %s27, 0
    %p311 = por %p309, %p310
    %s313 = sadd.s32 %s312, 1
    %p316 = scmp.eq.s32.totalorder %s21, 3
    %p317 = scmp.ne.s32.totalorder %s312, %s314
    %p318 = scmp.eq.s32.totalorder %s21, 0
    %p319 = por %p317, %p318
    %p320 = scmp.ne.s32.totalorder %s312, %s314
    %p321 = scmp.eq.s32.totalorder %s26, 3
    %p322 = por %p320, %p321
    %p323 = scmp.ne.s32.totalorder %s314, %s315
    %p324 = scmp.eq.s32.totalorder %s26, 0
    %p325 = por %p323, %p324
    %p326 = scmp.ne.s32.totalorder %s314, %s315
    %p327 = scmp.eq.s32.totalorder %s27, 3
    %p328 = por %p326, %p327
    %p330 = scmp.ne.s32.totalorder %s315, %s329
    %p331 = scmp.eq.s32.totalorder %s27, 0
    %p332 = por %p330, %p331
    %s334 = sadd.s32 %s333, 1
    %p337 = scmp.eq.s32.totalorder %s21, 3
    %p338 = scmp.ne.s32.totalorder %s333, %s335
    %p339 = scmp.eq.s32.totalorder %s21, 0
    %p340 = por %p338, %p339
    %p341 = scmp.ne.s32.totalorder %s333, %s335
    %p342 = scmp.eq.s32.totalorder %s26, 3
    %p343 = por %p341, %p342
    %p344 = scmp.ne.s32.totalorder %s335, %s336
    %p345 = scmp.eq.s32.totalorder %s26, 0
    %p346 = por %p344, %p345
    %p347 = scmp.ne.s32.totalorder %s335, %s336
    %p348 = scmp.eq.s32.totalorder %s27, 3
    %p349 = por %p347, %p348
    %p351 = scmp.ne.s32.totalorder %s336, %s350
    %p352 = scmp.eq.s32.totalorder %s27, 0
    %p353 = por %p351, %p352
    %s354 = ssub.s32 %s21, %s28
    %p355 = scmp.eq.s32.totalorder %s354, 0
    %s357 = sadd.s32 %s356, 1
    %s358 = scalar_select %p355, %s356, %s357
    %p361 = pneg %p355
    %p362 = scmp.eq.s32.totalorder %s21, 3
    %p363 = por %p361, %p362
    %p364 = scmp.ne.s32.totalorder %s356, %s359
    %p365 = scmp.eq.s32.totalorder %s21, 0
    %p366 = por %p364, %p365
    %p367 = scmp.ne.s32.totalorder %s356, %s359
    %p368 = scmp.eq.s32.totalorder %s26, 3
    %p369 = por %p367, %p368
    %p370 = scmp.ne.s32.totalorder %s359, %s360
    %p371 = scmp.eq.s32.totalorder %s26, 0
    %p372 = por %p370, %p371
    %p373 = scmp.ne.s32.totalorder %s359, %s360
    %p374 = scmp.eq.s32.totalorder %s27, 3
    %p375 = por %p373, %p374
    %p377 = scmp.ne.s32.totalorder %s360, %s376
    %p378 = scmp.eq.s32.totalorder %s27, 0
    %p379 = por %p377, %p378
    %p380 = scmp.le.s32.totalorder 1, %s21
    %p381 = scmp.lt.s32.totalorder %s21, 5
    %p382 = pnand %p380, %p381
    %p383 = pneg %p382
    // Predicated region
    $region9: #{vkff_forward.1} parent=5 // pred_check
      _
    $region10: #{vkff_forward.1} parent=5 // pred_check_branch
      %385 = sbr.rel (%p382) target = $region12
    $region11: #{vkff_forward.1} parent=5 // pred_region
      %s386 = ssub.s32 %s21, 1
      // Predicated region
      $region13: #{vkff_forward.1} parent=11 // pred_check
        %p387 = pneg %p94
      $region14: #{vkff_forward.1} parent=11 // pred_check_branch
        %389 = sbr.rel (%p387) target = $region16
      $region15: #{vkff_forward.1} parent=11 // pred_region
        _
      $region16: #{vkff_forward.1} parent=11 // pred_fallthru
        _
      // Predicated region
      $region17: #{vkff_forward.1} parent=11 // pred_check
        %p390 = pneg %p115
      $region18: #{vkff_forward.1} parent=11 // pred_check_branch
        %392 = sbr.rel (%p390) target = $region20
      $region19: #{vkff_forward.1} parent=11 // pred_region
        _
      $region20: #{vkff_forward.1} parent=11 // pred_fallthru
        _
      // Predicated region
      $region21: #{vkff_forward.1} parent=11 // pred_check
        %p393 = pneg %p136
      $region22: #{vkff_forward.1} parent=11 // pred_check_branch
        %395 = sbr.rel (%p393) target = $region24
      $region23: #{vkff_forward.1} parent=11 // pred_region
        _
      $region24: #{vkff_forward.1} parent=11 // pred_fallthru
        _
      // Predicated region
      $region25: #{vkff_forward.1} parent=11 // pred_check
        %p396 = pneg %p157
      $region26: #{vkff_forward.1} parent=11 // pred_check_branch
        %398 = sbr.rel (%p396) target = $region28
      $region27: #{vkff_forward.1} parent=11 // pred_region
        _
      $region28: #{vkff_forward.1} parent=11 // pred_fallthru
        _
      // Predicated region
      $region29: #{vkff_forward.1} parent=11 // pred_check
        %p399 = pneg %p178
      $region30: #{vkff_forward.1} parent=11 // pred_check_branch
        %401 = sbr.rel (%p399) target = $region32
      $region31: #{vkff_forward.1} parent=11 // pred_region
        _
      $region32: #{vkff_forward.1} parent=11 // pred_fallthru
        _
      // Predicated region
      $region33: #{vkff_forward.1} parent=11 // pred_check
        %p402 = pneg %p199
      $region34: #{vkff_forward.1} parent=11 // pred_check_branch
        %404 = sbr.rel (%p402) target = $region36
      $region35: #{vkff_forward.1} parent=11 // pred_region
        _
      $region36: #{vkff_forward.1} parent=11 // pred_fallthru
        _
      // Predicated region
      $region37: #{vkff_forward.1} parent=11 // pred_check
        %p405 = pneg %p220
      $region38: #{vkff_forward.1} parent=11 // pred_check_branch
        %407 = sbr.rel (%p405) target = $region40
      $region39: #{vkff_forward.1} parent=11 // pred_region
        _
      $region40: #{vkff_forward.1} parent=11 // pred_fallthru
        _
      // Predicated region
      $region41: #{vkff_forward.1} parent=11 // pred_check
        %p408 = pneg %p241
      $region42: #{vkff_forward.1} parent=11 // pred_check_branch
        %410 = sbr.rel (%p408) target = $region44
      $region43: #{vkff_forward.1} parent=11 // pred_region
        _
      $region44: #{vkff_forward.1} parent=11 // pred_fallthru
        _
      // Predicated region
      $region45: #{vkff_forward.1} parent=11 // pred_check
        %p411 = pneg %p262
      $region46: #{vkff_forward.1} parent=11 // pred_check_branch
        %413 = sbr.rel (%p411) target = $region48
      $region47: #{vkff_forward.1} parent=11 // pred_region
        _
      $region48: #{vkff_forward.1} parent=11 // pred_fallthru
        _
      // Predicated region
      $region49: #{vkff_forward.1} parent=11 // pred_check
        %p414 = pneg %p283
      $region50: #{vkff_forward.1} parent=11 // pred_check_branch
        %416 = sbr.rel (%p414) target = $region52
      $region51: #{vkff_forward.1} parent=11 // pred_region
        _
      $region52: #{vkff_forward.1} parent=11 // pred_fallthru
        _
      // Predicated region
      $region53: #{vkff_forward.1} parent=11 // pred_check
        %p417 = pneg %p304
      $region54: #{vkff_forward.1} parent=11 // pred_check_branch
        %419 = sbr.rel (%p417) target = $region56
      $region55: #{vkff_forward.1} parent=11 // pred_region
        _
      $region56: #{vkff_forward.1} parent=11 // pred_fallthru
        _
      // Predicated region
      $region57: #{vkff_forward.1} parent=11 // pred_check
        %p420 = pneg %p325
      $region58: #{vkff_forward.1} parent=11 // pred_check_branch
        %422 = sbr.rel (%p420) target = $region60
      $region59: #{vkff_forward.1} parent=11 // pred_region
        _
      $region60: #{vkff_forward.1} parent=11 // pred_fallthru
        _
      // Predicated region
      $region61: #{vkff_forward.1} parent=11 // pred_check
        %p423 = pneg %p346
      $region62: #{vkff_forward.1} parent=11 // pred_check_branch
        %425 = sbr.rel (%p423) target = $region64
      $region63: #{vkff_forward.1} parent=11 // pred_region
        _
      $region64: #{vkff_forward.1} parent=11 // pred_fallthru
        _
    $region12: #{vkff_forward.1} parent=5 // pred_fallthru
      _
    %p426 = scmp.lt.s32.totalorder %s21, 4
    // Predicated region
    $region65: #{vkff_forward.1} parent=5 // pred_check
      %p427 = pneg %p426
    $region66: #{vkff_forward.1} parent=5 // pred_check_branch
      %429 = sbr.rel (%p427) target = $region68
    $region67: #{vkff_forward.1} parent=5 // pred_region
      // Predicated region
      $region69: #{vkff_forward.1} parent=67 // pred_check
        %p430 = pneg %p41
      $region70: #{vkff_forward.1} parent=67 // pred_check_branch
        %432 = sbr.rel (%p430) target = $region72
      $region71: #{vkff_forward.1} parent=67 // pred_region
        %s433 = smul.u32 2, %s21
        %p434 = scmp.lt.s32.totalorder %s433, 7
        %s435 = scalar_select %p434, %s433, 7
        %s436 = smul.addr %s435, 8
        %s437 = scalar_lea.vmem %s0, %s436
        %s438 = smul.u32 2, %s21
      $region72: #{vkff_forward.1} parent=67 // pred_fallthru
        _
      // Predicated region
      $region73: #{vkff_forward.1} parent=67 // pred_check
        %p439 = pneg %p67
      $region74: #{vkff_forward.1} parent=67 // pred_check_branch
        %441 = sbr.rel (%p439) target = $region76
      $region75: #{vkff_forward.1} parent=67 // pred_region
        %s442 = smul.u32 2, %s21
        %p443 = scmp.lt.s32.totalorder %s442, 7
        %s444 = scalar_select %p443, %s442, 7
        %s445 = smul.addr %s444, 8
        %s446 = scalar_lea.vmem %s1, %s445
        %s447 = smul.u32 2, %s21
      $region76: #{vkff_forward.1} parent=67 // pred_fallthru
        _
    $region68: #{vkff_forward.1} parent=5 // pred_fallthru
      _
    %p448 = scmp.le.s32.totalorder 1, %s21
    %p449 = scmp.lt.s32.totalorder %s21, 5
    %p450 = pnand %p448, %p449
    %p451 = pneg %p450
    // Predicated region
    $region77: #{vkff_forward.1} parent=5 // pred_check
      _
    $region78: #{vkff_forward.1} parent=5 // pred_check_branch
      %453 = sbr.rel (%p450) target = $region80
    $region79: #{vkff_forward.1} parent=5 // pred_region
      %s454 = ssub.s32 %s21, 1
      %s455 = smul.u32 2, %s26
      %p456 = scmp.lt.s32.totalorder %s455, 7
      %s457 = scalar_select %p456, %s455, 7
      %s458 = smul.addr %s457, 8
      %s459 = scalar_lea.vmem %s0, %s458
      %p460 = pneg %p47
      %p461 = pneg %p44
      %s462 = smul.u32 2, %s26
      %p463 = scmp.lt.s32.totalorder %s462, 7
      %s464 = scalar_select %p463, %s462, 7
      %s465 = smul.addr %s464, 8
      %s466 = scalar_lea.vmem %s1, %s465
      %p467 = pneg %p73
      %p468 = pneg %p70
      %p469 = pneg %p94
      %p470 = pneg %p91
      %p471 = pneg %p115
      %p472 = pneg %p112
      %p473 = pneg %p136
      %p474 = pneg %p133
      %p475 = pneg %p157
      %p476 = pneg %p154
      %p477 = pneg %p178
      %p478 = pneg %p175
      %p479 = pneg %p199
      %p480 = pneg %p196
      %p481 = pneg %p220
      %p482 = pneg %p217
      %p483 = pneg %p241
      %p484 = pneg %p238
      %p485 = pneg %p262
      %p486 = pneg %p259
      %p487 = pneg %p283
      %p488 = pneg %p280
      %p489 = pneg %p304
      %p490 = pneg %p301
      %p491 = pneg %p325
      %p492 = pneg %p322
      %p493 = pneg %p346
      %p494 = pneg %p343
      %p495 = pneg %p372
      %p496 = pneg %p369
      %s497 = smul.u32 2, %s26
      %p498 = scmp.lt.s32.totalorder %s497, 7
      %s499 = scalar_select %p498, %s497, 7
      %s500 = smul.addr %s499, 8
      %s501 = scalar_lea.vmem %s15, %s500
      %s502 = smul.u32 2, %s26
      %p503 = scmp.lt.s32.totalorder %s502, 7
      %s504 = scalar_select %p503, %s502, 7
      %s505 = smul.addr %s504, 8
      %s506 = scalar_lea.vmem %s0, %s505
      %s507 = smul.u32 2, %s26
      %s508 = smul.u32 2, %s26
      %p509 = scmp.lt.s32.totalorder %s508, 7
      %s510 = scalar_select %p509, %s508, 7
      %s511 = smul.addr %s510, 8
      %s512 = scalar_lea.vmem %s1, %s511
      %s513 = smul.u32 2, %s26
      %s514 = smul.u32 2, %s26
      %p515 = scmp.lt.s32.totalorder %s514, 7
      %s516 = scalar_select %p515, %s514, 7
      %s517 = smul.addr %s516, 8
      %s518 = scalar_lea.vmem %s15, %s517
      %s519 = smul.u32 2, %s26
      %v521 = vld [vmem:[%s506] sm:$0xff]
      %v522 = vld [vmem:[%s506 + $0x8] sm:$0xff]
      %v523 = vpack.c.bf16 %v522, %v521
      %v524 = vld [vmem:[%s512] sm:$0xff]
      %v525 = vld [vmem:[%s512 + $0x8] sm:$0xff]
      %v526 = vadd.f32 %v521, %v524
      %v527 = vadd.f32 %v522, %v525
      %v528 = vpack.c.bf16 %v527, %v526
      %v529 = vld [vmem:[%s2] sm:$0xff]
      %v530 = vld [vmem:[%s2 + $0x8] sm:$0xff]
      %v531 = vld [vmem:[%s2 + $0x10] sm:$0xff]
      %v532 = vld [vmem:[%s2 + $0x18] sm:$0xff]
      %v533 = vld [vmem:[%s2 + $0x20] sm:$0xff]
      %v534 = vld [vmem:[%s2 + $0x28] sm:$0xff]
      %v535 = vld [vmem:[%s2 + $0x30] sm:$0xff]
      %v536 = vld [vmem:[%s2 + $0x38] sm:$0xff]
      %v537 = vld [vmem:[%s3] sm:$0x3]
      %v539 = vlaneseq
      %v540 = vshrl.u32 %v539, 7
      %v541 = vsub.s32 0, %v540
      %v542 = vrot.slane %v537, %v541
      %v543 = vlaneseq
      %v544 = vshrl.u32 %v543, 7
      %v545 = vsub.s32 1, %v544
      %v546 = vrot.slane %v537, %v545
      %v557 = vunpack.c.l.b16 %v529
      %v558 = vunpack.c.h.b16 %v529
      %v559 = vunpack.c.l.b16 %v530
      %v560 = vunpack.c.h.b16 %v530
      %v561 = vunpack.c.l.b16 %v531
      %v562 = vunpack.c.h.b16 %v531
      %v563 = vunpack.c.l.b16 %v532
      %v564 = vunpack.c.h.b16 %v532
      %v565 = vunpack.c.l.b16 %v533
      %v566 = vunpack.c.h.b16 %v533
      %v567 = vunpack.c.l.b16 %v534
      %v568 = vunpack.c.h.b16 %v534
      %v569 = vunpack.c.l.b16 %v535
      %v570 = vunpack.c.h.b16 %v535
      %v571 = vunpack.c.l.b16 %v536
      %v572 = vunpack.c.h.b16 %v536
      %v573 = vpack.c.b16 %v559, %v557
      %v574 = vpack.c.b16 %v560, %v558
      %v575 = vpack.c.b16 %v563, %v561
      %v576 = vpack.c.b16 %v564, %v562
      %v577 = vpack.c.b16 %v567, %v565
      %v578 = vpack.c.b16 %v568, %v566
      %v579 = vpack.c.b16 %v571, %v569
      %v580 = vpack.c.b16 %v572, %v570
      %vm589 = vcmask 523264
      %v591 = vsel %vm589, %v523, 0
      %593 = vmatprep.subr.bf16.mxu0 0
      %594 = vmatpush1.bf16.msra.mxu0 0
      %595 = vmatprep.subr.bf16.mxu0 0
      %596 = vmatpush1.bf16.msra.mxu0 0
      %597 = vmatprep.subr.bf16.mxu0 0
      %598 = vmatpush1.bf16.msra.mxu0 0
      %599 = vmatprep.subr.bf16.mxu0 0
      %600 = vmatpush1.bf16.msra.mxu0 0
      %601 = vmatprep.subr.bf16.mxu0 %v580
      %602 = vmatpush1.bf16.msra.mxu0 %v579
      %603 = vmatprep.subr.bf16.mxu0 %v578
      %604 = vmatpush1.bf16.msra.mxu0 %v577
      %605 = vmatprep.subr.bf16.mxu0 %v576
      %606 = vmatpush1.bf16.msra.mxu0 %v575
      %607 = vmatprep.subr.bf16.mxu0 %v574
      %608 = vmatpush1.bf16.msra.mxu0 %v573
      %609 = vmatprep.subr.bf16.mxu0 0
      %610 = vmatpush2.bf16.msra.mxu0 0
      %611 = vmatprep.subr.bf16.mxu0 0
      %612 = vmatpush2.bf16.msra.mxu0 0
      %613 = vmatprep.subr.bf16.mxu0 0
      %614 = vmatpush2.bf16.msra.mxu0 0
      %615 = vmatprep.subr.bf16.mxu0 0
      %616 = vmatpush2.bf16.msra.mxu0 0
      %617 = vmatprep.subr.bf16.mxu0 0
      %618 = vmatpush2.bf16.msra.mxu0 0
      %619 = vmatprep.subr.bf16.mxu0 0
      %620 = vmatpush2.bf16.msra.mxu0 0
      %621 = vmatprep.subr.bf16.mxu0 0
      %622 = vmatpush2.bf16.msra.mxu0 0
      %623 = vmatprep.subr.bf16.mxu0 0
      %624 = vmatpush2.bf16.msra.mxu0 0
      %625 = vmatprep.mubr.bf16.mxu0 0
      %626 = vmatmul.mubr.bf16.gmra.mxu0 %v591
      %v627 = vpop.f32.mrf.mxu0
      %v628 = vadd.f32 %v542, %v627
      %v629 = vpop.f32.mrf.mxu0
      %v630 = vadd.f32 %v546, %v629
      %v631 = vpop.f32.mrf.mxu0
      %v632 = vadd.f32 %v542, %v631
      %v633 = vpop.f32.mrf.mxu0
      %v634 = vadd.f32 %v546, %v633
      %635 = vdwg.mxu0
      %v636 = vpack.c.bf16 %v628, %v628
      %v637 = vpack.c.bf16 %v632, %v632
      %v638 = vpack.c.bf16 %v630, %v630
      %v639 = vpack.c.bf16 %v634, %v634
      %641 = vrot.lane.b32.xlu0 %v636, 64
      %v642 = vpop.permute.xlu0 %641
      %vm643 = vcmask 64512
      %v645 = vsel %vm643, %v636, 0
      %v648 = vsel %vm643, %v642, 0
      %650 = vmatprep.subr.bf16.mxu0 0
      %651 = vmatpush1.bf16.xpose.msra.mxu0 0
      %652 = vmatprep.subr.bf16.mxu0 0
      %653 = vmatpush1.bf16.xpose.msra.mxu0 0
      %654 = vmatprep.subr.bf16.mxu0 0
      %655 = vmatpush1.bf16.xpose.msra.mxu0 0
      %656 = vmatprep.subr.bf16.mxu0 0
      %657 = vmatpush1.bf16.xpose.msra.mxu0 0
      %658 = vmatprep.subr.bf16.mxu0 0
      %659 = vmatpush1.bf16.xpose.msra.mxu0 0
      %660 = vmatprep.subr.bf16.mxu0 0
      %661 = vmatpush1.bf16.xpose.msra.mxu0 0
      %662 = vmatprep.subr.bf16.mxu0 0
      %663 = vmatpush1.bf16.xpose.msra.mxu0 0
      %664 = vmatprep.subr.bf16.mxu0 0
      %665 = vmatpush1.bf16.xpose.msra.mxu0 %v648
      %666 = vmatprep.subr.bf16.mxu0 0
      %667 = vmatpush2.bf16.xpose.msra.mxu0 0
      %668 = vmatprep.subr.bf16.mxu0 0
      %669 = vmatpush2.bf16.xpose.msra.mxu0 0
      %670 = vmatprep.subr.bf16.mxu0 0
      %671 = vmatpush2.bf16.xpose.msra.mxu0 0
      %672 = vmatprep.subr.bf16.mxu0 0
      %673 = vmatpush2.bf16.xpose.msra.mxu0 0
      %674 = vmatprep.subr.bf16.mxu0 0
      %675 = vmatpush2.bf16.xpose.msra.mxu0 0
      %676 = vmatprep.subr.bf16.mxu0 0
      %677 = vmatpush2.bf16.xpose.msra.mxu0 0
      %678 = vmatprep.subr.bf16.mxu0 0
      %679 = vmatpush2.bf16.xpose.msra.mxu0 0
      %680 = vmatprep.subr.bf16.mxu0 0
      %681 = vmatpush2.bf16.xpose.msra.mxu0 0
      %682 = vmatprep.mubr.bf16.mxu0 0
      %683 = vmatmul.mubr.bf16.gmra.mxu0 %v645
      %v684 = vpop.f32.mrf.mxu0
      %v685 = vadd.f32 0.0, %v684
      %v686 = vpop.f32.mrf.mxu0
      %v687 = vpop.f32.mrf.mxu0
      %v688 = vpop.f32.mrf.mxu0
      %689 = vdwg.mxu0
      %691 = vrot.lane.b32.xlu0 %v637, 64
      %v692 = vpop.permute.xlu0 %691
      %v694 = vsel %vm643, %v637, 0
      %v697 = vsel %vm643, %v692, 0
      %699 = vmatprep.subr.bf16.mxu0 0
      %700 = vmatpush1.bf16.xpose.msra.mxu0 0
      %701 = vmatprep.subr.bf16.mxu0 0
      %702 = vmatpush1.bf16.xpose.msra.mxu0 0
      %703 = vmatprep.subr.bf16.mxu0 0
      %704 = vmatpush1.bf16.xpose.msra.mxu0 0
      %705 = vmatprep.subr.bf16.mxu0 0
      %706 = vmatpush1.bf16.xpose.msra.mxu0 0
      %707 = vmatprep.subr.bf16.mxu0 0
      %708 = vmatpush1.bf16.xpose.msra.mxu0 0
      %709 = vmatprep.subr.bf16.mxu0 0
      %710 = vmatpush1.bf16.xpose.msra.mxu0 0
      %711 = vmatprep.subr.bf16.mxu0 0
      %712 = vmatpush1.bf16.xpose.msra.mxu0 0
      %713 = vmatprep.subr.bf16.mxu0 0
      %714 = vmatpush1.bf16.xpose.msra.mxu0 %v697
      %715 = vmatprep.subr.bf16.mxu0 0
      %716 = vmatpush2.bf16.xpose.msra.mxu0 0
      %717 = vmatprep.subr.bf16.mxu0 0
      %718 = vmatpush2.bf16.xpose.msra.mxu0 0
      %719 = vmatprep.subr.bf16.mxu0 0
      %720 = vmatpush2.bf16.xpose.msra.mxu0 0
      %721 = vmatprep.subr.bf16.mxu0 0
      %722 = vmatpush2.bf16.xpose.msra.mxu0 0
      %723 = vmatprep.subr.bf16.mxu0 0
      %724 = vmatpush2.bf16.xpose.msra.mxu0 0
      %725 = vmatprep.subr.bf16.mxu0 0
      %726 = vmatpush2.bf16.xpose.msra.mxu0 0
      %727 = vmatprep.subr.bf16.mxu0 0
      %728 = vmatpush2.bf16.xpose.msra.mxu0 0
      %729 = vmatprep.subr.bf16.mxu0 0
      %730 = vmatpush2.bf16.xpose.msra.mxu0 0
      %731 = vmatprep.mubr.bf16.mxu0 0
      %732 = vmatmul.mubr.bf16.gmra.mxu0 %v694
      %v733 = vpop.f32.mrf.mxu0
      %v734 = vadd.f32 0.0, %v733
      %v735 = vpop.f32.mrf.mxu0
      %v736 = vpop.f32.mrf.mxu0
      %v737 = vpop.f32.mrf.mxu0
      %738 = vdwg.mxu0
      %v739 = vmul.f32 %v685, 0.35355338
      %v740 = vmul.f32 %v734, 0.35355338
      %v741 = vsel %vm643, %v739, -inf
      %742 = vmax.xlane.f32.xlu0 %v741
      %v743 = vpop.xlane.xlu0 %742
      %v744 = vsel %vm643, %v740, -inf
      %745 = vmax.xlane.f32.xlu0 %v744
      %v746 = vpop.xlane.xlu0 %745
      %v747 = vsub.f32 %v739, %v743
      %v748 = vsub.f32 %v740, %v746
      %v749 = vmul.f32 %v747, 1.442695
      %v750 = vpow.pop %v749
      %v751 = vmul.f32 %v748, 1.442695
      %v752 = vpow.pop %v751
      %v753 = vsel %vm643, %v750, 0.0
      %754 = vadd.xlane.f32.xlu0 %v753
      %v755 = vpop.xlane.xlu0 %754
      %v756 = vsel %vm643, %v752, 0.0
      %757 = vadd.xlane.f32.xlu0 %v756
      %v758 = vpop.xlane.xlu0 %757
      %v759 = vrcp.pop %v755
      %v760 = vrcp.pop %v758
      %v761 = vmul.f32 %v750, %v759
      %v762 = vmul.f32 %v752, %v760
      %v763 = vpack.c.bf16 %v761, %v761
      %v764 = vpack.c.bf16 %v762, %v762
      %v766 = vsel %vm643, %v763, 0
      %vm768 = vcmask 1043456
      %v770 = vsel %vm768, %v638, 0
      %772 = vmatprep.subr.bf16.mxu0 0
      %773 = vmatpush1.bf16.msra.mxu0 0
      %774 = vmatprep.subr.bf16.mxu0 0
      %775 = vmatpush1.bf16.msra.mxu0 0
      %776 = vmatprep.subr.bf16.mxu0 0
      %777 = vmatpush1.bf16.msra.mxu0 0
      %778 = vmatprep.subr.bf16.mxu0 0
      %779 = vmatpush1.bf16.msra.mxu0 0
      %780 = vmatprep.subr.bf16.mxu0 0
      %781 = vmatpush1.bf16.msra.mxu0 0
      %782 = vmatprep.subr.bf16.mxu0 0
      %783 = vmatpush1.bf16.msra.mxu0 0
      %784 = vmatprep.subr.bf16.mxu0 0
      %785 = vmatpush1.bf16.msra.mxu0 0
      %786 = vmatprep.subr.bf16.mxu0 0
      %787 = vmatpush1.bf16.msra.mxu0 %v770
      %788 = vmatprep.subr.bf16.mxu0 0
      %789 = vmatpush2.bf16.msra.mxu0 0
      %790 = vmatprep.subr.bf16.mxu0 0
      %791 = vmatpush2.bf16.msra.mxu0 0
      %792 = vmatprep.subr.bf16.mxu0 0
      %793 = vmatpush2.bf16.msra.mxu0 0
      %794 = vmatprep.subr.bf16.mxu0 0
      %795 = vmatpush2.bf16.msra.mxu0 0
      %796 = vmatprep.subr.bf16.mxu0 0
      %797 = vmatpush2.bf16.msra.mxu0 0
      %798 = vmatprep.subr.bf16.mxu0 0
      %799 = vmatpush2.bf16.msra.mxu0 0
      %800 = vmatprep.subr.bf16.mxu0 0
      %801 = vmatpush2.bf16.msra.mxu0 0
      %802 = vmatprep.subr.bf16.mxu0 0
      %803 = vmatpush2.bf16.msra.mxu0 0
      %804 = vmatprep.mubr.bf16.mxu0 0
      %805 = vmatmul.mubr.bf16.gmra.mxu0 %v766
      %v806 = vpop.f32.mrf.mxu0
      %v807 = vadd.f32 0.0, %v806
      %v808 = vpop.f32.mrf.mxu0
      %v809 = vpop.f32.mrf.mxu0
      %v810 = vpop.f32.mrf.mxu0
      %811 = vdwg.mxu0
      %v813 = vsel %vm643, %v764, 0
      %v816 = vsel %vm768, %v639, 0
      %818 = vmatprep.subr.bf16.mxu0 0
      %819 = vmatpush1.bf16.msra.mxu0 0
      %820 = vmatprep.subr.bf16.mxu0 0
      %821 = vmatpush1.bf16.msra.mxu0 0
      %822 = vmatprep.subr.bf16.mxu0 0
      %823 = vmatpush1.bf16.msra.mxu0 0
      %824 = vmatprep.subr.bf16.mxu0 0
      %825 = vmatpush1.bf16.msra.mxu0 0
      %826 = vmatprep.subr.bf16.mxu0 0
      %827 = vmatpush1.bf16.msra.mxu0 0
      %828 = vmatprep.subr.bf16.mxu0 0
      %829 = vmatpush1.bf16.msra.mxu0 0
      %830 = vmatprep.subr.bf16.mxu0 0
      %831 = vmatpush1.bf16.msra.mxu0 0
      %832 = vmatprep.subr.bf16.mxu0 0
      %833 = vmatpush1.bf16.msra.mxu0 %v816
      %834 = vmatprep.subr.bf16.mxu0 0
      %835 = vmatpush2.bf16.msra.mxu0 0
      %836 = vmatprep.subr.bf16.mxu0 0
      %837 = vmatpush2.bf16.msra.mxu0 0
      %838 = vmatprep.subr.bf16.mxu0 0
      %839 = vmatpush2.bf16.msra.mxu0 0
      %840 = vmatprep.subr.bf16.mxu0 0
      %841 = vmatpush2.bf16.msra.mxu0 0
      %842 = vmatprep.subr.bf16.mxu0 0
      %843 = vmatpush2.bf16.msra.mxu0 0
      %844 = vmatprep.subr.bf16.mxu0 0
      %845 = vmatpush2.bf16.msra.mxu0 0
      %846 = vmatprep.subr.bf16.mxu0 0
      %847 = vmatpush2.bf16.msra.mxu0 0
      %848 = vmatprep.subr.bf16.mxu0 0
      %849 = vmatpush2.bf16.msra.mxu0 0
      %850 = vmatprep.mubr.bf16.mxu0 0
      %851 = vmatmul.mubr.bf16.gmra.mxu0 %v813
      %v852 = vpop.f32.mrf.mxu0
      %v853 = vadd.f32 0.0, %v852
      %v854 = vpop.f32.mrf.mxu0
      %v855 = vpop.f32.mrf.mxu0
      %v856 = vpop.f32.mrf.mxu0
      %857 = vdwg.mxu0
      %858 = vrot.lane.b32.xlu0 %v636, 120
      %v859 = vpop.permute.xlu0 %858
      %860 = vrot.lane.b32.xlu0 %v636, 56
      %v861 = vpop.permute.xlu0 %860
      %v863 = vsel %vm643, %v859, 0
      %v866 = vsel %vm643, %v861, 0
      %868 = vmatprep.subr.bf16.mxu0 0
      %869 = vmatpush1.bf16.xpose.msra.mxu0 0
      %870 = vmatprep.subr.bf16.mxu0 0
      %871 = vmatpush1.bf16.xpose.msra.mxu0 0
      %872 = vmatprep.subr.bf16.mxu0 0
      %873 = vmatpush1.bf16.xpose.msra.mxu0 0
      %874 = vmatprep.subr.bf16.mxu0 0
      %875 = vmatpush1.bf16.xpose.msra.mxu0 0
      %876 = vmatprep.subr.bf16.mxu0 0
      %877 = vmatpush1.bf16.xpose.msra.mxu0 0
      %878 = vmatprep.subr.bf16.mxu0 0
      %879 = vmatpush1.bf16.xpose.msra.mxu0 0
      %880 = vmatprep.subr.bf16.mxu0 0
      %881 = vmatpush1.bf16.xpose.msra.mxu0 0
      %882 = vmatprep.subr.bf16.mxu0 0
      %883 = vmatpush1.bf16.xpose.msra.mxu0 %v866
      %884 = vmatprep.subr.bf16.mxu0 0
      %885 = vmatpush2.bf16.xpose.msra.mxu0 0
      %886 = vmatprep.subr.bf16.mxu0 0
      %887 = vmatpush2.bf16.xpose.msra.mxu0 0
      %888 = vmatprep.subr.bf16.mxu0 0
      %889 = vmatpush2.bf16.xpose.msra.mxu0 0
      %890 = vmatprep.subr.bf16.mxu0 0
      %891 = vmatpush2.bf16.xpose.msra.mxu0 0
      %892 = vmatprep.subr.bf16.mxu0 0
      %893 = vmatpush2.bf16.xpose.msra.mxu0 0
      %894 = vmatprep.subr.bf16.mxu0 0
      %895 = vmatpush2.bf16.xpose.msra.mxu0 0
      %896 = vmatprep.subr.bf16.mxu0 0
      %897 = vmatpush2.bf16.xpose.msra.mxu0 0
      %898 = vmatprep.subr.bf16.mxu0 0
      %899 = vmatpush2.bf16.xpose.msra.mxu0 0
      %900 = vmatprep.mubr.bf16.mxu0 0
      %901 = vmatmul.mubr.bf16.gmra.mxu0 %v863
      %v902 = vpop.f32.mrf.mxu0
      %v903 = vadd.f32 0.0, %v902
      %v904 = vpop.f32.mrf.mxu0
      %v905 = vpop.f32.mrf.mxu0
      %v906 = vpop.f32.mrf.mxu0
      %907 = vdwg.mxu0
      %908 = vrot.lane.b32.xlu0 %v637, 120
      %v909 = vpop.permute.xlu0 %908
      %910 = vrot.lane.b32.xlu0 %v637, 56
      %v911 = vpop.permute.xlu0 %910
      %v913 = vsel %vm643, %v909, 0
      %v916 = vsel %vm643, %v911, 0
      %918 = vmatprep.subr.bf16.mxu0 0
      %919 = vmatpush1.bf16.xpose.msra.mxu0 0
      %920 = vmatprep.subr.bf16.mxu0 0
      %921 = vmatpush1.bf16.xpose.msra.mxu0 0
      %922 = vmatprep.subr.bf16.mxu0 0
      %923 = vmatpush1.bf16.xpose.msra.mxu0 0
      %924 = vmatprep.subr.bf16.mxu0 0
      %925 = vmatpush1.bf16.xpose.msra.mxu0 0
      %926 = vmatprep.subr.bf16.mxu0 0
      %927 = vmatpush1.bf16.xpose.msra.mxu0 0
      %928 = vmatprep.subr.bf16.mxu0 0
      %929 = vmatpush1.bf16.xpose.msra.mxu0 0
      %930 = vmatprep.subr.bf16.mxu0 0
      %931 = vmatpush1.bf16.xpose.msra.mxu0 0
      %932 = vmatprep.subr.bf16.mxu0 0
      %933 = vmatpush1.bf16.xpose.msra.mxu0 %v916
      %934 = vmatprep.subr.bf16.mxu0 0
      %935 = vmatpush2.bf16.xpose.msra.mxu0 0
      %936 = vmatprep.subr.bf16.mxu0 0
      %937 = vmatpush2.bf16.xpose.msra.mxu0 0
      %938 = vmatprep.subr.bf16.mxu0 0
      %939 = vmatpush2.bf16.xpose.msra.mxu0 0
      %940 = vmatprep.subr.bf16.mxu0 0
      %941 = vmatpush2.bf16.xpose.msra.mxu0 0
      %942 = vmatprep.subr.bf16.mxu0 0
      %943 = vmatpush2.bf16.xpose.msra.mxu0 0
      %944 = vmatprep.subr.bf16.mxu0 0
      %945 = vmatpush2.bf16.xpose.msra.mxu0 0
      %946 = vmatprep.subr.bf16.mxu0 0
      %947 = vmatpush2.bf16.xpose.msra.mxu0 0
      %948 = vmatprep.subr.bf16.mxu0 0
      %949 = vmatpush2.bf16.xpose.msra.mxu0 0
      %950 = vmatprep.mubr.bf16.mxu0 0
      %951 = vmatmul.mubr.bf16.gmra.mxu0 %v913
      %v952 = vpop.f32.mrf.mxu0
      %v953 = vadd.f32 0.0, %v952
      %v954 = vpop.f32.mrf.mxu0
      %v955 = vpop.f32.mrf.mxu0
      %v956 = vpop.f32.mrf.mxu0
      %957 = vdwg.mxu0
      %v958 = vmul.f32 %v903, 0.35355338
      %v959 = vmul.f32 %v953, 0.35355338
      %v960 = vsel %vm643, %v958, -inf
      %961 = vmax.xlane.f32.xlu0 %v960
      %v962 = vpop.xlane.xlu0 %961
      %v963 = vsel %vm643, %v959, -inf
      %964 = vmax.xlane.f32.xlu0 %v963
      %v965 = vpop.xlane.xlu0 %964
      %v966 = vsub.f32 %v958, %v962
      %v967 = vsub.f32 %v959, %v965
      %v968 = vmul.f32 %v966, 1.442695
      %v969 = vpow.pop %v968
      %v970 = vmul.f32 %v967, 1.442695
      %v971 = vpow.pop %v970
      %v972 = vsel %vm643, %v969, 0.0
      %973 = vadd.xlane.f32.xlu0 %v972
      %v974 = vpop.xlane.xlu0 %973
      %v975 = vsel %vm643, %v971, 0.0
      %976 = vadd.xlane.f32.xlu0 %v975
      %v977 = vpop.xlane.xlu0 %976
      %v978 = vrcp.pop %v974
      %v979 = vrcp.pop %v977
      %v980 = vmul.f32 %v969, %v978
      %v981 = vmul.f32 %v971, %v979
      %v982 = vpack.c.bf16 %v980, %v980
      %v983 = vpack.c.bf16 %v981, %v981
      %985 = vrot.lane.b32.xlu0 %v638, 120
      %v986 = vpop.permute.xlu0 %985
      %v988 = vsel %vm643, %v982, 0
      %v991 = vsel %vm768, %v986, 0
      %993 = vmatprep.subr.bf16.mxu0 0
      %994 = vmatpush1.bf16.msra.mxu0 0
      %995 = vmatprep.subr.bf16.mxu0 0
      %996 = vmatpush1.bf16.msra.mxu0 0
      %997 = vmatprep.subr.bf16.mxu0 0
      %998 = vmatpush1.bf16.msra.mxu0 0
      %999 = vmatprep.subr.bf16.mxu0 0
      %1000 = vmatpush1.bf16.msra.mxu0 0
      %1001 = vmatprep.subr.bf16.mxu0 0
      %1002 = vmatpush1.bf16.msra.mxu0 0
      %1003 = vmatprep.subr.bf16.mxu0 0
      %1004 = vmatpush1.bf16.msra.mxu0 0
      %1005 = vmatprep.subr.bf16.mxu0 0
      %1006 = vmatpush1.bf16.msra.mxu0 0
      %1007 = vmatprep.subr.bf16.mxu0 0
      %1008 = vmatpush1.bf16.msra.mxu0 %v991
      %1009 = vmatprep.subr.bf16.mxu0 0
      %1010 = vmatpush2.bf16.msra.mxu0 0
      %1011 = vmatprep.subr.bf16.mxu0 0
      %1012 = vmatpush2.bf16.msra.mxu0 0
      %1013 = vmatprep.subr.bf16.mxu0 0
      %1014 = vmatpush2.bf16.msra.mxu0 0
      %1015 = vmatprep.subr.bf16.mxu0 0
      %1016 = vmatpush2.bf16.msra.mxu0 0
      %1017 = vmatprep.subr.bf16.mxu0 0
      %1018 = vmatpush2.bf16.msra.mxu0 0
      %1019 = vmatprep.subr.bf16.mxu0 0
      %1020 = vmatpush2.bf16.msra.mxu0 0
      %1021 = vmatprep.subr.bf16.mxu0 0
      %1022 = vmatpush2.bf16.msra.mxu0 0
      %1023 = vmatprep.subr.bf16.mxu0 0
      %1024 = vmatpush2.bf16.msra.mxu0 0
      %1025 = vmatprep.mubr.bf16.mxu0 0
      %1026 = vmatmul.mubr.bf16.gmra.mxu0 %v988
      %v1027 = vpop.f32.mrf.mxu0
      %v1028 = vadd.f32 0.0, %v1027
      %v1029 = vpop.f32.mrf.mxu0
      %v1030 = vpop.f32.mrf.mxu0
      %v1031 = vpop.f32.mrf.mxu0
      %1032 = vdwg.mxu0
      %1034 = vrot.lane.b32.xlu0 %v639, 120
      %v1035 = vpop.permute.xlu0 %1034
      %v1037 = vsel %vm643, %v983, 0
      %v1040 = vsel %vm768, %v1035, 0
      %1042 = vmatprep.subr.bf16.mxu0 0
      %1043 = vmatpush1.bf16.msra.mxu0 0
      %1044 = vmatprep.subr.bf16.mxu0 0
      %1045 = vmatpush1.bf16.msra.mxu0 0
      %1046 = vmatprep.subr.bf16.mxu0 0
      %1047 = vmatpush1.bf16.msra.mxu0 0
      %1048 = vmatprep.subr.bf16.mxu0 0
      %1049 = vmatpush1.bf16.msra.mxu0 0
      %1050 = vmatprep.subr.bf16.mxu0 0
      %1051 = vmatpush1.bf16.msra.mxu0 0
      %1052 = vmatprep.subr.bf16.mxu0 0
      %1053 = vmatpush1.bf16.msra.mxu0 0
      %1054 = vmatprep.subr.bf16.mxu0 0
      %1055 = vmatpush1.bf16.msra.mxu0 0
      %1056 = vmatprep.subr.bf16.mxu0 0
      %1057 = vmatpush1.bf16.msra.mxu0 %v1040
      %1058 = vmatprep.subr.bf16.mxu0 0
      %1059 = vmatpush2.bf16.msra.mxu0 0
      %1060 = vmatprep.subr.bf16.mxu0 0
      %1061 = vmatpush2.bf16.msra.mxu0 0
      %1062 = vmatprep.subr.bf16.mxu0 0
      %1063 = vmatpush2.bf16.msra.mxu0 0
      %1064 = vmatprep.subr.bf16.mxu0 0
      %1065 = vmatpush2.bf16.msra.mxu0 0
      %1066 = vmatprep.subr.bf16.mxu0 0
      %1067 = vmatpush2.bf16.msra.mxu0 0
      %1068 = vmatprep.subr.bf16.mxu0 0
      %1069 = vmatpush2.bf16.msra.mxu0 0
      %1070 = vmatprep.subr.bf16.mxu0 0
      %1071 = vmatpush2.bf16.msra.mxu0 0
      %1072 = vmatprep.subr.bf16.mxu0 0
      %1073 = vmatpush2.bf16.msra.mxu0 0
      %1074 = vmatprep.mubr.bf16.mxu0 0
      %1075 = vmatmul.mubr.bf16.gmra.mxu0 %v1037
      %v1076 = vpop.f32.mrf.mxu0
      %v1077 = vadd.f32 0.0, %v1076
      %v1078 = vpop.f32.mrf.mxu0
      %v1079 = vpop.f32.mrf.mxu0
      %v1080 = vpop.f32.mrf.mxu0
      %1081 = vdwg.mxu0
      %1082 = vrot.lane.b32.xlu0 %v636, 112
      %v1083 = vpop.permute.xlu0 %1082
      %1084 = vrot.lane.b32.xlu0 %v636, 48
      %v1085 = vpop.permute.xlu0 %1084
      %v1087 = vsel %vm643, %v1083, 0
      %v1090 = vsel %vm643, %v1085, 0
      %1092 = vmatprep.subr.bf16.mxu0 0
      %1093 = vmatpush1.bf16.xpose.msra.mxu0 0
      %1094 = vmatprep.subr.bf16.mxu0 0
      %1095 = vmatpush1.bf16.xpose.msra.mxu0 0
      %1096 = vmatprep.subr.bf16.mxu0 0
      %1097 = vmatpush1.bf16.xpose.msra.mxu0 0
      %1098 = vmatprep.subr.bf16.mxu0 0
      %1099 = vmatpush1.bf16.xpose.msra.mxu0 0
      %1100 = vmatprep.subr.bf16.mxu0 0
      %1101 = vmatpush1.bf16.xpose.msra.mxu0 0
      %1102 = vmatprep.subr.bf16.mxu0 0
      %1103 = vmatpush1.bf16.xpose.msra.mxu0 0
      %1104 = vmatprep.subr.bf16.mxu0 0
      %1105 = vmatpush1.bf16.xpose.msra.mxu0 0
      %1106 = vmatprep.subr.bf16.mxu0 0
      %1107 = vmatpush1.bf16.xpose.msra.mxu0 %v1090
      %1108 = vmatprep.subr.bf16.mxu0 0
      %1109 = vmatpush2.bf16.xpose.msra.mxu0 0
      %1110 = vmatprep.subr.bf16.mxu0 0
      %1111 = vmatpush2.bf16.xpose.msra.mxu0 0
      %1112 = vmatprep.subr.bf16.mxu0 0
      %1113 = vmatpush2.bf16.xpose.msra.mxu0 0
      %1114 = vmatprep.subr.bf16.mxu0 0
      %1115 = vmatpush2.bf16.xpose.msra.mxu0 0
      %1116 = vmatprep.subr.bf16.mxu0 0
      %1117 = vmatpush2.bf16.xpose.msra.mxu0 0
      %1118 = vmatprep.subr.bf16.mxu0 0
      %1119 = vmatpush2.bf16.xpose.msra.mxu0 0
      %1120 = vmatprep.subr.bf16.mxu0 0
      %1121 = vmatpush2.bf16.xpose.msra.mxu0 0
      %1122 = vmatprep.subr.bf16.mxu0 0
      %1123 = vmatpush2.bf16.xpose.msra.mxu0 0
      %1124 = vmatprep.mubr.bf16.mxu0 0
      %1125 = vmatmul.mubr.bf16.gmra.mxu0 %v1087
      %v1126 = vpop.f32.mrf.mxu0
      %v1127 = vadd.f32 0.0, %v1126
      %v1128 = vpop.f32.mrf.mxu0
      %v1129 = vpop.f32.mrf.mxu0
      %v1130 = vpop.f32.mrf.mxu0
      %1131 = vdwg.mxu0
      %1132 = vrot.lane.b32.xlu0 %v637, 112
      %v1133 = vpop.permute.xlu0 %1132
      %1134 = vrot.lane.b32.xlu0 %v637, 48
      %v1135 = vpop.permute.xlu0 %1134
      %v1137 = vsel %vm643, %v1133, 0
      %v1140 = vsel %vm643, %v1135, 0
      %1142 = vmatprep.subr.bf16.mxu0 0
      %1143 = vmatpush1.bf16.xpose.msra.mxu0 0
      %1144 = vmatprep.subr.bf16.mxu0 0
      %1145 = vmatpush1.bf16.xpose.msra.mxu0 0
      %1146 = vmatprep.subr.bf16.mxu0 0
      %1147 = vmatpush1.bf16.xpose.msra.mxu0 0
      %1148 = vmatprep.subr.bf16.mxu0 0
      %1149 = vmatpush1.bf16.xpose.msra.mxu0 0
      %1150 = vmatprep.subr.bf16.mxu0 0
      %1151 = vmatpush1.bf16.xpose.msra.mxu0 0
      %1152 = vmatprep.subr.bf16.mxu0 0
      %1153 = vmatpush1.bf16.xpose.msra.mxu0 0
      %1154 = vmatprep.subr.bf16.mxu0 0
      %1155 = vmatpush1.bf16.xpose.msra.mxu0 0
      %1156 = vmatprep.subr.bf16.mxu0 0
      %1157 = vmatpush1.bf16.xpose.msra.mxu0 %v1140
      %1158 = vmatprep.subr.bf16.mxu0 0
      %1159 = vmatpush2.bf16.xpose.msra.mxu0 0
      %1160 = vmatprep.subr.bf16.mxu0 0
      %1161 = vmatpush2.bf16.xpose.msra.mxu0 0
      %1162 = vmatprep.subr.bf16.mxu0 0
      %1163 = vmatpush2.bf16.xpose.msra.mxu0 0
      %1164 = vmatprep.subr.bf16.mxu0 0
      %1165 = vmatpush2.bf16.xpose.msra.mxu0 0
      %1166 = vmatprep.subr.bf16.mxu0 0
      %1167 = vmatpush2.bf16.xpose.msra.mxu0 0
      %1168 = vmatprep.subr.bf16.mxu0 0
      %1169 = vmatpush2.bf16.xpose.msra.mxu0 0
      %1170 = vmatprep.subr.bf16.mxu0 0
      %1171 = vmatpush2.bf16.xpose.msra.mxu0 0
      %1172 = vmatprep.subr.bf16.mxu0 0
      %1173 = vmatpush2.bf16.xpose.msra.mxu0 0
      %1174 = vmatprep.mubr.bf16.mxu0 0
      %1175 = vmatmul.mubr.bf16.gmra.mxu0 %v1137
      %v1176 = vpop.f32.mrf.mxu0
      %v1177 = vadd.f32 0.0, %v1176
      %v1178 = vpop.f32.mrf.mxu0
      %v1179 = vpop.f32.mrf.mxu0
      %v1180 = vpop.f32.mrf.mxu0
      %1181 = vdwg.mxu0
      %v1182 = vmul.f32 %v1127, 0.35355338
      %v1183 = vmul.f32 %v1177, 0.35355338
      %v1184 = vsel %vm643, %v1182, -inf
      %1185 = vmax.xlane.f32.xlu0 %v1184
      %v1186 = vpop.xlane.xlu0 %1185
      %v1187 = vsel %vm643, %v1183, -inf
      %1188 = vmax.xlane.f32.xlu0 %v1187
      %v1189 = vpop.xlane.xlu0 %1188
      %v1190 = vsub.f32 %v1182, %v1186
      %v1191 = vsub.f32 %v1183, %v1189
      %v1192 = vmul.f32 %v1190, 1.442695
      %v1193 = vpow.pop %v1192
      %v1194 = vmul.f32 %v1191, 1.442695
      %v1195 = vpow.pop %v1194
      %v1196 = vsel %vm643, %v1193, 0.0
      %1197 = vadd.xlane.f32.xlu0 %v1196
      %v1198 = vpop.xlane.xlu0 %1197
      %v1199 = vsel %vm643, %v1195, 0.0
      %1200 = vadd.xlane.f32.xlu0 %v1199
      %v1201 = vpop.xlane.xlu0 %1200
      %v1202 = vrcp.pop %v1198
      %v1203 = vrcp.pop %v1201
      %v1204 = vmul.f32 %v1193, %v1202
      %v1205 = vmul.f32 %v1195, %v1203
      %v1206 = vpack.c.bf16 %v1204, %v1204
      %v1207 = vpack.c.bf16 %v1205, %v1205
      %1208 = vrot.lane.b32.xlu0 %v638, 112
      %v1209 = vpop.permute.xlu0 %1208
      %v1211 = vsel %vm643, %v1206, 0
      %v1214 = vsel %vm768, %v1209, 0
      %1216 = vmatprep.subr.bf16.mxu0 0
      %1217 = vmatpush1.bf16.msra.mxu0 0
      %1218 = vmatprep.subr.bf16.mxu0 0
      %1219 = vmatpush1.bf16.msra.mxu0 0
      %1220 = vmatprep.subr.bf16.mxu0 0
      %1221 = vmatpush1.bf16.msra.mxu0 0
      %1222 = vmatprep.subr.bf16.mxu0 0
      %1223 = vmatpush1.bf16.msra.mxu0 0
      %1224 = vmatprep.subr.bf16.mxu0 0
      %1225 = vmatpush1.bf16.msra.mxu0 0
      %1226 = vmatprep.subr.bf16.mxu0 0
      %1227 = vmatpush1.bf16.msra.mxu0 0
      %1228 = vmatprep.subr.bf16.mxu0 0
      %1229 = vmatpush1.bf16.msra.mxu0 0
      %1230 = vmatprep.subr.bf16.mxu0 0
      %1231 = vmatpush1.bf16.msra.mxu0 %v1214
      %1232 = vmatprep.subr.bf16.mxu0 0
      %1233 = vmatpush2.bf16.msra.mxu0 0
      %1234 = vmatprep.subr.bf16.mxu0 0
      %1235 = vmatpush2.bf16.msra.mxu0 0
      %1236 = vmatprep.subr.bf16.mxu0 0
      %1237 = vmatpush2.bf16.msra.mxu0 0
      %1238 = vmatprep.subr.bf16.mxu0 0
      %1239 = vmatpush2.bf16.msra.mxu0 0
      %1240 = vmatprep.subr.bf16.mxu0 0
      %1241 = vmatpush2.bf16.msra.mxu0 0
      %1242 = vmatprep.subr.bf16.mxu0 0
      %1243 = vmatpush2.bf16.msra.mxu0 0
      %1244 = vmatprep.subr.bf16.mxu0 0
      %1245 = vmatpush2.bf16.msra.mxu0 0
      %1246 = vmatprep.subr.bf16.mxu0 0
      %1247 = vmatpush2.bf16.msra.mxu0 0
      %1248 = vmatprep.mubr.bf16.mxu0 0
      %1249 = vmatmul.mubr.bf16.gmra.mxu0 %v1211
      %v1250 = vpop.f32.mrf.mxu0
      %v1251 = vadd.f32 0.0, %v1250
      %v1252 = vpop.f32.mrf.mxu0
      %v1253 = vpop.f32.mrf.mxu0
      %v1254 = vpop.f32.mrf.mxu0
      %1255 = vdwg.mxu0
      %1256 = vrot.lane.b32.xlu0 %v639, 112
      %v1257 = vpop.permute.xlu0 %1256
      %v1259 = vsel %vm643, %v1207, 0
      %v1262 = vsel %vm768, %v1257, 0
      %1264 = vmatprep.subr.bf16.mxu0 0
      %1265 = vmatpush1.bf16.msra.mxu0 0
      %1266 = vmatprep.subr.bf16.mxu0 0
      %1267 = vmatpush1.bf16.msra.mxu0 0
      %1268 = vmatprep.subr.bf16.mxu0 0
      %1269 = vmatpush1.bf16.msra.mxu0 0
      %1270 = vmatprep.subr.bf16.mxu0 0
      %1271 = vmatpush1.bf16.msra.mxu0 0
      %1272 = vmatprep.subr.bf16.mxu0 0
      %1273 = vmatpush1.bf16.msra.mxu0 0
      %1274 = vmatprep.subr.bf16.mxu0 0
      %1275 = vmatpush1.bf16.msra.mxu0 0
      %1276 = vmatprep.subr.bf16.mxu0 0
      %1277 = vmatpush1.bf16.msra.mxu0 0
      %1278 = vmatprep.subr.bf16.mxu0 0
      %1279 = vmatpush1.bf16.msra.mxu0 %v1262
      %1280 = vmatprep.subr.bf16.mxu0 0
      %1281 = vmatpush2.bf16.msra.mxu0 0
      %1282 = vmatprep.subr.bf16.mxu0 0
      %1283 = vmatpush2.bf16.msra.mxu0 0
      %1284 = vmatprep.subr.bf16.mxu0 0
      %1285 = vmatpush2.bf16.msra.mxu0 0
      %1286 = vmatprep.subr.bf16.mxu0 0
      %1287 = vmatpush2.bf16.msra.mxu0 0
      %1288 = vmatprep.subr.bf16.mxu0 0
      %1289 = vmatpush2.bf16.msra.mxu0 0
      %1290 = vmatprep.subr.bf16.mxu0 0
      %1291 = vmatpush2.bf16.msra.mxu0 0
      %1292 = vmatprep.subr.bf16.mxu0 0
      %1293 = vmatpush2.bf16.msra.mxu0 0
      %1294 = vmatprep.subr.bf16.mxu0 0
      %1295 = vmatpush2.bf16.msra.mxu0 0
      %1296 = vmatprep.mubr.bf16.mxu0 0
      %1297 = vmatmul.mubr.bf16.gmra.mxu0 %v1259
      %v1298 = vpop.f32.mrf.mxu0
      %v1299 = vadd.f32 0.0, %v1298
      %v1300 = vpop.f32.mrf.mxu0
      %v1301 = vpop.f32.mrf.mxu0
      %v1302 = vpop.f32.mrf.mxu0
      %1303 = vdwg.mxu0
      %1304 = vrot.lane.b32.xlu0 %v636, 104
      %v1305 = vpop.permute.xlu0 %1304
      %1306 = vrot.lane.b32.xlu0 %v636, 40
      %v1307 = vpop.permute.xlu0 %1306
      %v1309 = vsel %vm643, %v1305, 0
      %v1312 = vsel %vm643, %v1307, 0
      %1314 = vmatprep.subr.bf16.mxu0 0
      %1315 = vmatpush1.bf16.xpose.msra.mxu0 0
      %1316 = vmatprep.subr.bf16.mxu0 0
      %1317 = vmatpush1.bf16.xpose.msra.mxu0 0
      %1318 = vmatprep.subr.bf16.mxu0 0
      %1319 = vmatpush1.bf16.xpose.msra.mxu0 0
      %1320 = vmatprep.subr.bf16.mxu0 0
      %1321 = vmatpush1.bf16.xpose.msra.mxu0 0
      %1322 = vmatprep.subr.bf16.mxu0 0
      %1323 = vmatpush1.bf16.xpose.msra.mxu0 0
      %1324 = vmatprep.subr.bf16.mxu0 0
      %1325 = vmatpush1.bf16.xpose.msra.mxu0 0
      %1326 = vmatprep.subr.bf16.mxu0 0
      %1327 = vmatpush1.bf16.xpose.msra.mxu0 0
      %1328 = vmatprep.subr.bf16.mxu0 0
      %1329 = vmatpush1.bf16.xpose.msra.mxu0 %v1312
      %1330 = vmatprep.subr.bf16.mxu0 0
      %1331 = vmatpush2.bf16.xpose.msra.mxu0 0
      %1332 = vmatprep.subr.bf16.mxu0 0
      %1333 = vmatpush2.bf16.xpose.msra.mxu0 0
      %1334 = vmatprep.subr.bf16.mxu0 0
      %1335 = vmatpush2.bf16.xpose.msra.mxu0 0
      %1336 = vmatprep.subr.bf16.mxu0 0
      %1337 = vmatpush2.bf16.xpose.msra.mxu0 0
      %1338 = vmatprep.subr.bf16.mxu0 0
      %1339 = vmatpush2.bf16.xpose.msra.mxu0 0
      %1340 = vmatprep.subr.bf16.mxu0 0
      %1341 = vmatpush2.bf16.xpose.msra.mxu0 0
      %1342 = vmatprep.subr.bf16.mxu0 0
      %1343 = vmatpush2.bf16.xpose.msra.mxu0 0
      %1344 = vmatprep.subr.bf16.mxu0 0
      %1345 = vmatpush2.bf16.xpose.msra.mxu0 0
      %1346 = vmatprep.mubr.bf16.mxu0 0
      %1347 = vmatmul.mubr.bf16.gmra.mxu0 %v1309
      %v1348 = vpop.f32.mrf.mxu0
      %v1349 = vadd.f32 0.0, %v1348
      %v1350 = vpop.f32.mrf.mxu0
      %v1351 = vpop.f32.mrf.mxu0
      %v1352 = vpop.f32.mrf.mxu0
      %1353 = vdwg.mxu0
      %1354 = vrot.lane.b32.xlu0 %v637, 104
      %v1355 = vpop.permute.xlu0 %1354
      %1356 = vrot.lane.b32.xlu0 %v637, 40
      %v1357 = vpop.permute.xlu0 %1356
      %v1359 = vsel %vm643, %v1355, 0
      %v1362 = vsel %vm643, %v1357, 0
      %1364 = vmatprep.subr.bf16.mxu0 0
      %1365 = vmatpush1.bf16.xpose.msra.mxu0 0
      %1366 = vmatprep.subr.bf16.mxu0 0
      %1367 = vmatpush1.bf16.xpose.msra.mxu0 0
      %1368 = vmatprep.subr.bf16.mxu0 0
      %1369 = vmatpush1.bf16.xpose.msra.mxu0 0
      %1370 = vmatprep.subr.bf16.mxu0 0
      %1371 = vmatpush1.bf16.xpose.msra.mxu0 0
      %1372 = vmatprep.subr.bf16.mxu0 0
      %1373 = vmatpush1.bf16.xpose.msra.mxu0 0
      %1374 = vmatprep.subr.bf16.mxu0 0
      %1375 = vmatpush1.bf16.xpose.msra.mxu0 0
      %1376 = vmatprep.subr.bf16.mxu0 0
      %1377 = vmatpush1.bf16.xpose.msra.mxu0 0
      %1378 = vmatprep.subr.bf16.mxu0 0
      %1379 = vmatpush1.bf16.xpose.msra.mxu0 %v1362
      %1380 = vmatprep.subr.bf16.mxu0 0
      %1381 = vmatpush2.bf16.xpose.msra.mxu0 0
      %1382 = vmatprep.subr.bf16.mxu0 0
      %1383 = vmatpush2.bf16.xpose.msra.mxu0 0
      %1384 = vmatprep.subr.bf16.mxu0 0
      %1385 = vmatpush2.bf16.xpose.msra.mxu0 0
      %1386 = vmatprep.subr.bf16.mxu0 0
      %1387 = vmatpush2.bf16.xpose.msra.mxu0 0
      %1388 = vmatprep.subr.bf16.mxu0 0
      %1389 = vmatpush2.bf16.xpose.msra.mxu0 0
      %1390 = vmatprep.subr.bf16.mxu0 0
      %1391 = vmatpush2.bf16.xpose.msra.mxu0 0
      %1392 = vmatprep.subr.bf16.mxu0 0
      %1393 = vmatpush2.bf16.xpose.msra.mxu0 0
      %1394 = vmatprep.subr.bf16.mxu0 0
      %1395 = vmatpush2.bf16.xpose.msra.mxu0 0
      %1396 = vmatprep.mubr.bf16.mxu0 0
      %1397 = vmatmul.mubr.bf16.gmra.mxu0 %v1359
      %v1398 = vpop.f32.mrf.mxu0
      %v1399 = vadd.f32 0.0, %v1398
      %v1400 = vpop.f32.mrf.mxu0
      %v1401 = vpop.f32.mrf.mxu0
      %v1402 = vpop.f32.mrf.mxu0
      %1403 = vdwg.mxu0
      %v1404 = vmul.f32 %v1349, 0.35355338
      %v1405 = vmul.f32 %v1399, 0.35355338
      %v1406 = vsel %vm643, %v1404, -inf
      %1407 = vmax.xlane.f32.xlu0 %v1406
      %v1408 = vpop.xlane.xlu0 %1407
      %v1409 = vsel %vm643, %v1405, -inf
      %1410 = vmax.xlane.f32.xlu0 %v1409
      %v1411 = vpop.xlane.xlu0 %1410
      %v1412 = vsub.f32 %v1404, %v1408
      %v1413 = vsub.f32 %v1405, %v1411
      %v1414 = vmul.f32 %v1412, 1.442695
      %v1415 = vpow.pop %v1414
      %v1416 = vmul.f32 %v1413, 1.442695
      %v1417 = vpow.pop %v1416
      %v1418 = vsel %vm643, %v1415, 0.0
      %1419 = vadd.xlane.f32.xlu0 %v1418
      %v1420 = vpop.xlane.xlu0 %1419
      %v1421 = vsel %vm643, %v1417, 0.0
      %1422 = vadd.xlane.f32.xlu0 %v1421
      %v1423 = vpop.xlane.xlu0 %1422
      %v1424 = vrcp.pop %v1420
      %v1425 = vrcp.pop %v1423
      %v1426 = vmul.f32 %v1415, %v1424
      %v1427 = vmul.f32 %v1417, %v1425
      %v1428 = vpack.c.bf16 %v1426, %v1426
      %v1429 = vpack.c.bf16 %v1427, %v1427
      %1430 = vrot.lane.b32.xlu0 %v638, 104
      %v1431 = vpop.permute.xlu0 %1430
      %v1433 = vsel %vm643, %v1428, 0
      %v1436 = vsel %vm768, %v1431, 0
      %1438 = vmatprep.subr.bf16.mxu0 0
      %1439 = vmatpush1.bf16.msra.mxu0 0
      %1440 = vmatprep.subr.bf16.mxu0 0
      %1441 = vmatpush1.bf16.msra.mxu0 0
      %1442 = vmatprep.subr.bf16.mxu0 0
      %1443 = vmatpush1.bf16.msra.mxu0 0
      %1444 = vmatprep.subr.bf16.mxu0 0
      %1445 = vmatpush1.bf16.msra.mxu0 0
      %1446 = vmatprep.subr.bf16.mxu0 0
      %1447 = vmatpush1.bf16.msra.mxu0 0
      %1448 = vmatprep.subr.bf16.mxu0 0
      %1449 = vmatpush1.bf16.msra.mxu0 0
      %1450 = vmatprep.subr.bf16.mxu0 0
      %1451 = vmatpush1.bf16.msra.mxu0 0
      %1452 = vmatprep.subr.bf16.mxu0 0
      %1453 = vmatpush1.bf16.msra.mxu0 %v1436
      %1454 = vmatprep.subr.bf16.mxu0 0
      %1455 = vmatpush2.bf16.msra.mxu0 0
      %1456 = vmatprep.subr.bf16.mxu0 0
      %1457 = vmatpush2.bf16.msra.mxu0 0
      %1458 = vmatprep.subr.bf16.mxu0 0
      %1459 = vmatpush2.bf16.msra.mxu0 0
      %1460 = vmatprep.subr.bf16.mxu0 0
      %1461 = vmatpush2.bf16.msra.mxu0 0
      %1462 = vmatprep.subr.bf16.mxu0 0
      %1463 = vmatpush2.bf16.msra.mxu0 0
      %1464 = vmatprep.subr.bf16.mxu0 0
      %1465 = vmatpush2.bf16.msra.mxu0 0
      %1466 = vmatprep.subr.bf16.mxu0 0
      %1467 = vmatpush2.bf16.msra.mxu0 0
      %1468 = vmatprep.subr.bf16.mxu0 0
      %1469 = vmatpush2.bf16.msra.mxu0 0
      %1470 = vmatprep.mubr.bf16.mxu0 0
      %1471 = vmatmul.mubr.bf16.gmra.mxu0 %v1433
      %v1472 = vpop.f32.mrf.mxu0
      %v1473 = vadd.f32 0.0, %v1472
      %v1474 = vpop.f32.mrf.mxu0
      %v1475 = vpop.f32.mrf.mxu0
      %v1476 = vpop.f32.mrf.mxu0
      %1477 = vdwg.mxu0
      %1478 = vrot.lane.b32.xlu0 %v639, 104
      %v1479 = vpop.permute.xlu0 %1478
      %v1481 = vsel %vm643, %v1429, 0
      %v1484 = vsel %vm768, %v1479, 0
      %1486 = vmatprep.subr.bf16.mxu0 0
      %1487 = vmatpush1.bf16.msra.mxu0 0
      %1488 = vmatprep.subr.bf16.mxu0 0
      %1489 = vmatpush1.bf16.msra.mxu0 0
      %1490 = vmatprep.subr.bf16.mxu0 0
      %1491 = vmatpush1.bf16.msra.mxu0 0
      %1492 = vmatprep.subr.bf16.mxu0 0
      %1493 = vmatpush1.bf16.msra.mxu0 0
      %1494 = vmatprep.subr.bf16.mxu0 0
      %1495 = vmatpush1.bf16.msra.mxu0 0
      %1496 = vmatprep.subr.bf16.mxu0 0
      %1497 = vmatpush1.bf16.msra.mxu0 0
      %1498 = vmatprep.subr.bf16.mxu0 0
      %1499 = vmatpush1.bf16.msra.mxu0 0
      %1500 = vmatprep.subr.bf16.mxu0 0
      %1501 = vmatpush1.bf16.msra.mxu0 %v1484
      %1502 = vmatprep.subr.bf16.mxu0 0
      %1503 = vmatpush2.bf16.msra.mxu0 0
      %1504 = vmatprep.subr.bf16.mxu0 0
      %1505 = vmatpush2.bf16.msra.mxu0 0
      %1506 = vmatprep.subr.bf16.mxu0 0
      %1507 = vmatpush2.bf16.msra.mxu0 0
      %1508 = vmatprep.subr.bf16.mxu0 0
      %1509 = vmatpush2.bf16.msra.mxu0 0
      %1510 = vmatprep.subr.bf16.mxu0 0
      %1511 = vmatpush2.bf16.msra.mxu0 0
      %1512 = vmatprep.subr.bf16.mxu0 0
      %1513 = vmatpush2.bf16.msra.mxu0 0
      %1514 = vmatprep.subr.bf16.mxu0 0
      %1515 = vmatpush2.bf16.msra.mxu0 0
      %1516 = vmatprep.subr.bf16.mxu0 0
      %1517 = vmatpush2.bf16.msra.mxu0 0
      %1518 = vmatprep.mubr.bf16.mxu0 0
      %1519 = vmatmul.mubr.bf16.gmra.mxu0 %v1481
      %v1520 = vpop.f32.mrf.mxu0
      %v1521 = vadd.f32 0.0, %v1520
      %v1522 = vpop.f32.mrf.mxu0
      %v1523 = vpop.f32.mrf.mxu0
      %v1524 = vpop.f32.mrf.mxu0
      %1525 = vdwg.mxu0
      %1526 = vrot.lane.b32.xlu0 %v636, 96
      %v1527 = vpop.permute.xlu0 %1526
      %1528 = vrot.lane.b32.xlu0 %v636, 32
      %v1529 = vpop.permute.xlu0 %1528
      %v1531 = vsel %vm643, %v1527, 0
      %v1534 = vsel %vm643, %v1529, 0
      %1536 = vmatprep.subr.bf16.mxu0 0
      %1537 = vmatpush1.bf16.xpose.msra.mxu0 0
      %1538 = vmatprep.subr.bf16.mxu0 0
      %1539 = vmatpush1.bf16.xpose.msra.mxu0 0
      %1540 = vmatprep.subr.bf16.mxu0 0
      %1541 = vmatpush1.bf16.xpose.msra.mxu0 0
      %1542 = vmatprep.subr.bf16.mxu0 0
      %1543 = vmatpush1.bf16.xpose.msra.mxu0 0
      %1544 = vmatprep.subr.bf16.mxu0 0
      %1545 = vmatpush1.bf16.xpose.msra.mxu0 0
      %1546 = vmatprep.subr.bf16.mxu0 0
      %1547 = vmatpush1.bf16.xpose.msra.mxu0 0
      %1548 = vmatprep.subr.bf16.mxu0 0
      %1549 = vmatpush1.bf16.xpose.msra.mxu0 0
      %1550 = vmatprep.subr.bf16.mxu0 0
      %1551 = vmatpush1.bf16.xpose.msra.mxu0 %v1534
      %1552 = vmatprep.subr.bf16.mxu0 0
      %1553 = vmatpush2.bf16.xpose.msra.mxu0 0
      %1554 = vmatprep.subr.bf16.mxu0 0
      %1555 = vmatpush2.bf16.xpose.msra.mxu0 0
      %1556 = vmatprep.subr.bf16.mxu0 0
      %1557 = vmatpush2.bf16.xpose.msra.mxu0 0
      %1558 = vmatprep.subr.bf16.mxu0 0
      %1559 = vmatpush2.bf16.xpose.msra.mxu0 0
      %1560 = vmatprep.subr.bf16.mxu0 0
      %1561 = vmatpush2.bf16.xpose.msra.mxu0 0
      %1562 = vmatprep.subr.bf16.mxu0 0
      %1563 = vmatpush2.bf16.xpose.msra.mxu0 0
      %1564 = vmatprep.subr.bf16.mxu0 0
      %1565 = vmatpush2.bf16.xpose.msra.mxu0 0
      %1566 = vmatprep.subr.bf16.mxu0 0
      %1567 = vmatpush2.bf16.xpose.msra.mxu0 0
      %1568 = vmatprep.mubr.bf16.mxu0 0
      %1569 = vmatmul.mubr.bf16.gmra.mxu0 %v1531
      %v1570 = vpop.f32.mrf.mxu0
      %v1571 = vadd.f32 0.0, %v1570
      %v1572 = vpop.f32.mrf.mxu0
      %v1573 = vpop.f32.mrf.mxu0
      %v1574 = vpop.f32.mrf.mxu0
      %1575 = vdwg.mxu0
      %1576 = vrot.lane.b32.xlu0 %v637, 96
      %v1577 = vpop.permute.xlu0 %1576
      %1578 = vrot.lane.b32.xlu0 %v637, 32
      %v1579 = vpop.permute.xlu0 %1578
      %v1581 = vsel %vm643, %v1577, 0
      %v1584 = vsel %vm643, %v1579, 0
      %1586 = vmatprep.subr.bf16.mxu0 0
      %1587 = vmatpush1.bf16.xpose.msra.mxu0 0
      %1588 = vmatprep.subr.bf16.mxu0 0
      %1589 = vmatpush1.bf16.xpose.msra.mxu0 0
      %1590 = vmatprep.subr.bf16.mxu0 0
      %1591 = vmatpush1.bf16.xpose.msra.mxu0 0
      %1592 = vmatprep.subr.bf16.mxu0 0
      %1593 = vmatpush1.bf16.xpose.msra.mxu0 0
      %1594 = vmatprep.subr.bf16.mxu0 0
      %1595 = vmatpush1.bf16.xpose.msra.mxu0 0
      %1596 = vmatprep.subr.bf16.mxu0 0
      %1597 = vmatpush1.bf16.xpose.msra.mxu0 0
      %1598 = vmatprep.subr.bf16.mxu0 0
      %1599 = vmatpush1.bf16.xpose.msra.mxu0 0
      %1600 = vmatprep.subr.bf16.mxu0 0
      %1601 = vmatpush1.bf16.xpose.msra.mxu0 %v1584
      %1602 = vmatprep.subr.bf16.mxu0 0
      %1603 = vmatpush2.bf16.xpose.msra.mxu0 0
      %1604 = vmatprep.subr.bf16.mxu0 0
      %1605 = vmatpush2.bf16.xpose.msra.mxu0 0
      %1606 = vmatprep.subr.bf16.mxu0 0
      %1607 = vmatpush2.bf16.xpose.msra.mxu0 0
      %1608 = vmatprep.subr.bf16.mxu0 0
      %1609 = vmatpush2.bf16.xpose.msra.mxu0 0
      %1610 = vmatprep.subr.bf16.mxu0 0
      %1611 = vmatpush2.bf16.xpose.msra.mxu0 0
      %1612 = vmatprep.subr.bf16.mxu0 0
      %1613 = vmatpush2.bf16.xpose.msra.mxu0 0
      %1614 = vmatprep.subr.bf16.mxu0 0
      %1615 = vmatpush2.bf16.xpose.msra.mxu0 0
      %1616 = vmatprep.subr.bf16.mxu0 0
      %1617 = vmatpush2.bf16.xpose.msra.mxu0 0
      %1618 = vmatprep.mubr.bf16.mxu0 0
      %1619 = vmatmul.mubr.bf16.gmra.mxu0 %v1581
      %v1620 = vpop.f32.mrf.mxu0
      %v1621 = vadd.f32 0.0, %v1620
      %v1622 = vpop.f32.mrf.mxu0
      %v1623 = vpop.f32.mrf.mxu0
      %v1624 = vpop.f32.mrf.mxu0
      %1625 = vdwg.mxu0
      %v1626 = vmul.f32 %v1571, 0.35355338
      %v1627 = vmul.f32 %v1621, 0.35355338
      %v1628 = vsel %vm643, %v1626, -inf
      %1629 = vmax.xlane.f32.xlu0 %v1628
      %v1630 = vpop.xlane.xlu0 %1629
      %v1631 = vsel %vm643, %v1627, -inf
      %1632 = vmax.xlane.f32.xlu0 %v1631
      %v1633 = vpop.xlane.xlu0 %1632
      %v1634 = vsub.f32 %v1626, %v1630
      %v1635 = vsub.f32 %v1627, %v1633
      %v1636 = vmul.f32 %v1634, 1.442695
      %v1637 = vpow.pop %v1636
      %v1638 = vmul.f32 %v1635, 1.442695
      %v1639 = vpow.pop %v1638
      %v1640 = vsel %vm643, %v1637, 0.0
      %1641 = vadd.xlane.f32.xlu0 %v1640
      %v1642 = vpop.xlane.xlu0 %1641
      %v1643 = vsel %vm643, %v1639, 0.0
      %1644 = vadd.xlane.f32.xlu0 %v1643
      %v1645 = vpop.xlane.xlu0 %1644
      %v1646 = vrcp.pop %v1642
      %v1647 = vrcp.pop %v1645
      %v1648 = vmul.f32 %v1637, %v1646
      %v1649 = vmul.f32 %v1639, %v1647
      %v1650 = vpack.c.bf16 %v1648, %v1648
      %v1651 = vpack.c.bf16 %v1649, %v1649
      %1652 = vrot.lane.b32.xlu0 %v638, 96
      %v1653 = vpop.permute.xlu0 %1652
      %v1655 = vsel %vm643, %v1650, 0
      %v1658 = vsel %vm768, %v1653, 0
      %1660 = vmatprep.subr.bf16.mxu0 0
      %1661 = vmatpush1.bf16.msra.mxu0 0
      %1662 = vmatprep.subr.bf16.mxu0 0
      %1663 = vmatpush1.bf16.msra.mxu0 0
      %1664 = vmatprep.subr.bf16.mxu0 0
      %1665 = vmatpush1.bf16.msra.mxu0 0
      %1666 = vmatprep.subr.bf16.mxu0 0
      %1667 = vmatpush1.bf16.msra.mxu0 0
      %1668 = vmatprep.subr.bf16.mxu0 0
      %1669 = vmatpush1.bf16.msra.mxu0 0
      %1670 = vmatprep.subr.bf16.mxu0 0
      %1671 = vmatpush1.bf16.msra.mxu0 0
      %1672 = vmatprep.subr.bf16.mxu0 0
      %1673 = vmatpush1.bf16.msra.mxu0 0
      %1674 = vmatprep.subr.bf16.mxu0 0
      %1675 = vmatpush1.bf16.msra.mxu0 %v1658
      %1676 = vmatprep.subr.bf16.mxu0 0
      %1677 = vmatpush2.bf16.msra.mxu0 0
      %1678 = vmatprep.subr.bf16.mxu0 0
      %1679 = vmatpush2.bf16.msra.mxu0 0
      %1680 = vmatprep.subr.bf16.mxu0 0
      %1681 = vmatpush2.bf16.msra.mxu0 0
      %1682 = vmatprep.subr.bf16.mxu0 0
      %1683 = vmatpush2.bf16.msra.mxu0 0
      %1684 = vmatprep.subr.bf16.mxu0 0
      %1685 = vmatpush2.bf16.msra.mxu0 0
      %1686 = vmatprep.subr.bf16.mxu0 0
      %1687 = vmatpush2.bf16.msra.mxu0 0
      %1688 = vmatprep.subr.bf16.mxu0 0
      %1689 = vmatpush2.bf16.msra.mxu0 0
      %1690 = vmatprep.subr.bf16.mxu0 0
      %1691 = vmatpush2.bf16.msra.mxu0 0
      %1692 = vmatprep.mubr.bf16.mxu0 0
      %1693 = vmatmul.mubr.bf16.gmra.mxu0 %v1655
      %v1694 = vpop.f32.mrf.mxu0
      %v1695 = vadd.f32 0.0, %v1694
      %v1696 = vpop.f32.mrf.mxu0
      %v1697 = vpop.f32.mrf.mxu0
      %v1698 = vpop.f32.mrf.mxu0
      %1699 = vdwg.mxu0
      %1700 = vrot.lane.b32.xlu0 %v639, 96
      %v1701 = vpop.permute.xlu0 %1700
      %v1703 = vsel %vm643, %v1651, 0
      %v1706 = vsel %vm768, %v1701, 0
      %1708 = vmatprep.subr.bf16.mxu0 0
      %1709 = vmatpush1.bf16.msra.mxu0 0
      %1710 = vmatprep.subr.bf16.mxu0 0
      %1711 = vmatpush1.bf16.msra.mxu0 0
      %1712 = vmatprep.subr.bf16.mxu0 0
      %1713 = vmatpush1.bf16.msra.mxu0 0
      %1714 = vmatprep.subr.bf16.mxu0 0
      %1715 = vmatpush1.bf16.msra.mxu0 0
      %1716 = vmatprep.subr.bf16.mxu0 0
      %1717 = vmatpush1.bf16.msra.mxu0 0
      %1718 = vmatprep.subr.bf16.mxu0 0
      %1719 = vmatpush1.bf16.msra.mxu0 0
      %1720 = vmatprep.subr.bf16.mxu0 0
      %1721 = vmatpush1.bf16.msra.mxu0 0
      %1722 = vmatprep.subr.bf16.mxu0 0
      %1723 = vmatpush1.bf16.msra.mxu0 %v1706
      %1724 = vmatprep.subr.bf16.mxu0 0
      %1725 = vmatpush2.bf16.msra.mxu0 0
      %1726 = vmatprep.subr.bf16.mxu0 0
      %1727 = vmatpush2.bf16.msra.mxu0 0
      %1728 = vmatprep.subr.bf16.mxu0 0
      %1729 = vmatpush2.bf16.msra.mxu0 0
      %1730 = vmatprep.subr.bf16.mxu0 0
      %1731 = vmatpush2.bf16.msra.mxu0 0
      %1732 = vmatprep.subr.bf16.mxu0 0
      %1733 = vmatpush2.bf16.msra.mxu0 0
      %1734 = vmatprep.subr.bf16.mxu0 0
      %1735 = vmatpush2.bf16.msra.mxu0 0
      %1736 = vmatprep.subr.bf16.mxu0 0
      %1737 = vmatpush2.bf16.msra.mxu0 0
      %1738 = vmatprep.subr.bf16.mxu0 0
      %1739 = vmatpush2.bf16.msra.mxu0 0
      %1740 = vmatprep.mubr.bf16.mxu0 0
      %1741 = vmatmul.mubr.bf16.gmra.mxu0 %v1703
      %v1742 = vpop.f32.mrf.mxu0
      %v1743 = vadd.f32 0.0, %v1742
      %v1744 = vpop.f32.mrf.mxu0
      %v1745 = vpop.f32.mrf.mxu0
      %v1746 = vpop.f32.mrf.mxu0
      %1747 = vdwg.mxu0
      %1748 = vrot.lane.b32.xlu0 %v636, 88
      %v1749 = vpop.permute.xlu0 %1748
      %1750 = vrot.lane.b32.xlu0 %v636, 24
      %v1751 = vpop.permute.xlu0 %1750
      %v1753 = vsel %vm643, %v1749, 0
      %v1756 = vsel %vm643, %v1751, 0
      %1758 = vmatprep.subr.bf16.mxu0 0
      %1759 = vmatpush1.bf16.xpose.msra.mxu0 0
      %1760 = vmatprep.subr.bf16.mxu0 0
      %1761 = vmatpush1.bf16.xpose.msra.mxu0 0
      %1762 = vmatprep.subr.bf16.mxu0 0
      %1763 = vmatpush1.bf16.xpose.msra.mxu0 0
      %1764 = vmatprep.subr.bf16.mxu0 0
      %1765 = vmatpush1.bf16.xpose.msra.mxu0 0
      %1766 = vmatprep.subr.bf16.mxu0 0
      %1767 = vmatpush1.bf16.xpose.msra.mxu0 0
      %1768 = vmatprep.subr.bf16.mxu0 0
      %1769 = vmatpush1.bf16.xpose.msra.mxu0 0
      %1770 = vmatprep.subr.bf16.mxu0 0
      %1771 = vmatpush1.bf16.xpose.msra.mxu0 0
      %1772 = vmatprep.subr.bf16.mxu0 0
      %1773 = vmatpush1.bf16.xpose.msra.mxu0 %v1756
      %1774 = vmatprep.subr.bf16.mxu0 0
      %1775 = vmatpush2.bf16.xpose.msra.mxu0 0
      %1776 = vmatprep.subr.bf16.mxu0 0
      %1777 = vmatpush2.bf16.xpose.msra.mxu0 0
      %1778 = vmatprep.subr.bf16.mxu0 0
      %1779 = vmatpush2.bf16.xpose.msra.mxu0 0
      %1780 = vmatprep.subr.bf16.mxu0 0
      %1781 = vmatpush2.bf16.xpose.msra.mxu0 0
      %1782 = vmatprep.subr.bf16.mxu0 0
      %1783 = vmatpush2.bf16.xpose.msra.mxu0 0
      %1784 = vmatprep.subr.bf16.mxu0 0
      %1785 = vmatpush2.bf16.xpose.msra.mxu0 0
      %1786 = vmatprep.subr.bf16.mxu0 0
      %1787 = vmatpush2.bf16.xpose.msra.mxu0 0
      %1788 = vmatprep.subr.bf16.mxu0 0
      %1789 = vmatpush2.bf16.xpose.msra.mxu0 0
      %1790 = vmatprep.mubr.bf16.mxu0 0
      %1791 = vmatmul.mubr.bf16.gmra.mxu0 %v1753
      %v1792 = vpop.f32.mrf.mxu0
      %v1793 = vadd.f32 0.0, %v1792
      %v1794 = vpop.f32.mrf.mxu0
      %v1795 = vpop.f32.mrf.mxu0
      %v1796 = vpop.f32.mrf.mxu0
      %1797 = vdwg.mxu0
      %1798 = vrot.lane.b32.xlu0 %v637, 88
      %v1799 = vpop.permute.xlu0 %1798
      %1800 = vrot.lane.b32.xlu0 %v637, 24
      %v1801 = vpop.permute.xlu0 %1800
      %v1803 = vsel %vm643, %v1799, 0
      %v1806 = vsel %vm643, %v1801, 0
      %1808 = vmatprep.subr.bf16.mxu0 0
      %1809 = vmatpush1.bf16.xpose.msra.mxu0 0
      %1810 = vmatprep.subr.bf16.mxu0 0
      %1811 = vmatpush1.bf16.xpose.msra.mxu0 0
      %1812 = vmatprep.subr.bf16.mxu0 0
      %1813 = vmatpush1.bf16.xpose.msra.mxu0 0
      %1814 = vmatprep.subr.bf16.mxu0 0
      %1815 = vmatpush1.bf16.xpose.msra.mxu0 0
      %1816 = vmatprep.subr.bf16.mxu0 0
      %1817 = vmatpush1.bf16.xpose.msra.mxu0 0
      %1818 = vmatprep.subr.bf16.mxu0 0
      %1819 = vmatpush1.bf16.xpose.msra.mxu0 0
      %1820 = vmatprep.subr.bf16.mxu0 0
      %1821 = vmatpush1.bf16.xpose.msra.mxu0 0
      %1822 = vmatprep.subr.bf16.mxu0 0
      %1823 = vmatpush1.bf16.xpose.msra.mxu0 %v1806
      %1824 = vmatprep.subr.bf16.mxu0 0
      %1825 = vmatpush2.bf16.xpose.msra.mxu0 0
      %1826 = vmatprep.subr.bf16.mxu0 0
      %1827 = vmatpush2.bf16.xpose.msra.mxu0 0
      %1828 = vmatprep.subr.bf16.mxu0 0
      %1829 = vmatpush2.bf16.xpose.msra.mxu0 0
      %1830 = vmatprep.subr.bf16.mxu0 0
      %1831 = vmatpush2.bf16.xpose.msra.mxu0 0
      %1832 = vmatprep.subr.bf16.mxu0 0
      %1833 = vmatpush2.bf16.xpose.msra.mxu0 0
      %1834 = vmatprep.subr.bf16.mxu0 0
      %1835 = vmatpush2.bf16.xpose.msra.mxu0 0
      %1836 = vmatprep.subr.bf16.mxu0 0
      %1837 = vmatpush2.bf16.xpose.msra.mxu0 0
      %1838 = vmatprep.subr.bf16.mxu0 0
      %1839 = vmatpush2.bf16.xpose.msra.mxu0 0
      %1840 = vmatprep.mubr.bf16.mxu0 0
      %1841 = vmatmul.mubr.bf16.gmra.mxu0 %v1803
      %v1842 = vpop.f32.mrf.mxu0
      %v1843 = vadd.f32 0.0, %v1842
      %v1844 = vpop.f32.mrf.mxu0
      %v1845 = vpop.f32.mrf.mxu0
      %v1846 = vpop.f32.mrf.mxu0
      %1847 = vdwg.mxu0
      %v1848 = vmul.f32 %v1793, 0.35355338
      %v1849 = vmul.f32 %v1843, 0.35355338
      %v1850 = vsel %vm643, %v1848, -inf
      %1851 = vmax.xlane.f32.xlu0 %v1850
      %v1852 = vpop.xlane.xlu0 %1851
      %v1853 = vsel %vm643, %v1849, -inf
      %1854 = vmax.xlane.f32.xlu0 %v1853
      %v1855 = vpop.xlane.xlu0 %1854
      %v1856 = vsub.f32 %v1848, %v1852
      %v1857 = vsub.f32 %v1849, %v1855
      %v1858 = vmul.f32 %v1856, 1.442695
      %v1859 = vpow.pop %v1858
      %v1860 = vmul.f32 %v1857, 1.442695
      %v1861 = vpow.pop %v1860
      %v1862 = vsel %vm643, %v1859, 0.0
      %1863 = vadd.xlane.f32.xlu0 %v1862
      %v1864 = vpop.xlane.xlu0 %1863
      %v1865 = vsel %vm643, %v1861, 0.0
      %1866 = vadd.xlane.f32.xlu0 %v1865
      %v1867 = vpop.xlane.xlu0 %1866
      %v1868 = vrcp.pop %v1864
      %v1869 = vrcp.pop %v1867
      %v1870 = vmul.f32 %v1859, %v1868
      %v1871 = vmul.f32 %v1861, %v1869
      %v1872 = vpack.c.bf16 %v1870, %v1870
      %v1873 = vpack.c.bf16 %v1871, %v1871
      %1874 = vrot.lane.b32.xlu0 %v638, 88
      %v1875 = vpop.permute.xlu0 %1874
      %v1877 = vsel %vm643, %v1872, 0
      %v1880 = vsel %vm768, %v1875, 0
      %1882 = vmatprep.subr.bf16.mxu0 0
      %1883 = vmatpush1.bf16.msra.mxu0 0
      %1884 = vmatprep.subr.bf16.mxu0 0
      %1885 = vmatpush1.bf16.msra.mxu0 0
      %1886 = vmatprep.subr.bf16.mxu0 0
      %1887 = vmatpush1.bf16.msra.mxu0 0
      %1888 = vmatprep.subr.bf16.mxu0 0
      %1889 = vmatpush1.bf16.msra.mxu0 0
      %1890 = vmatprep.subr.bf16.mxu0 0
      %1891 = vmatpush1.bf16.msra.mxu0 0
      %1892 = vmatprep.subr.bf16.mxu0 0
      %1893 = vmatpush1.bf16.msra.mxu0 0
      %1894 = vmatprep.subr.bf16.mxu0 0
      %1895 = vmatpush1.bf16.msra.mxu0 0
      %1896 = vmatprep.subr.bf16.mxu0 0
      %1897 = vmatpush1.bf16.msra.mxu0 %v1880
      %1898 = vmatprep.subr.bf16.mxu0 0
      %1899 = vmatpush2.bf16.msra.mxu0 0
      %1900 = vmatprep.subr.bf16.mxu0 0
      %1901 = vmatpush2.bf16.msra.mxu0 0
      %1902 = vmatprep.subr.bf16.mxu0 0
      %1903 = vmatpush2.bf16.msra.mxu0 0
      %1904 = vmatprep.subr.bf16.mxu0 0
      %1905 = vmatpush2.bf16.msra.mxu0 0
      %1906 = vmatprep.subr.bf16.mxu0 0
      %1907 = vmatpush2.bf16.msra.mxu0 0
      %1908 = vmatprep.subr.bf16.mxu0 0
      %1909 = vmatpush2.bf16.msra.mxu0 0
      %1910 = vmatprep.subr.bf16.mxu0 0
      %1911 = vmatpush2.bf16.msra.mxu0 0
      %1912 = vmatprep.subr.bf16.mxu0 0
      %1913 = vmatpush2.bf16.msra.mxu0 0
      %1914 = vmatprep.mubr.bf16.mxu0 0
      %1915 = vmatmul.mubr.bf16.gmra.mxu0 %v1877
      %v1916 = vpop.f32.mrf.mxu0
      %v1917 = vadd.f32 0.0, %v1916
      %v1918 = vpop.f32.mrf.mxu0
      %v1919 = vpop.f32.mrf.mxu0
      %v1920 = vpop.f32.mrf.mxu0
      %1921 = vdwg.mxu0
      %1922 = vrot.lane.b32.xlu0 %v639, 88
      %v1923 = vpop.permute.xlu0 %1922
      %v1925 = vsel %vm643, %v1873, 0
      %v1928 = vsel %vm768, %v1923, 0
      %1930 = vmatprep.subr.bf16.mxu0 0
      %1931 = vmatpush1.bf16.msra.mxu0 0
      %1932 = vmatprep.subr.bf16.mxu0 0
      %1933 = vmatpush1.bf16.msra.mxu0 0
      %1934 = vmatprep.subr.bf16.mxu0 0
      %1935 = vmatpush1.bf16.msra.mxu0 0
      %1936 = vmatprep.subr.bf16.mxu0 0
      %1937 = vmatpush1.bf16.msra.mxu0 0
      %1938 = vmatprep.subr.bf16.mxu0 0
      %1939 = vmatpush1.bf16.msra.mxu0 0
      %1940 = vmatprep.subr.bf16.mxu0 0
      %1941 = vmatpush1.bf16.msra.mxu0 0
      %1942 = vmatprep.subr.bf16.mxu0 0
      %1943 = vmatpush1.bf16.msra.mxu0 0
      %1944 = vmatprep.subr.bf16.mxu0 0
      %1945 = vmatpush1.bf16.msra.mxu0 %v1928
      %1946 = vmatprep.subr.bf16.mxu0 0
      %1947 = vmatpush2.bf16.msra.mxu0 0
      %1948 = vmatprep.subr.bf16.mxu0 0
      %1949 = vmatpush2.bf16.msra.mxu0 0
      %1950 = vmatprep.subr.bf16.mxu0 0
      %1951 = vmatpush2.bf16.msra.mxu0 0
      %1952 = vmatprep.subr.bf16.mxu0 0
      %1953 = vmatpush2.bf16.msra.mxu0 0
      %1954 = vmatprep.subr.bf16.mxu0 0
      %1955 = vmatpush2.bf16.msra.mxu0 0
      %1956 = vmatprep.subr.bf16.mxu0 0
      %1957 = vmatpush2.bf16.msra.mxu0 0
      %1958 = vmatprep.subr.bf16.mxu0 0
      %1959 = vmatpush2.bf16.msra.mxu0 0
      %1960 = vmatprep.subr.bf16.mxu0 0
      %1961 = vmatpush2.bf16.msra.mxu0 0
      %1962 = vmatprep.mubr.bf16.mxu0 0
      %1963 = vmatmul.mubr.bf16.gmra.mxu0 %v1925
      %v1964 = vpop.f32.mrf.mxu0
      %v1965 = vadd.f32 0.0, %v1964
      %v1966 = vpop.f32.mrf.mxu0
      %v1967 = vpop.f32.mrf.mxu0
      %v1968 = vpop.f32.mrf.mxu0
      %1969 = vdwg.mxu0
      %1970 = vrot.lane.b32.xlu0 %v636, 80
      %v1971 = vpop.permute.xlu0 %1970
      %1972 = vrot.lane.b32.xlu0 %v636, 16
      %v1973 = vpop.permute.xlu0 %1972
      %v1975 = vsel %vm643, %v1971, 0
      %v1978 = vsel %vm643, %v1973, 0
      %1980 = vmatprep.subr.bf16.mxu0 0
      %1981 = vmatpush1.bf16.xpose.msra.mxu0 0
      %1982 = vmatprep.subr.bf16.mxu0 0
      %1983 = vmatpush1.bf16.xpose.msra.mxu0 0
      %1984 = vmatprep.subr.bf16.mxu0 0
      %1985 = vmatpush1.bf16.xpose.msra.mxu0 0
      %1986 = vmatprep.subr.bf16.mxu0 0
      %1987 = vmatpush1.bf16.xpose.msra.mxu0 0
      %1988 = vmatprep.subr.bf16.mxu0 0
      %1989 = vmatpush1.bf16.xpose.msra.mxu0 0
      %1990 = vmatprep.subr.bf16.mxu0 0
      %1991 = vmatpush1.bf16.xpose.msra.mxu0 0
      %1992 = vmatprep.subr.bf16.mxu0 0
      %1993 = vmatpush1.bf16.xpose.msra.mxu0 0
      %1994 = vmatprep.subr.bf16.mxu0 0
      %1995 = vmatpush1.bf16.xpose.msra.mxu0 %v1978
      %1996 = vmatprep.subr.bf16.mxu0 0
      %1997 = vmatpush2.bf16.xpose.msra.mxu0 0
      %1998 = vmatprep.subr.bf16.mxu0 0
      %1999 = vmatpush2.bf16.xpose.msra.mxu0 0
      %2000 = vmatprep.subr.bf16.mxu0 0
      %2001 = vmatpush2.bf16.xpose.msra.mxu0 0
      %2002 = vmatprep.subr.bf16.mxu0 0
      %2003 = vmatpush2.bf16.xpose.msra.mxu0 0
      %2004 = vmatprep.subr.bf16.mxu0 0
      %2005 = vmatpush2.bf16.xpose.msra.mxu0 0
      %2006 = vmatprep.subr.bf16.mxu0 0
      %2007 = vmatpush2.bf16.xpose.msra.mxu0 0
      %2008 = vmatprep.subr.bf16.mxu0 0
      %2009 = vmatpush2.bf16.xpose.msra.mxu0 0
      %2010 = vmatprep.subr.bf16.mxu0 0
      %2011 = vmatpush2.bf16.xpose.msra.mxu0 0
      %2012 = vmatprep.mubr.bf16.mxu0 0
      %2013 = vmatmul.mubr.bf16.gmra.mxu0 %v1975
      %v2014 = vpop.f32.mrf.mxu0
      %v2015 = vadd.f32 0.0, %v2014
      %v2016 = vpop.f32.mrf.mxu0
      %v2017 = vpop.f32.mrf.mxu0
      %v2018 = vpop.f32.mrf.mxu0
      %2019 = vdwg.mxu0
      %2020 = vrot.lane.b32.xlu0 %v637, 80
      %v2021 = vpop.permute.xlu0 %2020
      %2022 = vrot.lane.b32.xlu0 %v637, 16
      %v2023 = vpop.permute.xlu0 %2022
      %v2025 = vsel %vm643, %v2021, 0
      %v2028 = vsel %vm643, %v2023, 0
      %2030 = vmatprep.subr.bf16.mxu0 0
      %2031 = vmatpush1.bf16.xpose.msra.mxu0 0
      %2032 = vmatprep.subr.bf16.mxu0 0
      %2033 = vmatpush1.bf16.xpose.msra.mxu0 0
      %2034 = vmatprep.subr.bf16.mxu0 0
      %2035 = vmatpush1.bf16.xpose.msra.mxu0 0
      %2036 = vmatprep.subr.bf16.mxu0 0
      %2037 = vmatpush1.bf16.xpose.msra.mxu0 0
      %2038 = vmatprep.subr.bf16.mxu0 0
      %2039 = vmatpush1.bf16.xpose.msra.mxu0 0
      %2040 = vmatprep.subr.bf16.mxu0 0
      %2041 = vmatpush1.bf16.xpose.msra.mxu0 0
      %2042 = vmatprep.subr.bf16.mxu0 0
      %2043 = vmatpush1.bf16.xpose.msra.mxu0 0
      %2044 = vmatprep.subr.bf16.mxu0 0
      %2045 = vmatpush1.bf16.xpose.msra.mxu0 %v2028
      %2046 = vmatprep.subr.bf16.mxu0 0
      %2047 = vmatpush2.bf16.xpose.msra.mxu0 0
      %2048 = vmatprep.subr.bf16.mxu0 0
      %2049 = vmatpush2.bf16.xpose.msra.mxu0 0
      %2050 = vmatprep.subr.bf16.mxu0 0
      %2051 = vmatpush2.bf16.xpose.msra.mxu0 0
      %2052 = vmatprep.subr.bf16.mxu0 0
      %2053 = vmatpush2.bf16.xpose.msra.mxu0 0
      %2054 = vmatprep.subr.bf16.mxu0 0
      %2055 = vmatpush2.bf16.xpose.msra.mxu0 0
      %2056 = vmatprep.subr.bf16.mxu0 0
      %2057 = vmatpush2.bf16.xpose.msra.mxu0 0
      %2058 = vmatprep.subr.bf16.mxu0 0
      %2059 = vmatpush2.bf16.xpose.msra.mxu0 0
      %2060 = vmatprep.subr.bf16.mxu0 0
      %2061 = vmatpush2.bf16.xpose.msra.mxu0 0
      %2062 = vmatprep.mubr.bf16.mxu0 0
      %2063 = vmatmul.mubr.bf16.gmra.mxu0 %v2025
      %v2064 = vpop.f32.mrf.mxu0
      %v2065 = vadd.f32 0.0, %v2064
      %v2066 = vpop.f32.mrf.mxu0
      %v2067 = vpop.f32.mrf.mxu0
      %v2068 = vpop.f32.mrf.mxu0
      %2069 = vdwg.mxu0
      %v2070 = vmul.f32 %v2015, 0.35355338
      %v2071 = vmul.f32 %v2065, 0.35355338
      %v2072 = vsel %vm643, %v2070, -inf
      %2073 = vmax.xlane.f32.xlu0 %v2072
      %v2074 = vpop.xlane.xlu0 %2073
      %v2075 = vsel %vm643, %v2071, -inf
      %2076 = vmax.xlane.f32.xlu0 %v2075
      %v2077 = vpop.xlane.xlu0 %2076
      %v2078 = vsub.f32 %v2070, %v2074
      %v2079 = vsub.f32 %v2071, %v2077
      %v2080 = vmul.f32 %v2078, 1.442695
      %v2081 = vpow.pop %v2080
      %v2082 = vmul.f32 %v2079, 1.442695
      %v2083 = vpow.pop %v2082
      %v2084 = vsel %vm643, %v2081, 0.0
      %2085 = vadd.xlane.f32.xlu0 %v2084
      %v2086 = vpop.xlane.xlu0 %2085
      %v2087 = vsel %vm643, %v2083, 0.0
      %2088 = vadd.xlane.f32.xlu0 %v2087
      %v2089 = vpop.xlane.xlu0 %2088
      %v2090 = vrcp.pop %v2086
      %v2091 = vrcp.pop %v2089
      %v2092 = vmul.f32 %v2081, %v2090
      %v2093 = vmul.f32 %v2083, %v2091
      %v2094 = vpack.c.bf16 %v2092, %v2092
      %v2095 = vpack.c.bf16 %v2093, %v2093
      %2096 = vrot.lane.b32.xlu0 %v638, 80
      %v2097 = vpop.permute.xlu0 %2096
      %v2099 = vsel %vm643, %v2094, 0
      %v2102 = vsel %vm768, %v2097, 0
      %2104 = vmatprep.subr.bf16.mxu0 0
      %2105 = vmatpush1.bf16.msra.mxu0 0
      %2106 = vmatprep.subr.bf16.mxu0 0
      %2107 = vmatpush1.bf16.msra.mxu0 0
      %2108 = vmatprep.subr.bf16.mxu0 0
      %2109 = vmatpush1.bf16.msra.mxu0 0
      %2110 = vmatprep.subr.bf16.mxu0 0
      %2111 = vmatpush1.bf16.msra.mxu0 0
      %2112 = vmatprep.subr.bf16.mxu0 0
      %2113 = vmatpush1.bf16.msra.mxu0 0
      %2114 = vmatprep.subr.bf16.mxu0 0
      %2115 = vmatpush1.bf16.msra.mxu0 0
      %2116 = vmatprep.subr.bf16.mxu0 0
      %2117 = vmatpush1.bf16.msra.mxu0 0
      %2118 = vmatprep.subr.bf16.mxu0 0
      %2119 = vmatpush1.bf16.msra.mxu0 %v2102
      %2120 = vmatprep.subr.bf16.mxu0 0
      %2121 = vmatpush2.bf16.msra.mxu0 0
      %2122 = vmatprep.subr.bf16.mxu0 0
      %2123 = vmatpush2.bf16.msra.mxu0 0
      %2124 = vmatprep.subr.bf16.mxu0 0
      %2125 = vmatpush2.bf16.msra.mxu0 0
      %2126 = vmatprep.subr.bf16.mxu0 0
      %2127 = vmatpush2.bf16.msra.mxu0 0
      %2128 = vmatprep.subr.bf16.mxu0 0
      %2129 = vmatpush2.bf16.msra.mxu0 0
      %2130 = vmatprep.subr.bf16.mxu0 0
      %2131 = vmatpush2.bf16.msra.mxu0 0
      %2132 = vmatprep.subr.bf16.mxu0 0
      %2133 = vmatpush2.bf16.msra.mxu0 0
      %2134 = vmatprep.subr.bf16.mxu0 0
      %2135 = vmatpush2.bf16.msra.mxu0 0
      %2136 = vmatprep.mubr.bf16.mxu0 0
      %2137 = vmatmul.mubr.bf16.gmra.mxu0 %v2099
      %v2138 = vpop.f32.mrf.mxu0
      %v2139 = vadd.f32 0.0, %v2138
      %v2140 = vpop.f32.mrf.mxu0
      %v2141 = vpop.f32.mrf.mxu0
      %v2142 = vpop.f32.mrf.mxu0
      %2143 = vdwg.mxu0
      %2144 = vrot.lane.b32.xlu0 %v639, 80
      %v2145 = vpop.permute.xlu0 %2144
      %v2147 = vsel %vm643, %v2095, 0
      %v2150 = vsel %vm768, %v2145, 0
      %2152 = vmatprep.subr.bf16.mxu0 0
      %2153 = vmatpush1.bf16.msra.mxu0 0
      %2154 = vmatprep.subr.bf16.mxu0 0
      %2155 = vmatpush1.bf16.msra.mxu0 0
      %2156 = vmatprep.subr.bf16.mxu0 0
      %2157 = vmatpush1.bf16.msra.mxu0 0
      %2158 = vmatprep.subr.bf16.mxu0 0
      %2159 = vmatpush1.bf16.msra.mxu0 0
      %2160 = vmatprep.subr.bf16.mxu0 0
      %2161 = vmatpush1.bf16.msra.mxu0 0
      %2162 = vmatprep.subr.bf16.mxu0 0
      %2163 = vmatpush1.bf16.msra.mxu0 0
      %2164 = vmatprep.subr.bf16.mxu0 0
      %2165 = vmatpush1.bf16.msra.mxu0 0
      %2166 = vmatprep.subr.bf16.mxu0 0
      %2167 = vmatpush1.bf16.msra.mxu0 %v2150
      %2168 = vmatprep.subr.bf16.mxu0 0
      %2169 = vmatpush2.bf16.msra.mxu0 0
      %2170 = vmatprep.subr.bf16.mxu0 0
      %2171 = vmatpush2.bf16.msra.mxu0 0
      %2172 = vmatprep.subr.bf16.mxu0 0
      %2173 = vmatpush2.bf16.msra.mxu0 0
      %2174 = vmatprep.subr.bf16.mxu0 0
      %2175 = vmatpush2.bf16.msra.mxu0 0
      %2176 = vmatprep.subr.bf16.mxu0 0
      %2177 = vmatpush2.bf16.msra.mxu0 0
      %2178 = vmatprep.subr.bf16.mxu0 0
      %2179 = vmatpush2.bf16.msra.mxu0 0
      %2180 = vmatprep.subr.bf16.mxu0 0
      %2181 = vmatpush2.bf16.msra.mxu0 0
      %2182 = vmatprep.subr.bf16.mxu0 0
      %2183 = vmatpush2.bf16.msra.mxu0 0
      %2184 = vmatprep.mubr.bf16.mxu0 0
      %2185 = vmatmul.mubr.bf16.gmra.mxu0 %v2147
      %v2186 = vpop.f32.mrf.mxu0
      %v2187 = vadd.f32 0.0, %v2186
      %v2188 = vpop.f32.mrf.mxu0
      %v2189 = vpop.f32.mrf.mxu0
      %v2190 = vpop.f32.mrf.mxu0
      %2191 = vdwg.mxu0
      %2192 = vrot.lane.b32.xlu0 %v636, 72
      %v2193 = vpop.permute.xlu0 %2192
      %2194 = vrot.lane.b32.xlu0 %v636, 8
      %v2195 = vpop.permute.xlu0 %2194
      %v2197 = vsel %vm643, %v2193, 0
      %v2200 = vsel %vm643, %v2195, 0
      %2202 = vmatprep.subr.bf16.mxu0 0
      %2203 = vmatpush1.bf16.xpose.msra.mxu0 0
      %2204 = vmatprep.subr.bf16.mxu0 0
      %2205 = vmatpush1.bf16.xpose.msra.mxu0 0
      %2206 = vmatprep.subr.bf16.mxu0 0
      %2207 = vmatpush1.bf16.xpose.msra.mxu0 0
      %2208 = vmatprep.subr.bf16.mxu0 0
      %2209 = vmatpush1.bf16.xpose.msra.mxu0 0
      %2210 = vmatprep.subr.bf16.mxu0 0
      %2211 = vmatpush1.bf16.xpose.msra.mxu0 0
      %2212 = vmatprep.subr.bf16.mxu0 0
      %2213 = vmatpush1.bf16.xpose.msra.mxu0 0
      %2214 = vmatprep.subr.bf16.mxu0 0
      %2215 = vmatpush1.bf16.xpose.msra.mxu0 0
      %2216 = vmatprep.subr.bf16.mxu0 0
      %2217 = vmatpush1.bf16.xpose.msra.mxu0 %v2200
      %2218 = vmatprep.subr.bf16.mxu0 0
      %2219 = vmatpush2.bf16.xpose.msra.mxu0 0
      %2220 = vmatprep.subr.bf16.mxu0 0
      %2221 = vmatpush2.bf16.xpose.msra.mxu0 0
      %2222 = vmatprep.subr.bf16.mxu0 0
      %2223 = vmatpush2.bf16.xpose.msra.mxu0 0
      %2224 = vmatprep.subr.bf16.mxu0 0
      %2225 = vmatpush2.bf16.xpose.msra.mxu0 0
      %2226 = vmatprep.subr.bf16.mxu0 0
      %2227 = vmatpush2.bf16.xpose.msra.mxu0 0
      %2228 = vmatprep.subr.bf16.mxu0 0
      %2229 = vmatpush2.bf16.xpose.msra.mxu0 0
      %2230 = vmatprep.subr.bf16.mxu0 0
      %2231 = vmatpush2.bf16.xpose.msra.mxu0 0
      %2232 = vmatprep.subr.bf16.mxu0 0
      %2233 = vmatpush2.bf16.xpose.msra.mxu0 0
      %2234 = vmatprep.mubr.bf16.mxu0 0
      %2235 = vmatmul.mubr.bf16.gmra.mxu0 %v2197
      %v2236 = vpop.f32.mrf.mxu0
      %v2237 = vadd.f32 0.0, %v2236
      %v2238 = vpop.f32.mrf.mxu0
      %v2239 = vpop.f32.mrf.mxu0
      %v2240 = vpop.f32.mrf.mxu0
      %2241 = vdwg.mxu0
      %2242 = vrot.lane.b32.xlu0 %v637, 72
      %v2243 = vpop.permute.xlu0 %2242
      %2244 = vrot.lane.b32.xlu0 %v637, 8
      %v2245 = vpop.permute.xlu0 %2244
      %v2247 = vsel %vm643, %v2243, 0
      %v2250 = vsel %vm643, %v2245, 0
      %2252 = vmatprep.subr.bf16.mxu0 0
      %2253 = vmatpush1.bf16.xpose.msra.mxu0 0
      %2254 = vmatprep.subr.bf16.mxu0 0
      %2255 = vmatpush1.bf16.xpose.msra.mxu0 0
      %2256 = vmatprep.subr.bf16.mxu0 0
      %2257 = vmatpush1.bf16.xpose.msra.mxu0 0
      %2258 = vmatprep.subr.bf16.mxu0 0
      %2259 = vmatpush1.bf16.xpose.msra.mxu0 0
      %2260 = vmatprep.subr.bf16.mxu0 0
      %2261 = vmatpush1.bf16.xpose.msra.mxu0 0
      %2262 = vmatprep.subr.bf16.mxu0 0
      %2263 = vmatpush1.bf16.xpose.msra.mxu0 0
      %2264 = vmatprep.subr.bf16.mxu0 0
      %2265 = vmatpush1.bf16.xpose.msra.mxu0 0
      %2266 = vmatprep.subr.bf16.mxu0 0
      %2267 = vmatpush1.bf16.xpose.msra.mxu0 %v2250
      %2268 = vmatprep.subr.bf16.mxu0 0
      %2269 = vmatpush2.bf16.xpose.msra.mxu0 0
      %2270 = vmatprep.subr.bf16.mxu0 0
      %2271 = vmatpush2.bf16.xpose.msra.mxu0 0
      %2272 = vmatprep.subr.bf16.mxu0 0
      %2273 = vmatpush2.bf16.xpose.msra.mxu0 0
      %2274 = vmatprep.subr.bf16.mxu0 0
      %2275 = vmatpush2.bf16.xpose.msra.mxu0 0
      %2276 = vmatprep.subr.bf16.mxu0 0
      %2277 = vmatpush2.bf16.xpose.msra.mxu0 0
      %2278 = vmatprep.subr.bf16.mxu0 0
      %2279 = vmatpush2.bf16.xpose.msra.mxu0 0
      %2280 = vmatprep.subr.bf16.mxu0 0
      %2281 = vmatpush2.bf16.xpose.msra.mxu0 0
      %2282 = vmatprep.subr.bf16.mxu0 0
      %2283 = vmatpush2.bf16.xpose.msra.mxu0 0
      %2284 = vmatprep.mubr.bf16.mxu0 0
      %2285 = vmatmul.mubr.bf16.gmra.mxu0 %v2247
      %v2286 = vpop.f32.mrf.mxu0
      %v2287 = vadd.f32 0.0, %v2286
      %v2288 = vpop.f32.mrf.mxu0
      %v2289 = vpop.f32.mrf.mxu0
      %v2290 = vpop.f32.mrf.mxu0
      %2291 = vdwg.mxu0
      %v2292 = vmul.f32 %v2237, 0.35355338
      %v2293 = vmul.f32 %v2287, 0.35355338
      %v2294 = vsel %vm643, %v2292, -inf
      %2295 = vmax.xlane.f32.xlu0 %v2294
      %v2296 = vpop.xlane.xlu0 %2295
      %v2297 = vsel %vm643, %v2293, -inf
      %2298 = vmax.xlane.f32.xlu0 %v2297
      %v2299 = vpop.xlane.xlu0 %2298
      %v2300 = vsub.f32 %v2292, %v2296
      %v2301 = vsub.f32 %v2293, %v2299
      %v2302 = vmul.f32 %v2300, 1.442695
      %v2303 = vpow.pop %v2302
      %v2304 = vmul.f32 %v2301, 1.442695
      %v2305 = vpow.pop %v2304
      %v2306 = vsel %vm643, %v2303, 0.0
      %2307 = vadd.xlane.f32.xlu0 %v2306
      %v2308 = vpop.xlane.xlu0 %2307
      %v2309 = vsel %vm643, %v2305, 0.0
      %2310 = vadd.xlane.f32.xlu0 %v2309
      %v2311 = vpop.xlane.xlu0 %2310
      %v2312 = vrcp.pop %v2308
      %v2313 = vrcp.pop %v2311
      %v2314 = vmul.f32 %v2303, %v2312
      %v2315 = vmul.f32 %v2305, %v2313
      %v2316 = vpack.c.bf16 %v2314, %v2314
      %v2317 = vpack.c.bf16 %v2315, %v2315
      %2318 = vrot.lane.b32.xlu0 %v638, 72
      %v2319 = vpop.permute.xlu0 %2318
      %v2321 = vsel %vm643, %v2316, 0
      %v2324 = vsel %vm768, %v2319, 0
      %2326 = vmatprep.subr.bf16.mxu0 0
      %2327 = vmatpush1.bf16.msra.mxu0 0
      %2328 = vmatprep.subr.bf16.mxu0 0
      %2329 = vmatpush1.bf16.msra.mxu0 0
      %2330 = vmatprep.subr.bf16.mxu0 0
      %2331 = vmatpush1.bf16.msra.mxu0 0
      %2332 = vmatprep.subr.bf16.mxu0 0
      %2333 = vmatpush1.bf16.msra.mxu0 0
      %2334 = vmatprep.subr.bf16.mxu0 0
      %2335 = vmatpush1.bf16.msra.mxu0 0
      %2336 = vmatprep.subr.bf16.mxu0 0
      %2337 = vmatpush1.bf16.msra.mxu0 0
      %2338 = vmatprep.subr.bf16.mxu0 0
      %2339 = vmatpush1.bf16.msra.mxu0 0
      %2340 = vmatprep.subr.bf16.mxu0 0
      %2341 = vmatpush1.bf16.msra.mxu0 %v2324
      %2342 = vmatprep.subr.bf16.mxu0 0
      %2343 = vmatpush2.bf16.msra.mxu0 0
      %2344 = vmatprep.subr.bf16.mxu0 0
      %2345 = vmatpush2.bf16.msra.mxu0 0
      %2346 = vmatprep.subr.bf16.mxu0 0
      %2347 = vmatpush2.bf16.msra.mxu0 0
      %2348 = vmatprep.subr.bf16.mxu0 0
      %2349 = vmatpush2.bf16.msra.mxu0 0
      %2350 = vmatprep.subr.bf16.mxu0 0
      %2351 = vmatpush2.bf16.msra.mxu0 0
      %2352 = vmatprep.subr.bf16.mxu0 0
      %2353 = vmatpush2.bf16.msra.mxu0 0
      %2354 = vmatprep.subr.bf16.mxu0 0
      %2355 = vmatpush2.bf16.msra.mxu0 0
      %2356 = vmatprep.subr.bf16.mxu0 0
      %2357 = vmatpush2.bf16.msra.mxu0 0
      %2358 = vmatprep.mubr.bf16.mxu0 0
      %2359 = vmatmul.mubr.bf16.gmra.mxu0 %v2321
      %v2360 = vpop.f32.mrf.mxu0
      %v2361 = vadd.f32 0.0, %v2360
      %v2362 = vpop.f32.mrf.mxu0
      %v2363 = vpop.f32.mrf.mxu0
      %v2364 = vpop.f32.mrf.mxu0
      %2365 = vdwg.mxu0
      %2366 = vrot.lane.b32.xlu0 %v639, 72
      %v2367 = vpop.permute.xlu0 %2366
      %v2369 = vsel %vm643, %v2317, 0
      %v2372 = vsel %vm768, %v2367, 0
      %2374 = vmatprep.subr.bf16.mxu0 0
      %2375 = vmatpush1.bf16.msra.mxu0 0
      %2376 = vmatprep.subr.bf16.mxu0 0
      %2377 = vmatpush1.bf16.msra.mxu0 0
      %2378 = vmatprep.subr.bf16.mxu0 0
      %2379 = vmatpush1.bf16.msra.mxu0 0
      %2380 = vmatprep.subr.bf16.mxu0 0
      %2381 = vmatpush1.bf16.msra.mxu0 0
      %2382 = vmatprep.subr.bf16.mxu0 0
      %2383 = vmatpush1.bf16.msra.mxu0 0
      %2384 = vmatprep.subr.bf16.mxu0 0
      %2385 = vmatpush1.bf16.msra.mxu0 0
      %2386 = vmatprep.subr.bf16.mxu0 0
      %2387 = vmatpush1.bf16.msra.mxu0 0
      %2388 = vmatprep.subr.bf16.mxu0 0
      %2389 = vmatpush1.bf16.msra.mxu0 %v2372
      %2390 = vmatprep.subr.bf16.mxu0 0
      %2391 = vmatpush2.bf16.msra.mxu0 0
      %2392 = vmatprep.subr.bf16.mxu0 0
      %2393 = vmatpush2.bf16.msra.mxu0 0
      %2394 = vmatprep.subr.bf16.mxu0 0
      %2395 = vmatpush2.bf16.msra.mxu0 0
      %2396 = vmatprep.subr.bf16.mxu0 0
      %2397 = vmatpush2.bf16.msra.mxu0 0
      %2398 = vmatprep.subr.bf16.mxu0 0
      %2399 = vmatpush2.bf16.msra.mxu0 0
      %2400 = vmatprep.subr.bf16.mxu0 0
      %2401 = vmatpush2.bf16.msra.mxu0 0
      %2402 = vmatprep.subr.bf16.mxu0 0
      %2403 = vmatpush2.bf16.msra.mxu0 0
      %2404 = vmatprep.subr.bf16.mxu0 0
      %2405 = vmatpush2.bf16.msra.mxu0 0
      %2406 = vmatprep.mubr.bf16.mxu0 0
      %2407 = vmatmul.mubr.bf16.gmra.mxu0 %v2369
      %v2408 = vpop.f32.mrf.mxu0
      %v2409 = vadd.f32 0.0, %v2408
      %v2410 = vpop.f32.mrf.mxu0
      %v2411 = vpop.f32.mrf.mxu0
      %v2412 = vpop.f32.mrf.mxu0
      %2413 = vdwg.mxu0
      %2416 = vrot.lane.b32.xlu0 %v1028, 8
      %v2417 = vpop.permute.xlu0 %2416
      %2418 = vrot.lane.b32.xlu0 %v1077, 8
      %v2419 = vpop.permute.xlu0 %2418
      %2424 = vrot.lane.b32.xlu0 %v1251, 16
      %v2425 = vpop.permute.xlu0 %2424
      %2426 = vrot.lane.b32.xlu0 %v1299, 16
      %v2427 = vpop.permute.xlu0 %2426
      %2432 = vrot.lane.b32.xlu0 %v1473, 24
      %v2433 = vpop.permute.xlu0 %2432
      %2434 = vrot.lane.b32.xlu0 %v1521, 24
      %v2435 = vpop.permute.xlu0 %2434
      %2440 = vrot.lane.b32.xlu0 %v1695, 32
      %v2441 = vpop.permute.xlu0 %2440
      %2442 = vrot.lane.b32.xlu0 %v1743, 32
      %v2443 = vpop.permute.xlu0 %2442
      %2448 = vrot.lane.b32.xlu0 %v1917, 40
      %v2449 = vpop.permute.xlu0 %2448
      %2450 = vrot.lane.b32.xlu0 %v1965, 40
      %v2451 = vpop.permute.xlu0 %2450
      %2456 = vrot.lane.b32.xlu0 %v2139, 48
      %v2457 = vpop.permute.xlu0 %2456
      %2458 = vrot.lane.b32.xlu0 %v2187, 48
      %v2459 = vpop.permute.xlu0 %2458
      %2464 = vrot.lane.b32.xlu0 %v2361, 56
      %v2465 = vpop.permute.xlu0 %2464
      %2466 = vrot.lane.b32.xlu0 %v2409, 56
      %v2467 = vpop.permute.xlu0 %2466
      %v2470 = vsel %vm643, %v807, %v2417
      %v2471 = vsel %vm643, %v853, %v2419
      %vm2472 = vcmask 130048
      %v2473 = vsel %vm2472, %v2470, %v2425
      %v2474 = vsel %vm2472, %v2471, %v2427
      %vm2475 = vcmask 195584
      %v2476 = vsel %vm2475, %v2473, %v2433
      %v2477 = vsel %vm2475, %v2474, %v2435
      %vm2478 = vcmask 261120
      %v2479 = vsel %vm2478, %v2476, %v2441
      %v2480 = vsel %vm2478, %v2477, %v2443
      %vm2481 = vcmask 326656
      %v2482 = vsel %vm2481, %v2479, %v2449
      %v2483 = vsel %vm2481, %v2480, %v2451
      %vm2484 = vcmask 392192
      %v2485 = vsel %vm2484, %v2482, %v2457
      %v2486 = vsel %vm2484, %v2483, %v2459
      %vm2487 = vcmask 457728
      %v2488 = vsel %vm2487, %v2485, %v2465
      %v2489 = vsel %vm2487, %v2486, %v2467
      %v2490 = vpack.c.bf16 %v2489, %v2488
      %v2491 = vld [vmem:[%s4] sm:$0xf]
      %v2492 = vld [vmem:[%s4 + $0x4] sm:$0xf]
      %v2493 = vld [vmem:[%s4 + $0x8] sm:$0xf]
      %v2494 = vld [vmem:[%s4 + $0xc] sm:$0xf]
      %v2495 = vld [vmem:[%s4 + $0x10] sm:$0xf]
      %v2496 = vld [vmem:[%s4 + $0x14] sm:$0xf]
      %v2497 = vld [vmem:[%s4 + $0x18] sm:$0xf]
      %v2498 = vld [vmem:[%s4 + $0x1c] sm:$0xf]
      %v2499 = vld [vmem:[%s5] sm:$0x1]
      %v2501 = vlaneseq
      %v2502 = vshrl.u32 %v2501, 7
      %v2503 = vsub.s32 0, %v2502
      %v2504 = vrot.slane %v2499, %v2503
      %v2514 = vunpack.c.l.b16 %v2491
      %v2515 = vunpack.c.l.b16 %v2492
      %v2516 = vunpack.c.l.b16 %v2493
      %v2517 = vunpack.c.l.b16 %v2494
      %v2518 = vunpack.c.l.b16 %v2495
      %v2519 = vunpack.c.l.b16 %v2496
      %v2520 = vunpack.c.l.b16 %v2497
      %v2521 = vunpack.c.l.b16 %v2498
      %v2522 = vpack.c.b16 %v2515, %v2514
      %v2523 = vpack.c.b16 %v2517, %v2516
      %v2524 = vpack.c.b16 %v2519, %v2518
      %v2525 = vpack.c.b16 %v2521, %v2520
      %v2531 = vsel %vm589, %v2490, 0
      %2533 = vmatprep.subr.bf16.mxu0 0
      %2534 = vmatpush1.bf16.msra.mxu0 0
      %2535 = vmatprep.subr.bf16.mxu0 0
      %2536 = vmatpush1.bf16.msra.mxu0 0
      %2537 = vmatprep.subr.bf16.mxu0 0
      %2538 = vmatpush1.bf16.msra.mxu0 0
      %2539 = vmatprep.subr.bf16.mxu0 0
      %2540 = vmatpush1.bf16.msra.mxu0 0
      %2541 = vmatprep.subr.bf16.mxu0 0
      %2542 = vmatpush1.bf16.msra.mxu0 %v2525
      %2543 = vmatprep.subr.bf16.mxu0 0
      %2544 = vmatpush1.bf16.msra.mxu0 %v2524
      %2545 = vmatprep.subr.bf16.mxu0 0
      %2546 = vmatpush1.bf16.msra.mxu0 %v2523
      %2547 = vmatprep.subr.bf16.mxu0 0
      %2548 = vmatpush1.bf16.msra.mxu0 %v2522
      %2549 = vmatprep.subr.bf16.mxu0 0
      %2550 = vmatpush2.bf16.msra.mxu0 0
      %2551 = vmatprep.subr.bf16.mxu0 0
      %2552 = vmatpush2.bf16.msra.mxu0 0
      %2553 = vmatprep.subr.bf16.mxu0 0
      %2554 = vmatpush2.bf16.msra.mxu0 0
      %2555 = vmatprep.subr.bf16.mxu0 0
      %2556 = vmatpush2.bf16.msra.mxu0 0
      %2557 = vmatprep.subr.bf16.mxu0 0
      %2558 = vmatpush2.bf16.msra.mxu0 0
      %2559 = vmatprep.subr.bf16.mxu0 0
      %2560 = vmatpush2.bf16.msra.mxu0 0
      %2561 = vmatprep.subr.bf16.mxu0 0
      %2562 = vmatpush2.bf16.msra.mxu0 0
      %2563 = vmatprep.subr.bf16.mxu0 0
      %2564 = vmatpush2.bf16.msra.mxu0 0
      %2565 = vmatprep.mubr.bf16.mxu0 0
      %2566 = vmatmul.mubr.bf16.gmra.mxu0 %v2531
      %v2567 = vpop.f32.mrf.mxu0
      %v2568 = vadd.f32 %v2504, %v2567
      %v2569 = vpop.f32.mrf.mxu0
      %v2570 = vpop.f32.mrf.mxu0
      %v2571 = vadd.f32 %v2504, %v2570
      %v2572 = vpop.f32.mrf.mxu0
      %2573 = vdwg.mxu0
      %v2574 = vld [vmem:[%s6] sm:$0xff]
      %v2575 = vld [vmem:[%s6 + $0x8] sm:$0xff]
      %v2576 = vld [vmem:[%s6 + $0x10] sm:$0xff]
      %v2577 = vld [vmem:[%s6 + $0x18] sm:$0xff]
      %v2578 = vld [vmem:[%s6 + $0x20] sm:$0xff]
      %v2579 = vld [vmem:[%s6 + $0x28] sm:$0xff]
      %v2580 = vld [vmem:[%s6 + $0x30] sm:$0xff]
      %v2581 = vld [vmem:[%s6 + $0x38] sm:$0xff]
      %v2590 = vunpack.c.l.b16 %v2574
      %v2591 = vunpack.c.h.b16 %v2574
      %v2592 = vunpack.c.l.b16 %v2575
      %v2593 = vunpack.c.h.b16 %v2575
      %v2594 = vunpack.c.l.b16 %v2576
      %v2595 = vunpack.c.h.b16 %v2576
      %v2596 = vunpack.c.l.b16 %v2577
      %v2597 = vunpack.c.h.b16 %v2577
      %v2598 = vunpack.c.l.b16 %v2578
      %v2599 = vunpack.c.h.b16 %v2578
      %v2600 = vunpack.c.l.b16 %v2579
      %v2601 = vunpack.c.h.b16 %v2579
      %v2602 = vunpack.c.l.b16 %v2580
      %v2603 = vunpack.c.h.b16 %v2580
      %v2604 = vunpack.c.l.b16 %v2581
      %v2605 = vunpack.c.h.b16 %v2581
      %v2606 = vpack.c.b16 %v2592, %v2590
      %v2607 = vpack.c.b16 %v2593, %v2591
      %v2608 = vpack.c.b16 %v2596, %v2594
      %v2609 = vpack.c.b16 %v2597, %v2595
      %v2610 = vpack.c.b16 %v2600, %v2598
      %v2611 = vpack.c.b16 %v2601, %v2599
      %v2612 = vpack.c.b16 %v2604, %v2602
      %v2613 = vpack.c.b16 %v2605, %v2603
      %v2623 = vsel %vm589, %v528, 0
      %2625 = vmatprep.subr.bf16.mxu0 0
      %2626 = vmatpush1.bf16.msra.mxu0 0
      %2627 = vmatprep.subr.bf16.mxu0 0
      %2628 = vmatpush1.bf16.msra.mxu0 0
      %2629 = vmatprep.subr.bf16.mxu0 0
      %2630 = vmatpush1.bf16.msra.mxu0 0
      %2631 = vmatprep.subr.bf16.mxu0 0
      %2632 = vmatpush1.bf16.msra.mxu0 0
      %2633 = vmatprep.subr.bf16.mxu0 %v2613
      %2634 = vmatpush1.bf16.msra.mxu0 %v2612
      %2635 = vmatprep.subr.bf16.mxu0 %v2611
      %2636 = vmatpush1.bf16.msra.mxu0 %v2610
      %2637 = vmatprep.subr.bf16.mxu0 %v2609
      %2638 = vmatpush1.bf16.msra.mxu0 %v2608
      %2639 = vmatprep.subr.bf16.mxu0 %v2607
      %2640 = vmatpush1.bf16.msra.mxu0 %v2606
      %2641 = vmatprep.subr.bf16.mxu0 0
      %2642 = vmatpush2.bf16.msra.mxu0 0
      %2643 = vmatprep.subr.bf16.mxu0 0
      %2644 = vmatpush2.bf16.msra.mxu0 0
      %2645 = vmatprep.subr.bf16.mxu0 0
      %2646 = vmatpush2.bf16.msra.mxu0 0
      %2647 = vmatprep.subr.bf16.mxu0 0
      %2648 = vmatpush2.bf16.msra.mxu0 0
      %2649 = vmatprep.subr.bf16.mxu0 0
      %2650 = vmatpush2.bf16.msra.mxu0 0
      %2651 = vmatprep.subr.bf16.mxu0 0
      %2652 = vmatpush2.bf16.msra.mxu0 0
      %2653 = vmatprep.subr.bf16.mxu0 0
      %2654 = vmatpush2.bf16.msra.mxu0 0
      %2655 = vmatprep.subr.bf16.mxu0 0
      %2656 = vmatpush2.bf16.msra.mxu0 0
      %2657 = vmatprep.mubr.bf16.mxu0 0
      %2658 = vmatmul.mubr.bf16.gmra.mxu0 %v2623
      %v2659 = vpop.f32.mrf.mxu0
      %v2660 = vadd.f32 0.0, %v2659
      %v2661 = vpop.f32.mrf.mxu0
      %v2662 = vadd.f32 0.0, %v2661
      %v2663 = vpop.f32.mrf.mxu0
      %v2664 = vadd.f32 0.0, %v2663
      %v2665 = vpop.f32.mrf.mxu0
      %v2666 = vadd.f32 0.0, %v2665
      %2667 = vdwg.mxu0
      %v2668 = vlaneseq
      %v2669 = vshrl.u32 %v2668, 7
      %v2670 = vld [vmem:[%s8] sm:$0x1]
      %v2672 = vlaneseq
      %v2673 = vshrl.u32 %v2672, 7
      %v2674 = vsub.s32 0, %v2673
      %v2675 = vrot.slane %v2670, %v2674
      %v2677 = vadd.f32 %v2675, 0.0
      %vm2678 = vcmp.ge.s32.totalorder %v2669, 3
      %v2679 = vrot.slane %v2660, 5
      %v2680 = vrot.slane %v2664, 5
      %vm2681 = vcmp.lt.s32.totalorder %v2669, 3
      %v2682 = vsel %vm2681, %v2679, %v2680
      %v2683 = vsel %vm2681, %v2680, %v2679
      %v2684 = vsel %vm2678, %v2683, 0.0
      %v2685 = vsel %vm2678, %v2682, 0.0
      %v2686 = vld [vmem:[%s7] sm:$0x1]
      %v2687 = vlaneseq
      %v2688 = vshrl.u32 %v2687, 7
      %v2689 = vsub.s32 0, %v2688
      %v2690 = vrot.slane %v2686, %v2689
      %v2691 = vmul.f32 %v2684, %v2690
      %v2692 = vmul.f32 %v2685, %v2690
      %v2693 = vadd.f32 %v2677, %v2691
      %v2694 = vadd.f32 %v2677, %v2692
      %vm2695 = vcmp.ge.s32.totalorder %v2669, 2
      %v2696 = vrot.slane %v2660, 6
      %v2697 = vrot.slane %v2664, 6
      %vm2698 = vcmp.lt.s32.totalorder %v2669, 2
      %v2699 = vsel %vm2698, %v2696, %v2697
      %v2700 = vsel %vm2698, %v2697, %v2696
      %v2701 = vsel %vm2695, %v2700, 0.0
      %v2702 = vsel %vm2695, %v2699, 0.0
      %v2703 = vld [vmem:[%s7 + $0x1] sm:$0x1]
      %v2704 = vlaneseq
      %v2705 = vshrl.u32 %v2704, 7
      %v2706 = vsub.s32 0, %v2705
      %v2707 = vrot.slane %v2703, %v2706
      %v2708 = vmul.f32 %v2701, %v2707
      %v2709 = vmul.f32 %v2702, %v2707
      %v2710 = vadd.f32 %v2693, %v2708
      %v2711 = vadd.f32 %v2694, %v2709
      %vm2712 = vcmp.ge.s32.totalorder %v2669, 1
      %v2713 = vrot.slane %v2660, 7
      %v2714 = vrot.slane %v2664, 7
      %vm2715 = vcmp.lt.s32.totalorder %v2669, 1
      %v2716 = vsel %vm2715, %v2713, %v2714
      %v2717 = vsel %vm2715, %v2714, %v2713
      %v2718 = vsel %vm2712, %v2717, 0.0
      %v2719 = vsel %vm2712, %v2716, 0.0
      %v2720 = vld [vmem:[%s7 + $0x2] sm:$0x1]
      %v2721 = vlaneseq
      %v2722 = vshrl.u32 %v2721, 7
      %v2723 = vsub.s32 0, %v2722
      %v2724 = vrot.slane %v2720, %v2723
      %v2725 = vmul.f32 %v2718, %v2724
      %v2726 = vmul.f32 %v2719, %v2724
      %v2727 = vadd.f32 %v2710, %v2725
      %v2728 = vadd.f32 %v2711, %v2726
      %v2729 = vld [vmem:[%s7 + $0x3] sm:$0x1]
      %v2730 = vlaneseq
      %v2731 = vshrl.u32 %v2730, 7
      %v2732 = vsub.s32 0, %v2731
      %v2733 = vrot.slane %v2729, %v2732
      %v2734 = vmul.f32 %v2660, %v2733
      %v2735 = vmul.f32 %v2664, %v2733
      %v2736 = vadd.f32 %v2727, %v2734
      %v2737 = vadd.f32 %v2728, %v2735
      %v2738 = vsub.f32 0.0, %v2736
      %v2739 = vsub.f32 0.0, %v2737
      %v2740 = vmul.f32 %v2738, 1.442695
      %v2741 = vpow.pop %v2740
      %v2742 = vmul.f32 %v2739, 1.442695
      %v2743 = vpow.pop %v2742
      %v2744 = vadd.f32 %v2741, 1.0
      %v2745 = vadd.f32 %v2743, 1.0
      %v2746 = vrcp.pop %v2744
      %v2747 = vrcp.pop %v2745
      %v2748 = vmul.f32 %v2736, %v2746
      %v2749 = vmul.f32 %v2737, %v2747
      %v2750 = vpack.c.bf16 %v2749, %v2748
      %v2751 = vld [vmem:[%s9] sm:$0xf]
      %v2752 = vld [vmem:[%s9 + $0x4] sm:$0xf]
      %v2753 = vld [vmem:[%s9 + $0x8] sm:$0xf]
      %v2754 = vld [vmem:[%s9 + $0xc] sm:$0xf]
      %v2755 = vld [vmem:[%s9 + $0x10] sm:$0xf]
      %v2756 = vld [vmem:[%s9 + $0x14] sm:$0xf]
      %v2757 = vld [vmem:[%s9 + $0x18] sm:$0xf]
      %v2758 = vld [vmem:[%s9 + $0x1c] sm:$0xf]
      %v2759 = vld [vmem:[%s9 + $0x20] sm:$0xf]
      %v2760 = vld [vmem:[%s9 + $0x24] sm:$0xf]
      %v2761 = vld [vmem:[%s9 + $0x28] sm:$0xf]
      %v2762 = vld [vmem:[%s9 + $0x2c] sm:$0xf]
      %v2763 = vld [vmem:[%s9 + $0x30] sm:$0xf]
      %v2764 = vld [vmem:[%s9 + $0x34] sm:$0xf]
      %v2765 = vld [vmem:[%s9 + $0x38] sm:$0xf]
      %v2766 = vld [vmem:[%s9 + $0x3c] sm:$0xf]
      %v2783 = vunpack.c.l.b16 %v2751
      %v2784 = vunpack.c.l.b16 %v2752
      %v2785 = vunpack.c.l.b16 %v2753
      %v2786 = vunpack.c.l.b16 %v2754
      %v2787 = vunpack.c.l.b16 %v2755
      %v2788 = vunpack.c.l.b16 %v2756
      %v2789 = vunpack.c.l.b16 %v2757
      %v2790 = vunpack.c.l.b16 %v2758
      %v2791 = vunpack.c.l.b16 %v2759
      %v2792 = vunpack.c.l.b16 %v2760
      %v2793 = vunpack.c.l.b16 %v2761
      %v2794 = vunpack.c.l.b16 %v2762
      %v2795 = vunpack.c.l.b16 %v2763
      %v2796 = vunpack.c.l.b16 %v2764
      %v2797 = vunpack.c.l.b16 %v2765
      %v2798 = vunpack.c.l.b16 %v2766
      %v2799 = vpack.c.b16 %v2784, %v2783
      %v2800 = vpack.c.b16 %v2786, %v2785
      %v2801 = vpack.c.b16 %v2788, %v2787
      %v2802 = vpack.c.b16 %v2790, %v2789
      %v2803 = vpack.c.b16 %v2792, %v2791
      %v2804 = vpack.c.b16 %v2794, %v2793
      %v2805 = vpack.c.b16 %v2796, %v2795
      %v2806 = vpack.c.b16 %v2798, %v2797
      %2815 = vmatprep.subr.bf16.mxu0 0
      %2816 = vmatpush1.bf16.msra.mxu0 %v2806
      %2817 = vmatprep.subr.bf16.mxu0 0
      %2818 = vmatpush1.bf16.msra.mxu0 %v2805
      %2819 = vmatprep.subr.bf16.mxu0 0
      %2820 = vmatpush1.bf16.msra.mxu0 %v2804
      %2821 = vmatprep.subr.bf16.mxu0 0
      %2822 = vmatpush1.bf16.msra.mxu0 %v2803
      %2823 = vmatprep.subr.bf16.mxu0 0
      %2824 = vmatpush1.bf16.msra.mxu0 %v2802
      %2825 = vmatprep.subr.bf16.mxu0 0
      %2826 = vmatpush1.bf16.msra.mxu0 %v2801
      %2827 = vmatprep.subr.bf16.mxu0 0
      %2828 = vmatpush1.bf16.msra.mxu0 %v2800
      %2829 = vmatprep.subr.bf16.mxu0 0
      %2830 = vmatpush1.bf16.msra.mxu0 %v2799
      %2831 = vmatprep.subr.bf16.mxu0 0
      %2832 = vmatpush2.bf16.msra.mxu0 0
      %2833 = vmatprep.subr.bf16.mxu0 0
      %2834 = vmatpush2.bf16.msra.mxu0 0
      %2835 = vmatprep.subr.bf16.mxu0 0
      %2836 = vmatpush2.bf16.msra.mxu0 0
      %2837 = vmatprep.subr.bf16.mxu0 0
      %2838 = vmatpush2.bf16.msra.mxu0 0
      %2839 = vmatprep.subr.bf16.mxu0 0
      %2840 = vmatpush2.bf16.msra.mxu0 0
      %2841 = vmatprep.subr.bf16.mxu0 0
      %2842 = vmatpush2.bf16.msra.mxu0 0
      %2843 = vmatprep.subr.bf16.mxu0 0
      %2844 = vmatpush2.bf16.msra.mxu0 0
      %2845 = vmatprep.subr.bf16.mxu0 0
      %2846 = vmatpush2.bf16.msra.mxu0 0
      %2847 = vmatprep.mubr.bf16.mxu0 0
      %2848 = vmatmul.mubr.bf16.gmra.mxu0 %v2750
      %v2849 = vpop.f32.mrf.mxu0
      %v2850 = vadd.f32 0.0, %v2849
      %v2851 = vpop.f32.mrf.mxu0
      %v2852 = vpop.f32.mrf.mxu0
      %v2853 = vadd.f32 0.0, %v2852
      %v2854 = vpop.f32.mrf.mxu0
      %2855 = vdwg.mxu0
      %v2856 = vld [vmem:[%s10] sm:$0xf]
      %v2857 = vld [vmem:[%s11] sm:$0x1]
      %v2859 = vlaneseq
      %v2860 = vshrl.u32 %v2859, 7
      %v2861 = vsub.s32 0, %v2860
      %v2862 = vrot.slane %v2857, %v2861
      %vm2864 = vcmask 31744
      %v2866 = vsel %vm2864, %v2850, 0
      %v2869 = vsel %vm2864, %v2853, 0
      %v2872 = vsel %vm768, %v2856, 0
      %2874 = vmatprep.subr.mxu0 0.0
      %2875 = vmatpush1.msra.mxu0 0.0
      %2876 = vmatprep.subr.mxu0 0.0
      %2877 = vmatpush1.msra.mxu0 0.0
      %2878 = vmatprep.subr.mxu0 0.0
      %2879 = vmatpush1.msra.mxu0 0.0
      %2880 = vmatprep.subr.mxu0 0.0
      %2881 = vmatpush1.msra.mxu0 0.0
      %2882 = vmatprep.subr.mxu0 0.0
      %2883 = vmatpush1.msra.mxu0 0.0
      %2884 = vmatprep.subr.mxu0 0.0
      %2885 = vmatpush1.msra.mxu0 0.0
      %2886 = vmatprep.subr.mxu0 0.0
      %2887 = vmatpush1.msra.mxu0 0.0
      %2888 = vmatprep.subr.mxu0 0.0
      %2889 = vmatpush1.msra.mxu0 0.0
      %2890 = vmatprep.subr.mxu0 0.0
      %2891 = vmatpush1.msra.mxu0 0.0
      %2892 = vmatprep.subr.mxu0 0.0
      %2893 = vmatpush1.msra.mxu0 0.0
      %2894 = vmatprep.subr.mxu0 0.0
      %2895 = vmatpush1.msra.mxu0 0.0
      %2896 = vmatprep.subr.mxu0 0.0
      %2897 = vmatpush1.msra.mxu0 0.0
      %2898 = vmatprep.subr.mxu0 0.0
      %2899 = vmatpush1.msra.mxu0 0.0
      %2900 = vmatprep.subr.mxu0 0.0
      %2901 = vmatpush1.msra.mxu0 0.0
      %2902 = vmatprep.subr.mxu0 0.0
      %2903 = vmatpush1.msra.mxu0 0.0
      %2904 = vmatprep.subr.mxu0 0.0
      %2905 = vmatpush1.msra.mxu0 %v2872
      %2906 = vmatprep.subr.mxu0 0.0
      %2907 = vmatpush2.msra.mxu0 0.0
      %2908 = vmatprep.subr.mxu0 0.0
      %2909 = vmatpush2.msra.mxu0 0.0
      %2910 = vmatprep.subr.mxu0 0.0
      %2911 = vmatpush2.msra.mxu0 0.0
      %2912 = vmatprep.subr.mxu0 0.0
      %2913 = vmatpush2.msra.mxu0 0.0
      %2914 = vmatprep.subr.mxu0 0.0
      %2915 = vmatpush2.msra.mxu0 0.0
      %2916 = vmatprep.subr.mxu0 0.0
      %2917 = vmatpush2.msra.mxu0 0.0
      %2918 = vmatprep.subr.mxu0 0.0
      %2919 = vmatpush2.msra.mxu0 0.0
      %2920 = vmatprep.subr.mxu0 0.0
      %2921 = vmatpush2.msra.mxu0 0.0
      %2922 = vmatprep.subr.mxu0 0.0
      %2923 = vmatpush2.msra.mxu0 0.0
      %2924 = vmatprep.subr.mxu0 0.0
      %2925 = vmatpush2.msra.mxu0 0.0
      %2926 = vmatprep.subr.mxu0 0.0
      %2927 = vmatpush2.msra.mxu0 0.0
      %2928 = vmatprep.subr.mxu0 0.0
      %2929 = vmatpush2.msra.mxu0 0.0
      %2930 = vmatprep.subr.mxu0 0.0
      %2931 = vmatpush2.msra.mxu0 0.0
      %2932 = vmatprep.subr.mxu0 0.0
      %2933 = vmatpush2.msra.mxu0 0.0
      %2934 = vmatprep.subr.mxu0 0.0
      %2935 = vmatpush2.msra.mxu0 0.0
      %2936 = vmatprep.subr.mxu0 0.0
      %2937 = vmatpush2.msra.mxu0 0.0
      %2938 = vmatprep.mubr.f32.mxu0 0.0
      %2939 = vmatmul.mubr.f32.gmra.mxu0 %v2866
      %v2940 = vpop.f32.mrf.mxu0
      %v2941 = vadd.f32 %v2862, %v2940
      %v2942 = vpop.f32.mrf.mxu0
      %2943 = vmatprep.mubr.f32.mxu0 0.0
      %2944 = vmatmul.mubr.f32.gmra.mxu0 %v2869
      %v2945 = vpop.f32.mrf.mxu0
      %v2946 = vadd.f32 %v2862, %v2945
      %v2947 = vpop.f32.mrf.mxu0
      %2948 = vdwg.mxu0
      %v2949 = vmax.f32 %v2941, 0.0
      %v2950 = vmax.f32 %v2946, 0.0
      %v2951 = vand.u32 2147483647, %v2941
      %v2952 = vand.u32 2147483647, %v2946
      %v2953 = vsub.f32 0.0, %v2951
      %v2954 = vsub.f32 0.0, %v2952
      %v2955 = vmul.f32 %v2953, 1.442695
      %v2956 = vpow.pop %v2955
      %v2957 = vmul.f32 %v2954, 1.442695
      %v2958 = vpow.pop %v2957
      %v2959 = vadd.f32 %v2956, 1.0
      %v2960 = vadd.f32 %v2958, 1.0
      %v2961 = vlog2.pop %v2959
      %v2962 = vmul.f32 %v2961, 0.6931472
      %v2963 = vlog2.pop %v2960
      %v2964 = vmul.f32 %v2963, 0.6931472
      %v2965 = vadd.f32 %v2949, %v2962
      %v2966 = vadd.f32 %v2950, %v2964
      %v2967 = vld [vmem:[%s12] sm:$0xff]
      %v2968 = vld [vmem:[%s12 + $0x8] sm:$0xff]
      %v2969 = vmul.f32 %v2967, 1.442695
      %v2970 = vpow.pop %v2969
      %v2971 = vmul.f32 %v2968, 1.442695
      %v2972 = vpow.pop %v2971
      %v2973 = vsub.f32 0.0, %v2970
      %v2974 = vsub.f32 0.0, %v2972
      %v2977 = vcombine.high %v2965, %v2965
      %v2979 = vunpack.c.l.s4 1966171168
      %v2980 = vunpack.c.0.s8 %v2979
      %v2981 = vlaneseq
      %v2982 = vshrl.u32 %v2981, 7
      %v2983 = vsub.s32 %v2980, %v2982
      %v2984 = vrot.slane %v2965, %v2983
      %v2986 = vunpack.c.l.s4 1966171168
      %v2987 = vunpack.c.0.s8 %v2986
      %v2988 = vlaneseq
      %v2989 = vshrl.u32 %v2988, 7
      %v2990 = vsub.s32 %v2987, %v2989
      %v2991 = vrot.slane %v2977, %v2990
      %v2992 = vcombine.high %v2984, %v2984
      %v2993 = vcombine.high %v2991, %v2991
      %v2995 = vunpack.c.l.s4 1966171168
      %v2996 = vunpack.c.0.s8 %v2995
      %v2997 = vlaneseq
      %v2998 = vshrl.u32 %v2997, 7
      %v2999 = vsub.s32 %v2996, %v2998
      %v3000 = vrot.slane %v2984, %v2999
      %v3002 = vunpack.c.l.s4 1966171168
      %v3003 = vunpack.c.0.s8 %v3002
      %v3004 = vlaneseq
      %v3005 = vshrl.u32 %v3004, 7
      %v3006 = vsub.s32 %v3003, %v3005
      %v3007 = vrot.slane %v2991, %v3006
      %v3009 = vunpack.c.l.s4 1966171168
      %v3010 = vunpack.c.0.s8 %v3009
      %v3011 = vlaneseq
      %v3012 = vshrl.u32 %v3011, 7
      %v3013 = vsub.s32 %v3010, %v3012
      %v3014 = vrot.slane %v2992, %v3013
      %v3016 = vunpack.c.l.s4 1966171168
      %v3017 = vunpack.c.0.s8 %v3016
      %v3018 = vlaneseq
      %v3019 = vshrl.u32 %v3018, 7
      %v3020 = vsub.s32 %v3017, %v3019
      %v3021 = vrot.slane %v2993, %v3020
      %v3022 = vcombine.high %v3000, %v3000
      %v3023 = vcombine.high %v3007, %v3007
      %v3024 = vcombine.high %v3014, %v3014
      %v3025 = vcombine.high %v3021, %v3021
      %v3026 = vcombine.high %v2966, %v2966
      %v3028 = vunpack.c.l.s4 1966171168
      %v3029 = vunpack.c.0.s8 %v3028
      %v3030 = vlaneseq
      %v3031 = vshrl.u32 %v3030, 7
      %v3032 = vsub.s32 %v3029, %v3031
      %v3033 = vrot.slane %v2966, %v3032
      %v3035 = vunpack.c.l.s4 1966171168
      %v3036 = vunpack.c.0.s8 %v3035
      %v3037 = vlaneseq
      %v3038 = vshrl.u32 %v3037, 7
      %v3039 = vsub.s32 %v3036, %v3038
      %v3040 = vrot.slane %v3026, %v3039
      %v3041 = vcombine.high %v3033, %v3033
      %v3042 = vcombine.high %v3040, %v3040
      %v3044 = vunpack.c.l.s4 1966171168
      %v3045 = vunpack.c.0.s8 %v3044
      %v3046 = vlaneseq
      %v3047 = vshrl.u32 %v3046, 7
      %v3048 = vsub.s32 %v3045, %v3047
      %v3049 = vrot.slane %v3033, %v3048
      %v3051 = vunpack.c.l.s4 1966171168
      %v3052 = vunpack.c.0.s8 %v3051
      %v3053 = vlaneseq
      %v3054 = vshrl.u32 %v3053, 7
      %v3055 = vsub.s32 %v3052, %v3054
      %v3056 = vrot.slane %v3040, %v3055
      %v3058 = vunpack.c.l.s4 1966171168
      %v3059 = vunpack.c.0.s8 %v3058
      %v3060 = vlaneseq
      %v3061 = vshrl.u32 %v3060, 7
      %v3062 = vsub.s32 %v3059, %v3061
      %v3063 = vrot.slane %v3041, %v3062
      %v3065 = vunpack.c.l.s4 1966171168
      %v3066 = vunpack.c.0.s8 %v3065
      %v3067 = vlaneseq
      %v3068 = vshrl.u32 %v3067, 7
      %v3069 = vsub.s32 %v3066, %v3068
      %v3070 = vrot.slane %v3042, %v3069
      %v3071 = vcombine.high %v3049, %v3049
      %v3072 = vcombine.high %v3056, %v3056
      %v3073 = vcombine.high %v3063, %v3063
      %v3074 = vcombine.high %v3070, %v3070
      %v3075 = vlaneseq
      %v3076 = vshrl.u32 %v3075, 7
      %v3077 = vsub.s32 0, %v3076
      %v3078 = vrot.slane %v3000, %v3077
      %v3079 = vlaneseq
      %v3080 = vshrl.u32 %v3079, 7
      %v3081 = vsub.s32 0, %v3080
      %v3082 = vrot.slane %v3014, %v3081
      %v3083 = vlaneseq
      %v3084 = vshrl.u32 %v3083, 7
      %v3085 = vsub.s32 0, %v3084
      %v3086 = vrot.slane %v3022, %v3085
      %v3087 = vlaneseq
      %v3088 = vshrl.u32 %v3087, 7
      %v3089 = vsub.s32 0, %v3088
      %v3090 = vrot.slane %v3024, %v3089
      %v3091 = vlaneseq
      %v3092 = vshrl.u32 %v3091, 7
      %v3093 = vsub.s32 0, %v3092
      %v3094 = vrot.slane %v3007, %v3093
      %v3095 = vlaneseq
      %v3096 = vshrl.u32 %v3095, 7
      %v3097 = vsub.s32 0, %v3096
      %v3098 = vrot.slane %v3021, %v3097
      %v3099 = vlaneseq
      %v3100 = vshrl.u32 %v3099, 7
      %v3101 = vsub.s32 0, %v3100
      %v3102 = vrot.slane %v3023, %v3101
      %v3103 = vlaneseq
      %v3104 = vshrl.u32 %v3103, 7
      %v3105 = vsub.s32 0, %v3104
      %v3106 = vrot.slane %v3025, %v3105
      %v3107 = vlaneseq
      %v3108 = vshrl.u32 %v3107, 7
      %v3109 = vsub.s32 0, %v3108
      %v3110 = vrot.slane %v3049, %v3109
      %v3111 = vlaneseq
      %v3112 = vshrl.u32 %v3111, 7
      %v3113 = vsub.s32 0, %v3112
      %v3114 = vrot.slane %v3063, %v3113
      %v3115 = vlaneseq
      %v3116 = vshrl.u32 %v3115, 7
      %v3117 = vsub.s32 0, %v3116
      %v3118 = vrot.slane %v3071, %v3117
      %v3119 = vlaneseq
      %v3120 = vshrl.u32 %v3119, 7
      %v3121 = vsub.s32 0, %v3120
      %v3122 = vrot.slane %v3073, %v3121
      %v3123 = vlaneseq
      %v3124 = vshrl.u32 %v3123, 7
      %v3125 = vsub.s32 0, %v3124
      %v3126 = vrot.slane %v3056, %v3125
      %v3127 = vlaneseq
      %v3128 = vshrl.u32 %v3127, 7
      %v3129 = vsub.s32 0, %v3128
      %v3130 = vrot.slane %v3070, %v3129
      %v3131 = vlaneseq
      %v3132 = vshrl.u32 %v3131, 7
      %v3133 = vsub.s32 0, %v3132
      %v3134 = vrot.slane %v3072, %v3133
      %v3135 = vlaneseq
      %v3136 = vshrl.u32 %v3135, 7
      %v3137 = vsub.s32 0, %v3136
      %v3138 = vrot.slane %v3074, %v3137
      %v3155 = vmul.f32 %v3078, %v2973
      %v3156 = vmul.f32 %v3078, %v2974
      %v3157 = vmul.f32 %v3082, %v2973
      %v3158 = vmul.f32 %v3082, %v2974
      %v3159 = vmul.f32 %v3086, %v2973
      %v3160 = vmul.f32 %v3086, %v2974
      %v3161 = vmul.f32 %v3090, %v2973
      %v3162 = vmul.f32 %v3090, %v2974
      %v3163 = vmul.f32 %v3094, %v2973
      %v3164 = vmul.f32 %v3094, %v2974
      %v3165 = vmul.f32 %v3098, %v2973
      %v3166 = vmul.f32 %v3098, %v2974
      %v3167 = vmul.f32 %v3102, %v2973
      %v3168 = vmul.f32 %v3102, %v2974
      %v3169 = vmul.f32 %v3106, %v2973
      %v3170 = vmul.f32 %v3106, %v2974
      %v3171 = vmul.f32 %v3110, %v2973
      %v3172 = vmul.f32 %v3110, %v2974
      %v3173 = vmul.f32 %v3114, %v2973
      %v3174 = vmul.f32 %v3114, %v2974
      %v3175 = vmul.f32 %v3118, %v2973
      %v3176 = vmul.f32 %v3118, %v2974
      %v3177 = vmul.f32 %v3122, %v2973
      %v3178 = vmul.f32 %v3122, %v2974
      %v3179 = vmul.f32 %v3126, %v2973
      %v3180 = vmul.f32 %v3126, %v2974
      %v3181 = vmul.f32 %v3130, %v2973
      %v3182 = vmul.f32 %v3130, %v2974
      %v3183 = vmul.f32 %v3134, %v2973
      %v3184 = vmul.f32 %v3134, %v2974
      %v3185 = vmul.f32 %v3138, %v2973
      %v3186 = vmul.f32 %v3138, %v2974
      %v3187 = vmul.f32 %v3155, 1.442695
      %v3188 = vpow.pop %v3187
      %v3189 = vmul.f32 %v3156, 1.442695
      %v3190 = vpow.pop %v3189
      %v3191 = vmul.f32 %v3157, 1.442695
      %v3192 = vpow.pop %v3191
      %v3193 = vmul.f32 %v3158, 1.442695
      %v3194 = vpow.pop %v3193
      %v3195 = vmul.f32 %v3159, 1.442695
      %v3196 = vpow.pop %v3195
      %v3197 = vmul.f32 %v3160, 1.442695
      %v3198 = vpow.pop %v3197
      %v3199 = vmul.f32 %v3161, 1.442695
      %v3200 = vpow.pop %v3199
      %v3201 = vmul.f32 %v3162, 1.442695
      %v3202 = vpow.pop %v3201
      %v3203 = vmul.f32 %v3163, 1.442695
      %v3204 = vpow.pop %v3203
      %v3205 = vmul.f32 %v3164, 1.442695
      %v3206 = vpow.pop %v3205
      %v3207 = vmul.f32 %v3165, 1.442695
      %v3208 = vpow.pop %v3207
      %v3209 = vmul.f32 %v3166, 1.442695
      %v3210 = vpow.pop %v3209
      %v3211 = vmul.f32 %v3167, 1.442695
      %v3212 = vpow.pop %v3211
      %v3213 = vmul.f32 %v3168, 1.442695
      %v3214 = vpow.pop %v3213
      %v3215 = vmul.f32 %v3169, 1.442695
      %v3216 = vpow.pop %v3215
      %v3217 = vmul.f32 %v3170, 1.442695
      %v3218 = vpow.pop %v3217
      %v3219 = vmul.f32 %v3171, 1.442695
      %v3220 = vpow.pop %v3219
      %v3221 = vmul.f32 %v3172, 1.442695
      %v3222 = vpow.pop %v3221
      %v3223 = vmul.f32 %v3173, 1.442695
      %v3224 = vpow.pop %v3223
      %v3225 = vmul.f32 %v3174, 1.442695
      %v3226 = vpow.pop %v3225
      %v3227 = vmul.f32 %v3175, 1.442695
      %v3228 = vpow.pop %v3227
      %v3229 = vmul.f32 %v3176, 1.442695
      %v3230 = vpow.pop %v3229
      %v3231 = vmul.f32 %v3177, 1.442695
      %v3232 = vpow.pop %v3231
      %v3233 = vmul.f32 %v3178, 1.442695
      %v3234 = vpow.pop %v3233
      %v3235 = vmul.f32 %v3179, 1.442695
      %v3236 = vpow.pop %v3235
      %v3237 = vmul.f32 %v3180, 1.442695
      %v3238 = vpow.pop %v3237
      %v3239 = vmul.f32 %v3181, 1.442695
      %v3240 = vpow.pop %v3239
      %v3241 = vmul.f32 %v3182, 1.442695
      %v3242 = vpow.pop %v3241
      %v3243 = vmul.f32 %v3183, 1.442695
      %v3244 = vpow.pop %v3243
      %v3245 = vmul.f32 %v3184, 1.442695
      %v3246 = vpow.pop %v3245
      %v3247 = vmul.f32 %v3185, 1.442695
      %v3248 = vpow.pop %v3247
      %v3249 = vmul.f32 %v3186, 1.442695
      %v3250 = vpow.pop %v3249
      %v3251 = vlaneseq
      %v3252 = vshrl.u32 %v3251, 7
      %v3253 = vsub.s32 0, %v3252
      %v3254 = vrot.slane %v2850, %v3253
      %s3256 = sor.u32 256, 4
      %3257 = vbcast.lane.b32.xlu0 %v3254, %s3256
      %v3258 = vpop.permute.xlu0 %3257
      %s3260 = sor.u32 256, 12
      %3261 = vbcast.lane.b32.xlu0 %v3254, %s3260
      %v3262 = vpop.permute.xlu0 %3261
      %v3263 = vlaneseq
      %v3264 = vshrl.u32 %v3263, 7
      %v3265 = vsub.s32 1, %v3264
      %v3266 = vrot.slane %v2850, %v3265
      %s3268 = sor.u32 256, 4
      %3269 = vbcast.lane.b32.xlu0 %v3266, %s3268
      %v3270 = vpop.permute.xlu0 %3269
      %s3272 = sor.u32 256, 12
      %3273 = vbcast.lane.b32.xlu0 %v3266, %s3272
      %v3274 = vpop.permute.xlu0 %3273
      %v3275 = vlaneseq
      %v3276 = vshrl.u32 %v3275, 7
      %v3277 = vsub.s32 2, %v3276
      %v3278 = vrot.slane %v2850, %v3277
      %s3280 = sor.u32 256, 4
      %3281 = vbcast.lane.b32.xlu0 %v3278, %s3280
      %v3282 = vpop.permute.xlu0 %3281
      %s3284 = sor.u32 256, 12
      %3285 = vbcast.lane.b32.xlu0 %v3278, %s3284
      %v3286 = vpop.permute.xlu0 %3285
      %v3287 = vlaneseq
      %v3288 = vshrl.u32 %v3287, 7
      %v3289 = vsub.s32 3, %v3288
      %v3290 = vrot.slane %v2850, %v3289
      %s3292 = sor.u32 256, 4
      %3293 = vbcast.lane.b32.xlu0 %v3290, %s3292
      %v3294 = vpop.permute.xlu0 %3293
      %s3296 = sor.u32 256, 12
      %3297 = vbcast.lane.b32.xlu0 %v3290, %s3296
      %v3298 = vpop.permute.xlu0 %3297
      %v3299 = vlaneseq
      %v3300 = vshrl.u32 %v3299, 7
      %v3301 = vsub.s32 4, %v3300
      %v3302 = vrot.slane %v2850, %v3301
      %s3304 = sor.u32 256, 4
      %3305 = vbcast.lane.b32.xlu0 %v3302, %s3304
      %v3306 = vpop.permute.xlu0 %3305
      %s3308 = sor.u32 256, 12
      %3309 = vbcast.lane.b32.xlu0 %v3302, %s3308
      %v3310 = vpop.permute.xlu0 %3309
      %v3311 = vlaneseq
      %v3312 = vshrl.u32 %v3311, 7
      %v3313 = vsub.s32 5, %v3312
      %v3314 = vrot.slane %v2850, %v3313
      %s3316 = sor.u32 256, 4
      %3317 = vbcast.lane.b32.xlu0 %v3314, %s3316
      %v3318 = vpop.permute.xlu0 %3317
      %s3320 = sor.u32 256, 12
      %3321 = vbcast.lane.b32.xlu0 %v3314, %s3320
      %v3322 = vpop.permute.xlu0 %3321
      %v3323 = vlaneseq
      %v3324 = vshrl.u32 %v3323, 7
      %v3325 = vsub.s32 6, %v3324
      %v3326 = vrot.slane %v2850, %v3325
      %s3328 = sor.u32 256, 4
      %3329 = vbcast.lane.b32.xlu0 %v3326, %s3328
      %v3330 = vpop.permute.xlu0 %3329
      %s3332 = sor.u32 256, 12
      %3333 = vbcast.lane.b32.xlu0 %v3326, %s3332
      %v3334 = vpop.permute.xlu0 %3333
      %v3335 = vlaneseq
      %v3336 = vshrl.u32 %v3335, 7
      %v3337 = vsub.s32 7, %v3336
      %v3338 = vrot.slane %v2850, %v3337
      %s3340 = sor.u32 256, 4
      %3341 = vbcast.lane.b32.xlu0 %v3338, %s3340
      %v3342 = vpop.permute.xlu0 %3341
      %s3344 = sor.u32 256, 12
      %3345 = vbcast.lane.b32.xlu0 %v3338, %s3344
      %v3346 = vpop.permute.xlu0 %3345
      %v3347 = vlaneseq
      %v3348 = vshrl.u32 %v3347, 7
      %v3349 = vsub.s32 0, %v3348
      %v3350 = vrot.slane %v2853, %v3349
      %s3352 = sor.u32 256, 4
      %3353 = vbcast.lane.b32.xlu0 %v3350, %s3352
      %v3354 = vpop.permute.xlu0 %3353
      %s3356 = sor.u32 256, 12
      %3357 = vbcast.lane.b32.xlu0 %v3350, %s3356
      %v3358 = vpop.permute.xlu0 %3357
      %v3359 = vlaneseq
      %v3360 = vshrl.u32 %v3359, 7
      %v3361 = vsub.s32 1, %v3360
      %v3362 = vrot.slane %v2853, %v3361
      %s3364 = sor.u32 256, 4
      %3365 = vbcast.lane.b32.xlu0 %v3362, %s3364
      %v3366 = vpop.permute.xlu0 %3365
      %s3368 = sor.u32 256, 12
      %3369 = vbcast.lane.b32.xlu0 %v3362, %s3368
      %v3370 = vpop.permute.xlu0 %3369
      %v3371 = vlaneseq
      %v3372 = vshrl.u32 %v3371, 7
      %v3373 = vsub.s32 2, %v3372
      %v3374 = vrot.slane %v2853, %v3373
      %s3376 = sor.u32 256, 4
      %3377 = vbcast.lane.b32.xlu0 %v3374, %s3376
      %v3378 = vpop.permute.xlu0 %3377
      %s3380 = sor.u32 256, 12
      %3381 = vbcast.lane.b32.xlu0 %v3374, %s3380
      %v3382 = vpop.permute.xlu0 %3381
      %v3383 = vlaneseq
      %v3384 = vshrl.u32 %v3383, 7
      %v3385 = vsub.s32 3, %v3384
      %v3386 = vrot.slane %v2853, %v3385
      %s3388 = sor.u32 256, 4
      %3389 = vbcast.lane.b32.xlu0 %v3386, %s3388
      %v3390 = vpop.permute.xlu0 %3389
      %s3392 = sor.u32 256, 12
      %3393 = vbcast.lane.b32.xlu0 %v3386, %s3392
      %v3394 = vpop.permute.xlu0 %3393
      %v3395 = vlaneseq
      %v3396 = vshrl.u32 %v3395, 7
      %v3397 = vsub.s32 4, %v3396
      %v3398 = vrot.slane %v2853, %v3397
      %s3400 = sor.u32 256, 4
      %3401 = vbcast.lane.b32.xlu0 %v3398, %s3400
      %v3402 = vpop.permute.xlu0 %3401
      %s3404 = sor.u32 256, 12
      %3405 = vbcast.lane.b32.xlu0 %v3398, %s3404
      %v3406 = vpop.permute.xlu0 %3405
      %v3407 = vlaneseq
      %v3408 = vshrl.u32 %v3407, 7
      %v3409 = vsub.s32 5, %v3408
      %v3410 = vrot.slane %v2853, %v3409
      %s3412 = sor.u32 256, 4
      %3413 = vbcast.lane.b32.xlu0 %v3410, %s3412
      %v3414 = vpop.permute.xlu0 %3413
      %s3416 = sor.u32 256, 12
      %3417 = vbcast.lane.b32.xlu0 %v3410, %s3416
      %v3418 = vpop.permute.xlu0 %3417
      %v3419 = vlaneseq
      %v3420 = vshrl.u32 %v3419, 7
      %v3421 = vsub.s32 6, %v3420
      %v3422 = vrot.slane %v2853, %v3421
      %s3424 = sor.u32 256, 4
      %3425 = vbcast.lane.b32.xlu0 %v3422, %s3424
      %v3426 = vpop.permute.xlu0 %3425
      %s3428 = sor.u32 256, 12
      %3429 = vbcast.lane.b32.xlu0 %v3422, %s3428
      %v3430 = vpop.permute.xlu0 %3429
      %v3431 = vlaneseq
      %v3432 = vshrl.u32 %v3431, 7
      %v3433 = vsub.s32 7, %v3432
      %v3434 = vrot.slane %v2853, %v3433
      %s3436 = sor.u32 256, 4
      %3437 = vbcast.lane.b32.xlu0 %v3434, %s3436
      %v3438 = vpop.permute.xlu0 %3437
      %s3440 = sor.u32 256, 12
      %3441 = vbcast.lane.b32.xlu0 %v3434, %s3440
      %v3442 = vpop.permute.xlu0 %3441
      %v3443 = vmul.f32 %v2965, %v2748
      %v3444 = vmul.f32 %v2966, %v2749
      %v3447 = vcombine.high %v3443, %v3443
      %v3449 = vunpack.c.l.s4 1966171168
      %v3450 = vunpack.c.0.s8 %v3449
      %v3451 = vlaneseq
      %v3452 = vshrl.u32 %v3451, 7
      %v3453 = vsub.s32 %v3450, %v3452
      %v3454 = vrot.slane %v3443, %v3453
      %v3456 = vunpack.c.l.s4 1966171168
      %v3457 = vunpack.c.0.s8 %v3456
      %v3458 = vlaneseq
      %v3459 = vshrl.u32 %v3458, 7
      %v3460 = vsub.s32 %v3457, %v3459
      %v3461 = vrot.slane %v3447, %v3460
      %v3462 = vcombine.high %v3454, %v3454
      %v3463 = vcombine.high %v3461, %v3461
      %v3465 = vunpack.c.l.s4 1966171168
      %v3466 = vunpack.c.0.s8 %v3465
      %v3467 = vlaneseq
      %v3468 = vshrl.u32 %v3467, 7
      %v3469 = vsub.s32 %v3466, %v3468
      %v3470 = vrot.slane %v3454, %v3469
      %v3472 = vunpack.c.l.s4 1966171168
      %v3473 = vunpack.c.0.s8 %v3472
      %v3474 = vlaneseq
      %v3475 = vshrl.u32 %v3474, 7
      %v3476 = vsub.s32 %v3473, %v3475
      %v3477 = vrot.slane %v3461, %v3476
      %v3479 = vunpack.c.l.s4 1966171168
      %v3480 = vunpack.c.0.s8 %v3479
      %v3481 = vlaneseq
      %v3482 = vshrl.u32 %v3481, 7
      %v3483 = vsub.s32 %v3480, %v3482
      %v3484 = vrot.slane %v3462, %v3483
      %v3486 = vunpack.c.l.s4 1966171168
      %v3487 = vunpack.c.0.s8 %v3486
      %v3488 = vlaneseq
      %v3489 = vshrl.u32 %v3488, 7
      %v3490 = vsub.s32 %v3487, %v3489
      %v3491 = vrot.slane %v3463, %v3490
      %v3492 = vcombine.high %v3470, %v3470
      %v3493 = vcombine.high %v3477, %v3477
      %v3494 = vcombine.high %v3484, %v3484
      %v3495 = vcombine.high %v3491, %v3491
      %v3496 = vcombine.high %v3444, %v3444
      %v3498 = vunpack.c.l.s4 1966171168
      %v3499 = vunpack.c.0.s8 %v3498
      %v3500 = vlaneseq
      %v3501 = vshrl.u32 %v3500, 7
      %v3502 = vsub.s32 %v3499, %v3501
      %v3503 = vrot.slane %v3444, %v3502
      %v3505 = vunpack.c.l.s4 1966171168
      %v3506 = vunpack.c.0.s8 %v3505
      %v3507 = vlaneseq
      %v3508 = vshrl.u32 %v3507, 7
      %v3509 = vsub.s32 %v3506, %v3508
      %v3510 = vrot.slane %v3496, %v3509
      %v3511 = vcombine.high %v3503, %v3503
      %v3512 = vcombine.high %v3510, %v3510
      %v3514 = vunpack.c.l.s4 1966171168
      %v3515 = vunpack.c.0.s8 %v3514
      %v3516 = vlaneseq
      %v3517 = vshrl.u32 %v3516, 7
      %v3518 = vsub.s32 %v3515, %v3517
      %v3519 = vrot.slane %v3503, %v3518
      %v3521 = vunpack.c.l.s4 1966171168
      %v3522 = vunpack.c.0.s8 %v3521
      %v3523 = vlaneseq
      %v3524 = vshrl.u32 %v3523, 7
      %v3525 = vsub.s32 %v3522, %v3524
      %v3526 = vrot.slane %v3510, %v3525
      %v3528 = vunpack.c.l.s4 1966171168
      %v3529 = vunpack.c.0.s8 %v3528
      %v3530 = vlaneseq
      %v3531 = vshrl.u32 %v3530, 7
      %v3532 = vsub.s32 %v3529, %v3531
      %v3533 = vrot.slane %v3511, %v3532
      %v3535 = vunpack.c.l.s4 1966171168
      %v3536 = vunpack.c.0.s8 %v3535
      %v3537 = vlaneseq
      %v3538 = vshrl.u32 %v3537, 7
      %v3539 = vsub.s32 %v3536, %v3538
      %v3540 = vrot.slane %v3512, %v3539
      %v3541 = vcombine.high %v3519, %v3519
      %v3542 = vcombine.high %v3526, %v3526
      %v3543 = vcombine.high %v3533, %v3533
      %v3544 = vcombine.high %v3540, %v3540
      %v3545 = vlaneseq
      %v3546 = vshrl.u32 %v3545, 7
      %v3547 = vsub.s32 0, %v3546
      %v3548 = vrot.slane %v3470, %v3547
      %v3549 = vlaneseq
      %v3550 = vshrl.u32 %v3549, 7
      %v3551 = vsub.s32 0, %v3550
      %v3552 = vrot.slane %v3484, %v3551
      %v3553 = vlaneseq
      %v3554 = vshrl.u32 %v3553, 7
      %v3555 = vsub.s32 0, %v3554
      %v3556 = vrot.slane %v3492, %v3555
      %v3557 = vlaneseq
      %v3558 = vshrl.u32 %v3557, 7
      %v3559 = vsub.s32 0, %v3558
      %v3560 = vrot.slane %v3494, %v3559
      %v3561 = vlaneseq
      %v3562 = vshrl.u32 %v3561, 7
      %v3563 = vsub.s32 0, %v3562
      %v3564 = vrot.slane %v3477, %v3563
      %v3565 = vlaneseq
      %v3566 = vshrl.u32 %v3565, 7
      %v3567 = vsub.s32 0, %v3566
      %v3568 = vrot.slane %v3491, %v3567
      %v3569 = vlaneseq
      %v3570 = vshrl.u32 %v3569, 7
      %v3571 = vsub.s32 0, %v3570
      %v3572 = vrot.slane %v3493, %v3571
      %v3573 = vlaneseq
      %v3574 = vshrl.u32 %v3573, 7
      %v3575 = vsub.s32 0, %v3574
      %v3576 = vrot.slane %v3495, %v3575
      %v3577 = vlaneseq
      %v3578 = vshrl.u32 %v3577, 7
      %v3579 = vsub.s32 0, %v3578
      %v3580 = vrot.slane %v3519, %v3579
      %v3581 = vlaneseq
      %v3582 = vshrl.u32 %v3581, 7
      %v3583 = vsub.s32 0, %v3582
      %v3584 = vrot.slane %v3533, %v3583
      %v3585 = vlaneseq
      %v3586 = vshrl.u32 %v3585, 7
      %v3587 = vsub.s32 0, %v3586
      %v3588 = vrot.slane %v3541, %v3587
      %v3589 = vlaneseq
      %v3590 = vshrl.u32 %v3589, 7
      %v3591 = vsub.s32 0, %v3590
      %v3592 = vrot.slane %v3543, %v3591
      %v3593 = vlaneseq
      %v3594 = vshrl.u32 %v3593, 7
      %v3595 = vsub.s32 0, %v3594
      %v3596 = vrot.slane %v3526, %v3595
      %v3597 = vlaneseq
      %v3598 = vshrl.u32 %v3597, 7
      %v3599 = vsub.s32 0, %v3598
      %v3600 = vrot.slane %v3540, %v3599
      %v3601 = vlaneseq
      %v3602 = vshrl.u32 %v3601, 7
      %v3603 = vsub.s32 0, %v3602
      %v3604 = vrot.slane %v3542, %v3603
      %v3605 = vlaneseq
      %v3606 = vshrl.u32 %v3605, 7
      %v3607 = vsub.s32 0, %v3606
      %v3608 = vrot.slane %v3544, %v3607
      %v3625 = vmul.f32 %v3258, %v3548
      %v3626 = vmul.f32 %v3262, %v3548
      %v3627 = vmul.f32 %v3270, %v3552
      %v3628 = vmul.f32 %v3274, %v3552
      %v3629 = vmul.f32 %v3282, %v3556
      %v3630 = vmul.f32 %v3286, %v3556
      %v3631 = vmul.f32 %v3294, %v3560
      %v3632 = vmul.f32 %v3298, %v3560
      %v3633 = vmul.f32 %v3306, %v3564
      %v3634 = vmul.f32 %v3310, %v3564
      %v3635 = vmul.f32 %v3318, %v3568
      %v3636 = vmul.f32 %v3322, %v3568
      %v3637 = vmul.f32 %v3330, %v3572
      %v3638 = vmul.f32 %v3334, %v3572
      %v3639 = vmul.f32 %v3342, %v3576
      %v3640 = vmul.f32 %v3346, %v3576
      %v3641 = vmul.f32 %v3354, %v3580
      %v3642 = vmul.f32 %v3358, %v3580
      %v3643 = vmul.f32 %v3366, %v3584
      %v3644 = vmul.f32 %v3370, %v3584
      %v3645 = vmul.f32 %v3378, %v3588
      %v3646 = vmul.f32 %v3382, %v3588
      %v3647 = vmul.f32 %v3390, %v3592
      %v3648 = vmul.f32 %v3394, %v3592
      %v3649 = vmul.f32 %v3402, %v3596
      %v3650 = vmul.f32 %v3406, %v3596
      %v3651 = vmul.f32 %v3414, %v3600
      %v3652 = vmul.f32 %v3418, %v3600
      %v3653 = vmul.f32 %v3426, %v3604
      %v3654 = vmul.f32 %v3430, %v3604
      %v3655 = vmul.f32 %v3438, %v3608
      %v3656 = vmul.f32 %v3442, %v3608
      %v3657 = vmul.f32 %v3188, 0.0
      %v3658 = vmul.f32 %v3190, 0.0
      %v3659 = vmul.f32 %v3220, 0.0
      %v3660 = vmul.f32 %v3222, 0.0
      %v3661 = vadd.f32 %v3657, %v3625
      %v3662 = vadd.f32 %v3658, %v3626
      %v3663 = vadd.f32 %v3659, %v3641
      %v3664 = vadd.f32 %v3660, %v3642
      %s3666 = sor.u32 256, 20
      %3667 = vbcast.lane.b32.xlu0 %v3254, %s3666
      %v3668 = vpop.permute.xlu0 %3667
      %s3670 = sor.u32 256, 28
      %3671 = vbcast.lane.b32.xlu0 %v3254, %s3670
      %v3672 = vpop.permute.xlu0 %3671
      %s3674 = sor.u32 256, 20
      %3675 = vbcast.lane.b32.xlu0 %v3350, %s3674
      %v3676 = vpop.permute.xlu0 %3675
      %s3678 = sor.u32 256, 28
      %3679 = vbcast.lane.b32.xlu0 %v3350, %s3678
      %v3680 = vpop.permute.xlu0 %3679
      %v3681 = vmul.f32 %v3668, %v3661
      %v3682 = vmul.f32 %v3672, %v3662
      %v3683 = vmul.f32 %v3676, %v3663
      %v3684 = vmul.f32 %v3680, %v3664
      %v3685 = vadd.f32 %v3681, %v3682
      %v3686 = vrot.slane %v3685, 4
      %v3687 = vadd.f32 %v3685, %v3686
      %v3688 = vrot.slane %v3687, 2
      %v3689 = vadd.f32 %v3687, %v3688
      %v3690 = vrot.slane %v3689, 1
      %v3691 = vadd.f32 %v3689, %v3690
      %v3692 = vadd.f32 %v3683, %v3684
      %v3693 = vrot.slane %v3692, 4
      %v3694 = vadd.f32 %v3692, %v3693
      %v3695 = vrot.slane %v3694, 2
      %v3696 = vadd.f32 %v3694, %v3695
      %v3697 = vrot.slane %v3696, 1
      %v3698 = vadd.f32 %v3696, %v3697
      %3699 = vst [vmem:[#allocation2] sm:$0x1] %v3691
      %3700 = vst [vmem:[#allocation2 + $0x8] sm:$0x1] %v3698
      %v3701 = vmul.f32 %v3192, %v3661
      %v3702 = vmul.f32 %v3194, %v3662
      %v3703 = vmul.f32 %v3224, %v3663
      %v3704 = vmul.f32 %v3226, %v3664
      %v3705 = vadd.f32 %v3701, %v3627
      %v3706 = vadd.f32 %v3702, %v3628
      %v3707 = vadd.f32 %v3703, %v3643
      %v3708 = vadd.f32 %v3704, %v3644
      %s3710 = sor.u32 256, 20
      %3711 = vbcast.lane.b32.xlu0 %v3266, %s3710
      %v3712 = vpop.permute.xlu0 %3711
      %s3714 = sor.u32 256, 28
      %3715 = vbcast.lane.b32.xlu0 %v3266, %s3714
      %v3716 = vpop.permute.xlu0 %3715
      %s3718 = sor.u32 256, 20
      %3719 = vbcast.lane.b32.xlu0 %v3362, %s3718
      %v3720 = vpop.permute.xlu0 %3719
      %s3722 = sor.u32 256, 28
      %3723 = vbcast.lane.b32.xlu0 %v3362, %s3722
      %v3724 = vpop.permute.xlu0 %3723
      %v3725 = vmul.f32 %v3712, %v3705
      %v3726 = vmul.f32 %v3716, %v3706
      %v3727 = vmul.f32 %v3720, %v3707
      %v3728 = vmul.f32 %v3724, %v3708
      %v3729 = vadd.f32 %v3725, %v3726
      %v3730 = vrot.slane %v3729, 4
      %v3731 = vadd.f32 %v3729, %v3730
      %v3732 = vrot.slane %v3731, 2
      %v3733 = vadd.f32 %v3731, %v3732
      %v3734 = vrot.slane %v3733, 1
      %v3735 = vadd.f32 %v3733, %v3734
      %v3736 = vadd.f32 %v3727, %v3728
      %v3737 = vrot.slane %v3736, 4
      %v3738 = vadd.f32 %v3736, %v3737
      %v3739 = vrot.slane %v3738, 2
      %v3740 = vadd.f32 %v3738, %v3739
      %v3741 = vrot.slane %v3740, 1
      %v3742 = vadd.f32 %v3740, %v3741
      %3743 = vst [vmem:[#allocation2 + $0x1] sm:$0x1] %v3735
      %3744 = vst [vmem:[#allocation2 + $0x9] sm:$0x1] %v3742
      %v3745 = vmul.f32 %v3196, %v3705
      %v3746 = vmul.f32 %v3198, %v3706
      %v3747 = vmul.f32 %v3228, %v3707
      %v3748 = vmul.f32 %v3230, %v3708
      %v3749 = vadd.f32 %v3745, %v3629
      %v3750 = vadd.f32 %v3746, %v3630
      %v3751 = vadd.f32 %v3747, %v3645
      %v3752 = vadd.f32 %v3748, %v3646
      %s3754 = sor.u32 256, 20
      %3755 = vbcast.lane.b32.xlu0 %v3278, %s3754
      %v3756 = vpop.permute.xlu0 %3755
      %s3758 = sor.u32 256, 28
      %3759 = vbcast.lane.b32.xlu0 %v3278, %s3758
      %v3760 = vpop.permute.xlu0 %3759
      %s3762 = sor.u32 256, 20
      %3763 = vbcast.lane.b32.xlu0 %v3374, %s3762
      %v3764 = vpop.permute.xlu0 %3763
      %s3766 = sor.u32 256, 28
      %3767 = vbcast.lane.b32.xlu0 %v3374, %s3766
      %v3768 = vpop.permute.xlu0 %3767
      %v3769 = vmul.f32 %v3756, %v3749
      %v3770 = vmul.f32 %v3760, %v3750
      %v3771 = vmul.f32 %v3764, %v3751
      %v3772 = vmul.f32 %v3768, %v3752
      %v3773 = vadd.f32 %v3769, %v3770
      %v3774 = vrot.slane %v3773, 4
      %v3775 = vadd.f32 %v3773, %v3774
      %v3776 = vrot.slane %v3775, 2
      %v3777 = vadd.f32 %v3775, %v3776
      %v3778 = vrot.slane %v3777, 1
      %v3779 = vadd.f32 %v3777, %v3778
      %v3780 = vadd.f32 %v3771, %v3772
      %v3781 = vrot.slane %v3780, 4
      %v3782 = vadd.f32 %v3780, %v3781
      %v3783 = vrot.slane %v3782, 2
      %v3784 = vadd.f32 %v3782, %v3783
      %v3785 = vrot.slane %v3784, 1
      %v3786 = vadd.f32 %v3784, %v3785
      %3787 = vst [vmem:[#allocation2 + $0x2] sm:$0x1] %v3779
      %3788 = vst [vmem:[#allocation2 + $0xa] sm:$0x1] %v3786
      %v3789 = vmul.f32 %v3200, %v3749
      %v3790 = vmul.f32 %v3202, %v3750
      %v3791 = vmul.f32 %v3232, %v3751
      %v3792 = vmul.f32 %v3234, %v3752
      %v3793 = vadd.f32 %v3789, %v3631
      %v3794 = vadd.f32 %v3790, %v3632
      %v3795 = vadd.f32 %v3791, %v3647
      %v3796 = vadd.f32 %v3792, %v3648
      %s3798 = sor.u32 256, 20
      %3799 = vbcast.lane.b32.xlu0 %v3290, %s3798
      %v3800 = vpop.permute.xlu0 %3799
      %s3802 = sor.u32 256, 28
      %3803 = vbcast.lane.b32.xlu0 %v3290, %s3802
      %v3804 = vpop.permute.xlu0 %3803
      %s3806 = sor.u32 256, 20
      %3807 = vbcast.lane.b32.xlu0 %v3386, %s3806
      %v3808 = vpop.permute.xlu0 %3807
      %s3810 = sor.u32 256, 28
      %3811 = vbcast.lane.b32.xlu0 %v3386, %s3810
      %v3812 = vpop.permute.xlu0 %3811
      %v3813 = vmul.f32 %v3800, %v3793
      %v3814 = vmul.f32 %v3804, %v3794
      %v3815 = vmul.f32 %v3808, %v3795
      %v3816 = vmul.f32 %v3812, %v3796
      %v3817 = vadd.f32 %v3813, %v3814
      %v3818 = vrot.slane %v3817, 4
      %v3819 = vadd.f32 %v3817, %v3818
      %v3820 = vrot.slane %v3819, 2
      %v3821 = vadd.f32 %v3819, %v3820
      %v3822 = vrot.slane %v3821, 1
      %v3823 = vadd.f32 %v3821, %v3822
      %v3824 = vadd.f32 %v3815, %v3816
      %v3825 = vrot.slane %v3824, 4
      %v3826 = vadd.f32 %v3824, %v3825
      %v3827 = vrot.slane %v3826, 2
      %v3828 = vadd.f32 %v3826, %v3827
      %v3829 = vrot.slane %v3828, 1
      %v3830 = vadd.f32 %v3828, %v3829
      %3831 = vst [vmem:[#allocation2 + $0x3] sm:$0x1] %v3823
      %3832 = vst [vmem:[#allocation2 + $0xb] sm:$0x1] %v3830
      %v3833 = vmul.f32 %v3204, %v3793
      %v3834 = vmul.f32 %v3206, %v3794
      %v3835 = vmul.f32 %v3236, %v3795
      %v3836 = vmul.f32 %v3238, %v3796
      %v3837 = vadd.f32 %v3833, %v3633
      %v3838 = vadd.f32 %v3834, %v3634
      %v3839 = vadd.f32 %v3835, %v3649
      %v3840 = vadd.f32 %v3836, %v3650
      %s3842 = sor.u32 256, 20
      %3843 = vbcast.lane.b32.xlu0 %v3302, %s3842
      %v3844 = vpop.permute.xlu0 %3843
      %s3846 = sor.u32 256, 28
      %3847 = vbcast.lane.b32.xlu0 %v3302, %s3846
      %v3848 = vpop.permute.xlu0 %3847
      %s3850 = sor.u32 256, 20
      %3851 = vbcast.lane.b32.xlu0 %v3398, %s3850
      %v3852 = vpop.permute.xlu0 %3851
      %s3854 = sor.u32 256, 28
      %3855 = vbcast.lane.b32.xlu0 %v3398, %s3854
      %v3856 = vpop.permute.xlu0 %3855
      %v3857 = vmul.f32 %v3844, %v3837
      %v3858 = vmul.f32 %v3848, %v3838
      %v3859 = vmul.f32 %v3852, %v3839
      %v3860 = vmul.f32 %v3856, %v3840
      %v3861 = vadd.f32 %v3857, %v3858
      %v3862 = vrot.slane %v3861, 4
      %v3863 = vadd.f32 %v3861, %v3862
      %v3864 = vrot.slane %v3863, 2
      %v3865 = vadd.f32 %v3863, %v3864
      %v3866 = vrot.slane %v3865, 1
      %v3867 = vadd.f32 %v3865, %v3866
      %v3868 = vadd.f32 %v3859, %v3860
      %v3869 = vrot.slane %v3868, 4
      %v3870 = vadd.f32 %v3868, %v3869
      %v3871 = vrot.slane %v3870, 2
      %v3872 = vadd.f32 %v3870, %v3871
      %v3873 = vrot.slane %v3872, 1
      %v3874 = vadd.f32 %v3872, %v3873
      %3875 = vst [vmem:[#allocation2 + $0x4] sm:$0x1] %v3867
      %3876 = vst [vmem:[#allocation2 + $0xc] sm:$0x1] %v3874
      %v3877 = vmul.f32 %v3208, %v3837
      %v3878 = vmul.f32 %v3210, %v3838
      %v3879 = vmul.f32 %v3240, %v3839
      %v3880 = vmul.f32 %v3242, %v3840
      %v3881 = vadd.f32 %v3877, %v3635
      %v3882 = vadd.f32 %v3878, %v3636
      %v3883 = vadd.f32 %v3879, %v3651
      %v3884 = vadd.f32 %v3880, %v3652
      %s3886 = sor.u32 256, 20
      %3887 = vbcast.lane.b32.xlu0 %v3314, %s3886
      %v3888 = vpop.permute.xlu0 %3887
      %s3890 = sor.u32 256, 28
      %3891 = vbcast.lane.b32.xlu0 %v3314, %s3890
      %v3892 = vpop.permute.xlu0 %3891
      %s3894 = sor.u32 256, 20
      %3895 = vbcast.lane.b32.xlu0 %v3410, %s3894
      %v3896 = vpop.permute.xlu0 %3895
      %s3898 = sor.u32 256, 28
      %3899 = vbcast.lane.b32.xlu0 %v3410, %s3898
      %v3900 = vpop.permute.xlu0 %3899
      %v3901 = vmul.f32 %v3888, %v3881
      %v3902 = vmul.f32 %v3892, %v3882
      %v3903 = vmul.f32 %v3896, %v3883
      %v3904 = vmul.f32 %v3900, %v3884
      %v3905 = vadd.f32 %v3901, %v3902
      %v3906 = vrot.slane %v3905, 4
      %v3907 = vadd.f32 %v3905, %v3906
      %v3908 = vrot.slane %v3907, 2
      %v3909 = vadd.f32 %v3907, %v3908
      %v3910 = vrot.slane %v3909, 1
      %v3911 = vadd.f32 %v3909, %v3910
      %v3912 = vadd.f32 %v3903, %v3904
      %v3913 = vrot.slane %v3912, 4
      %v3914 = vadd.f32 %v3912, %v3913
      %v3915 = vrot.slane %v3914, 2
      %v3916 = vadd.f32 %v3914, %v3915
      %v3917 = vrot.slane %v3916, 1
      %v3918 = vadd.f32 %v3916, %v3917
      %3919 = vst [vmem:[#allocation2 + $0x5] sm:$0x1] %v3911
      %3920 = vst [vmem:[#allocation2 + $0xd] sm:$0x1] %v3918
      %v3921 = vmul.f32 %v3212, %v3881
      %v3922 = vmul.f32 %v3214, %v3882
      %v3923 = vmul.f32 %v3244, %v3883
      %v3924 = vmul.f32 %v3246, %v3884
      %v3925 = vadd.f32 %v3921, %v3637
      %v3926 = vadd.f32 %v3922, %v3638
      %v3927 = vadd.f32 %v3923, %v3653
      %v3928 = vadd.f32 %v3924, %v3654
      %s3930 = sor.u32 256, 20
      %3931 = vbcast.lane.b32.xlu0 %v3326, %s3930
      %v3932 = vpop.permute.xlu0 %3931
      %s3934 = sor.u32 256, 28
      %3935 = vbcast.lane.b32.xlu0 %v3326, %s3934
      %v3936 = vpop.permute.xlu0 %3935
      %s3938 = sor.u32 256, 20
      %3939 = vbcast.lane.b32.xlu0 %v3422, %s3938
      %v3940 = vpop.permute.xlu0 %3939
      %s3942 = sor.u32 256, 28
      %3943 = vbcast.lane.b32.xlu0 %v3422, %s3942
      %v3944 = vpop.permute.xlu0 %3943
      %v3945 = vmul.f32 %v3932, %v3925
      %v3946 = vmul.f32 %v3936, %v3926
      %v3947 = vmul.f32 %v3940, %v3927
      %v3948 = vmul.f32 %v3944, %v3928
      %v3949 = vadd.f32 %v3945, %v3946
      %v3950 = vrot.slane %v3949, 4
      %v3951 = vadd.f32 %v3949, %v3950
      %v3952 = vrot.slane %v3951, 2
      %v3953 = vadd.f32 %v3951, %v3952
      %v3954 = vrot.slane %v3953, 1
      %v3955 = vadd.f32 %v3953, %v3954
      %v3956 = vadd.f32 %v3947, %v3948
      %v3957 = vrot.slane %v3956, 4
      %v3958 = vadd.f32 %v3956, %v3957
      %v3959 = vrot.slane %v3958, 2
      %v3960 = vadd.f32 %v3958, %v3959
      %v3961 = vrot.slane %v3960, 1
      %v3962 = vadd.f32 %v3960, %v3961
      %3963 = vst [vmem:[#allocation2 + $0x6] sm:$0x1] %v3955
      %3964 = vst [vmem:[#allocation2 + $0xe] sm:$0x1] %v3962
      %v3965 = vmul.f32 %v3216, %v3925
      %v3966 = vmul.f32 %v3218, %v3926
      %v3967 = vmul.f32 %v3248, %v3927
      %v3968 = vmul.f32 %v3250, %v3928
      %v3969 = vadd.f32 %v3965, %v3639
      %v3970 = vadd.f32 %v3966, %v3640
      %v3971 = vadd.f32 %v3967, %v3655
      %v3972 = vadd.f32 %v3968, %v3656
      %s3974 = sor.u32 256, 20
      %3975 = vbcast.lane.b32.xlu0 %v3338, %s3974
      %v3976 = vpop.permute.xlu0 %3975
      %s3978 = sor.u32 256, 28
      %3979 = vbcast.lane.b32.xlu0 %v3338, %s3978
      %v3980 = vpop.permute.xlu0 %3979
      %s3982 = sor.u32 256, 20
      %3983 = vbcast.lane.b32.xlu0 %v3434, %s3982
      %v3984 = vpop.permute.xlu0 %3983
      %s3986 = sor.u32 256, 28
      %3987 = vbcast.lane.b32.xlu0 %v3434, %s3986
      %v3988 = vpop.permute.xlu0 %3987
      %v3989 = vmul.f32 %v3976, %v3969
      %v3990 = vmul.f32 %v3980, %v3970
      %v3991 = vmul.f32 %v3984, %v3971
      %v3992 = vmul.f32 %v3988, %v3972
      %v3993 = vadd.f32 %v3989, %v3990
      %v3994 = vrot.slane %v3993, 4
      %v3995 = vadd.f32 %v3993, %v3994
      %v3996 = vrot.slane %v3995, 2
      %v3997 = vadd.f32 %v3995, %v3996
      %v3998 = vrot.slane %v3997, 1
      %v3999 = vadd.f32 %v3997, %v3998
      %v4000 = vadd.f32 %v3991, %v3992
      %v4001 = vrot.slane %v4000, 4
      %v4002 = vadd.f32 %v4000, %v4001
      %v4003 = vrot.slane %v4002, 2
      %v4004 = vadd.f32 %v4002, %v4003
      %v4005 = vrot.slane %v4004, 1
      %v4006 = vadd.f32 %v4004, %v4005
      %4007 = vst [vmem:[#allocation2 + $0x7] sm:$0x1] %v3999
      %4008 = vst [vmem:[#allocation2 + $0xf] sm:$0x1] %v4006
      %v4009 = vld [vmem:[#allocation2] sm:$0xff]
      %v4010 = vld [vmem:[#allocation2 + $0x8] sm:$0xff]
      %v4011 = vld [vmem:[%s13] sm:$0x1]
      %v4013 = vlaneseq
      %v4014 = vshrl.u32 %v4013, 7
      %v4015 = vsub.s32 0, %v4014
      %v4016 = vrot.slane %v4011, %v4015
      %v4018 = vmul.f32 %v4016, %v2748
      %v4019 = vmul.f32 %v4016, %v2749
      %v4020 = vadd.f32 %v4009, %v4018
      %v4021 = vadd.f32 %v4010, %v4019
      %v4022 = vsub.f32 0.0, %v2662
      %v4023 = vsub.f32 0.0, %v2666
      %v4024 = vmul.f32 %v4022, 1.442695
      %v4025 = vpow.pop %v4024
      %v4026 = vmul.f32 %v4023, 1.442695
      %v4027 = vpow.pop %v4026
      %v4028 = vadd.f32 %v4025, 1.0
      %v4029 = vadd.f32 %v4027, 1.0
      %v4030 = vrcp.pop %v4028
      %v4031 = vrcp.pop %v4029
      %v4032 = vmul.f32 %v2662, %v4030
      %v4033 = vmul.f32 %v2666, %v4031
      %v4034 = vmul.f32 %v4020, %v4032
      %v4035 = vmul.f32 %v4021, %v4033
      %v4036 = vpack.c.bf16 %v4035, %v4034
      %v4037 = vld [vmem:[%s14] sm:$0xf]
      %v4038 = vld [vmem:[%s14 + $0x4] sm:$0xf]
      %v4039 = vld [vmem:[%s14 + $0x8] sm:$0xf]
      %v4040 = vld [vmem:[%s14 + $0xc] sm:$0xf]
      %v4041 = vld [vmem:[%s14 + $0x10] sm:$0xf]
      %v4042 = vld [vmem:[%s14 + $0x14] sm:$0xf]
      %v4043 = vld [vmem:[%s14 + $0x18] sm:$0xf]
      %v4044 = vld [vmem:[%s14 + $0x1c] sm:$0xf]
      %v4045 = vld [vmem:[%s14 + $0x20] sm:$0xf]
      %v4046 = vld [vmem:[%s14 + $0x24] sm:$0xf]
      %v4047 = vld [vmem:[%s14 + $0x28] sm:$0xf]
      %v4048 = vld [vmem:[%s14 + $0x2c] sm:$0xf]
      %v4049 = vld [vmem:[%s14 + $0x30] sm:$0xf]
      %v4050 = vld [vmem:[%s14 + $0x34] sm:$0xf]
      %v4051 = vld [vmem:[%s14 + $0x38] sm:$0xf]
      %v4052 = vld [vmem:[%s14 + $0x3c] sm:$0xf]
      %v4069 = vunpack.c.l.b16 %v4037
      %v4070 = vunpack.c.l.b16 %v4038
      %v4071 = vunpack.c.l.b16 %v4039
      %v4072 = vunpack.c.l.b16 %v4040
      %v4073 = vunpack.c.l.b16 %v4041
      %v4074 = vunpack.c.l.b16 %v4042
      %v4075 = vunpack.c.l.b16 %v4043
      %v4076 = vunpack.c.l.b16 %v4044
      %v4077 = vunpack.c.l.b16 %v4045
      %v4078 = vunpack.c.l.b16 %v4046
      %v4079 = vunpack.c.l.b16 %v4047
      %v4080 = vunpack.c.l.b16 %v4048
      %v4081 = vunpack.c.l.b16 %v4049
      %v4082 = vunpack.c.l.b16 %v4050
      %v4083 = vunpack.c.l.b16 %v4051
      %v4084 = vunpack.c.l.b16 %v4052
      %v4085 = vpack.c.b16 %v4070, %v4069
      %v4086 = vpack.c.b16 %v4072, %v4071
      %v4087 = vpack.c.b16 %v4074, %v4073
      %v4088 = vpack.c.b16 %v4076, %v4075
      %v4089 = vpack.c.b16 %v4078, %v4077
      %v4090 = vpack.c.b16 %v4080, %v4079
      %v4091 = vpack.c.b16 %v4082, %v4081
      %v4092 = vpack.c.b16 %v4084, %v4083
      %4101 = vmatprep.subr.bf16.mxu0 0
      %4102 = vmatpush1.bf16.msra.mxu0 %v4092
      %4103 = vmatprep.subr.bf16.mxu0 0
      %4104 = vmatpush1.bf16.msra.mxu0 %v4091
      %4105 = vmatprep.subr.bf16.mxu0 0
      %4106 = vmatpush1.bf16.msra.mxu0 %v4090
      %4107 = vmatprep.subr.bf16.mxu0 0
      %4108 = vmatpush1.bf16.msra.mxu0 %v4089
      %4109 = vmatprep.subr.bf16.mxu0 0
      %4110 = vmatpush1.bf16.msra.mxu0 %v4088
      %4111 = vmatprep.subr.bf16.mxu0 0
      %4112 = vmatpush1.bf16.msra.mxu0 %v4087
      %4113 = vmatprep.subr.bf16.mxu0 0
      %4114 = vmatpush1.bf16.msra.mxu0 %v4086
      %4115 = vmatprep.subr.bf16.mxu0 0
      %4116 = vmatpush1.bf16.msra.mxu0 %v4085
      %4117 = vmatprep.subr.bf16.mxu0 0
      %4118 = vmatpush2.bf16.msra.mxu0 0
      %4119 = vmatprep.subr.bf16.mxu0 0
      %4120 = vmatpush2.bf16.msra.mxu0 0
      %4121 = vmatprep.subr.bf16.mxu0 0
      %4122 = vmatpush2.bf16.msra.mxu0 0
      %4123 = vmatprep.subr.bf16.mxu0 0
      %4124 = vmatpush2.bf16.msra.mxu0 0
      %4125 = vmatprep.subr.bf16.mxu0 0
      %4126 = vmatpush2.bf16.msra.mxu0 0
      %4127 = vmatprep.subr.bf16.mxu0 0
      %4128 = vmatpush2.bf16.msra.mxu0 0
      %4129 = vmatprep.subr.bf16.mxu0 0
      %4130 = vmatpush2.bf16.msra.mxu0 0
      %4131 = vmatprep.subr.bf16.mxu0 0
      %4132 = vmatpush2.bf16.msra.mxu0 0
      %4133 = vmatprep.mubr.bf16.mxu0 0
      %4134 = vmatmul.mubr.bf16.gmra.mxu0 %v4036
      %v4135 = vpop.f32.mrf.mxu0
      %v4136 = vadd.f32 0.0, %v4135
      %v4137 = vpop.f32.mrf.mxu0
      %v4138 = vpop.f32.mrf.mxu0
      %v4139 = vadd.f32 0.0, %v4138
      %v4140 = vpop.f32.mrf.mxu0
      %4141 = vdwg.mxu0
      %4144 = vrot.lane.b32.xlu0 %v4136, 64
      %v4145 = vpop.permute.xlu0 %4144
      %4146 = vrot.lane.b32.xlu0 %v4139, 64
      %v4147 = vpop.permute.xlu0 %4146
      %v4150 = vsel %vm589, %v2568, %v4145
      %v4151 = vsel %vm589, %v2571, %v4147
      %4152 = vst [vmem:[%s518] sm:$0xff] %v4150
      %4153 = vst [vmem:[%s518 + $0x8] sm:$0xff] %v4151
      %s4154 = smul.u32 2, %s26
      %p4155 = scmp.lt.s32.totalorder %s4154, 7
      %s4156 = scalar_select %p4155, %s4154, 7
      %s4157 = smul.addr %s4156, 8
      %s4158 = scalar_lea.vmem %s15, %s4157
      // Predicated region
      $region81: #{vkff_forward.1} parent=79 // pred_check
        %p4159 = pneg %p369
      $region82: #{vkff_forward.1} parent=79 // pred_check_branch
        %4161 = sbr.rel (%p4159) target = $region84
      $region83: #{vkff_forward.1} parent=79 // pred_region
        %s4162 = smul.u32 2, %s26
      $region84: #{vkff_forward.1} parent=79 // pred_fallthru
        _
    $region80: #{vkff_forward.1} parent=5 // pred_fallthru
      _
    %p4163 = scmp.le.s32.totalorder 2, %s21
    // Predicated region
    $region85: #{vkff_forward.1} parent=5 // pred_check
      %p4164 = pneg %p4163
    $region86: #{vkff_forward.1} parent=5 // pred_check_branch
      %4166 = sbr.rel (%p4164) target = $region88
    $region87: #{vkff_forward.1} parent=5 // pred_region
      %s4167 = ssub.s32 %s21, 2
      // Predicated region
      $region89: #{vkff_forward.1} parent=87 // pred_check
        %p4168 = pneg %p375
      $region90: #{vkff_forward.1} parent=87 // pred_check_branch
        %4170 = sbr.rel (%p4168) target = $region92
      $region91: #{vkff_forward.1} parent=87 // pred_region
        %s4171 = smul.u32 2, %s27
        %p4172 = scmp.lt.s32.totalorder %s4171, 7
        %s4173 = scalar_select %p4172, %s4171, 7
        %s4174 = smul.addr %s4173, 8
        %s4175 = scalar_lea.vmem %s15, %s4174
      $region92: #{vkff_forward.1} parent=87 // pred_fallthru
        _
    $region88: #{vkff_forward.1} parent=5 // pred_fallthru
      _
  $region6: #{vkff_forward.1} parent=0 // loop_footer
    %s25 = sadd.s32 1, %s21
  $region7: #{vkff_forward.1} parent=0 // loop_footer_branch
    %20 = sbr.rel target = $region3
  $region8: #{vkff_forward.1} parent=0 // loop_exit
    _

</llo_original>
